<compile_context>
chip_gen: v5e
topology: v5e:2x2
jax: 0.10.0
libtpu: 0.0.40
codegen_flags: <defaults>
</compile_context>

<pallas_src>
import functools

import numpy as np
import jax
import jax.numpy as jnp
from jax import lax
from jax.experimental import pallas as pl
from jax.experimental.pallas import tpu as pltpu


def _round_up(x, m):
    return (x + m - 1) // m * m


def _sigmoid(x):
    # tanh form: 1 EUP push on the serial recurrence path instead of
    # exp + reciprocal (2 pushes + VPU divide).
    return 0.5 * jnp.tanh(0.5 * x) + 0.5


def _vmem_estimate(tt, bp, i2, hh, mxu_itemsize):
    """Rough VMEM bytes for one grid step (double-buffered blocks + scratch)."""
    x_blk = 2 * tt * bp * i2 * mxu_itemsize          # x chunk, 2 buffers
    y_blk = 2 * tt * bp * hh * 4                     # y chunk, 2 buffers
    w = 2 * (i2 * 4 * hh + hh * 4 * hh) * mxu_itemsize + 2 * 4 * hh * 4
    xp = tt * bp * 4 * hh * 4                        # hoisted projection scratch
    state = 2 * bp * hh * 4                          # h, c
    return x_blk + y_blk + w + xp + state


def _fused_lstm_kernel(x_ref, wih_ref, whh_ref, b_ref, y_ref,
                       xp_ref, h_ref, c_ref, *, tt, bp, hh):
    """One time-chunk of the fused (real+imag, block-diagonal) LSTM.

    x_ref   : (tt*Bp, 2I)    input chunk, rows ordered [time, batch]
    wih_ref : (2I, 4*HH)     input->gates (HH = 2*Hp, gate blocks lane-aligned)
    whh_ref : (HH, 4*HH)     hidden->gates (block-diagonal per gate)
    b_ref   : (1, 4*HH)      combined bias (b_ih + b_hh)
    y_ref   : (tt*Bp, HH)    output chunk (lane-dense, HH multiple of 128)
    xp_ref  : (tt*Bp, 4*HH)  scratch: hoisted x @ W_ih + b
    h_ref, c_ref : (Bp, HH)  recurrent state, persists across time chunks
    Gate column order follows PyTorch nn.LSTM: [i | f | g | o], each width HH.
    """
    chunk = pl.program_id(0)

    @pl.when(chunk == 0)
    def _():
        h_ref[...] = jnp.zeros_like(h_ref)
        c_ref[...] = jnp.zeros_like(c_ref)

    # Hoisted input projection + bias for the whole chunk: one big MXU matmul.
    xp_ref[...] = (
        jnp.dot(x_ref[...], wih_ref[...], preferred_element_type=jnp.float32)
        + b_ref[...]
    )

    whh = whh_ref[...]              # loaded once; reused every recurrent step
    mxu_dtype = whh.dtype

    def step(t, carry):
        h_prev, c_prev = carry
        row = pl.multiple_of(t * bp, bp)
        xg = xp_ref[pl.ds(row, bp), :]                           # (Bp, 4*HH)
        gates = xg + jnp.dot(h_prev.astype(mxu_dtype), whh,
                             preferred_element_type=jnp.float32)
        sig_if = _sigmoid(gates[:, :2 * hh])          # i and f in one EUP pass
        i_g = sig_if[:, :hh]
        f_g = sig_if[:, hh:]
        g_g = jnp.tanh(gates[:, 2 * hh:3 * hh])
        o_g = _sigmoid(gates[:, 3 * hh:4 * hh])
        c_new = f_g * c_prev + i_g * g_g
        h_new = o_g * jnp.tanh(c_new)
        y_ref[pl.ds(row, bp), :] = h_new                         # VMEM-only store
        return h_new, c_new

    # (h, c) stay in vregs across the chunk; scratch written once at the end.
    # TODO(synk): sweep this unroll factor at production Bp/HH (vreg pressure).
    h_fin, c_fin = lax.fori_loop(0, tt, step, (h_ref[...], c_ref[...]),
                                 unroll=min(tt, 8))
    h_ref[...] = h_fin
    c_ref[...] = c_fin


def _fused_lstm_pallas(x_flat, wih, whh, b, *, tt, bp, hh, vmem_limit):
    """Run the fused two-LSTM recurrence over a time-chunked 1-D grid."""
    rows, i2 = x_flat.shape
    n_chunks = rows // (tt * bp)
    kernel = functools.partial(_fused_lstm_kernel, tt=tt, bp=bp, hh=hh)

    grid_spec = pltpu.PrefetchScalarGridSpec(
        num_scalar_prefetch=0,
        grid=(n_chunks,),
        in_specs=[
            pl.BlockSpec((tt * bp, i2), lambda c: (c, 0)),
            # TODO(synk): single-buffer (or pre-DMA once into scratch) these
            # chunk-invariant weight blocks when HH is large, to save VMEM on
            # v7x's 64 MiB budget.
            pl.BlockSpec((i2, 4 * hh), lambda c: (0, 0)),
            pl.BlockSpec((hh, 4 * hh), lambda c: (0, 0)),
            pl.BlockSpec((1, 4 * hh), lambda c: (0, 0)),
        ],
        out_specs=pl.BlockSpec((tt * bp, hh), lambda c: (c, 0)),
        scratch_shapes=[
            pltpu.VMEM((tt * bp, 4 * hh), jnp.float32),   # hoisted x@W_ih + b
            pltpu.VMEM((bp, hh), jnp.float32),            # h state
            pltpu.VMEM((bp, hh), jnp.float32),            # c state
        ],
    )

    return pl.pallas_call(
        kernel,
        out_shape=jax.ShapeDtypeStruct((rows, hh), jnp.float32),
        grid_spec=grid_spec,
        compiler_params=pltpu.CompilerParams(
            dimension_semantics=("arbitrary",),           # recurrence axis
            vmem_limit_bytes=vmem_limit),
    )(x_flat, wih, whh, b)


class ComplexLSTMPallas:
    """JAX/Pallas reimplementation of the PyTorch ComplexLSTM module."""

    def __init__(self, in_channels, hidden_channels, key,
                 mxu_dtype=jnp.bfloat16):
        assert in_channels % 2 == 0
        assert hidden_channels % 2 == 0
        self.in_half = in_channels // 2
        self.hid_half = hidden_channels // 2
        self.mxu_dtype = mxu_dtype

        # PyTorch nn.LSTM init: U(-1/sqrt(hidden), 1/sqrt(hidden))
        bound = 1.0 / float(self.hid_half) ** 0.5
        keys = jax.random.split(key, 8)

        def u(k, shape):
            return jax.random.uniform(k, shape, jnp.float32, -bound, bound)

        def make_params(ks):
            return dict(
                w_ih=u(ks[0], (4 * self.hid_half, self.in_half)),
                w_hh=u(ks[1], (4 * self.hid_half, self.hid_half)),
                b_ih=u(ks[2], (4 * self.hid_half,)),
                b_hh=u(ks[3], (4 * self.hid_half,)),
            )

        self.real_lstm = make_params(keys[0:4])
        self.imag_lstm = make_params(keys[4:8])

        # ---- pack fused, padded, gate-lane-aligned block-diagonal weights ----
        H = self.hid_half
        I = self.in_half
        # TODO(synk): for hid_half < 128 this per-gate padding to 128 lanes is a
        # ~(128/H)x constant-factor overhead; pack gates contiguously (one
        # in-vreg split per step) if small hidden sizes are the real workload.
        self.H_pad = _round_up(H, 128)
        Hp = self.H_pad
        HH = 2 * Hp           # fused hidden width: [real-lstm lanes | imag-lstm lanes]
        self.HH = HH

        wih_big = jnp.zeros((2 * I, 4 * HH), jnp.float32)
        whh_big = jnp.zeros((HH, 4 * HH), jnp.float32)
        b_big = jnp.zeros((1, 4 * HH), jnp.float32)
        for n, p in enumerate((self.real_lstm, self.imag_lstm)):
            wih = jnp.transpose(p["w_ih"])        # (I, 4H), cols [i|f|g|o]
            whh = jnp.transpose(p["w_hh"])        # (H, 4H)
            bias = (p["b_ih"] + p["b_hh"]).reshape(1, 4 * H)
            for g in range(4):
                col = g * HH + n * Hp
                wih_big = wih_big.at[n * I:(n + 1) * I, col:col + H].set(
                    wih[:, g * H:(g + 1) * H])
                whh_big = whh_big.at[n * Hp:n * Hp + H, col:col + H].set(
                    whh[:, g * H:(g + 1) * H])
                b_big = b_big.at[:, col:col + H].set(bias[:, g * H:(g + 1) * H])
        # MXU operands in bf16 (default); bias stays f32 (added post-MXU).
        self.wih_big = wih_big.astype(mxu_dtype)
        self.whh_big = whh_big.astype(mxu_dtype)
        self.b_big = b_big

    def __call__(self, x):
        # x: (T, B, in_channels) -> (T, B, hidden_channels)
        T, B, _ = x.shape
        real, imag = jnp.split(x, 2, axis=-1)

        # Batch-stack the two input streams; feature-stack per fused LSTM:
        #   rows [0:B]  features [real|imag] -> real_lstm(real), imag_lstm(imag)
        #   rows [B:2B] features [imag|real] -> real_lstm(imag), imag_lstm(real)
        grp_a = jnp.concatenate([real, imag], axis=-1)
        grp_b = jnp.concatenate([imag, real], axis=-1)
        x_big = jnp.concatenate([grp_a, grp_b], axis=1)       # (T, 2B, 2I)

        Bp = _round_up(2 * B, 8)                               # f32 sublane tile
        if Bp != 2 * B:
            x_big = jnp.pad(x_big, ((0, 0), (0, Bp - 2 * B), (0, 0)))

        HH = self.HH
        I2 = 2 * self.in_half
        itemsize = np.dtype(self.mxu_dtype).itemsize

        # Time-chunk size: fill the 256-row MXU (v6e/v7x) when T allows, then
        # shrink against a v7x-safe VMEM budget.
        tt = min(T, max(8, -(-256 // Bp)))
        budget = 40 << 20
        while tt > 1 and _vmem_estimate(tt, Bp, I2, HH, itemsize) > budget:
            tt //= 2
        Tp = _round_up(T, tt)
        if Tp != T:
            # Extra (zero) steps only touch state past the real sequence and
            # outputs that are sliced off below.
            x_big = jnp.pad(x_big, ((0, Tp - T), (0, 0), (0, 0)))

        # Flatten (time, batch) in the wrapper so the kernel sees lane-dense
        # 2-D blocks (no in-kernel reshape copy).
        x_flat = x_big.astype(self.mxu_dtype).reshape(Tp * Bp, I2)

        vmem_limit = min(
            max(int(1.5 * _vmem_estimate(tt, Bp, I2, HH, itemsize)) + (4 << 20),
                32 << 20),
            48 << 20)

        out = _fused_lstm_pallas(x_flat, self.wih_big, self.whh_big, self.b_big,
                                 tt=tt, bp=Bp, hh=HH, vmem_limit=vmem_limit)
        out = out.reshape(Tp, Bp, HH)[:T]                      # drop time pad

        H = self.hid_half
        Hp = self.H_pad
        real2real = out[:, :B, :H]
        imag2imag = out[:, :B, Hp:Hp + H]
        imag2real = out[:, B:2 * B, :H]
        real2imag = out[:, B:2 * B, Hp:Hp + H]

        real_out = real2real - imag2imag
        imag_out = real2imag + imag2real
        return jnp.concatenate([real_out, imag_out], axis=-1).astype(x.dtype)


# ----- pure-JAX reference (lax.scan) for correctness check -----
def _lstm_ref(x, w_ih, w_hh, b_ih, b_hh):
    T, B, I = x.shape
    H = w_hh.shape[1]
    bias = b_ih + b_hh

    def step(carry, x_t):
        h, c = carry
        gates = x_t @ w_ih.T + h @ w_hh.T + bias
        i = jax.nn.sigmoid(gates[:, 0 * H:1 * H])
        f = jax.nn.sigmoid(gates[:, 1 * H:2 * H])
        g = jnp.tanh(gates[:, 2 * H:3 * H])
        o = jax.nn.sigmoid(gates[:, 3 * H:4 * H])
        c = f * c + i * g
        h = o * jnp.tanh(c)
        return (h, c), h

    init = (jnp.zeros((B, H), jnp.float32), jnp.zeros((B, H), jnp.float32))
    _, ys = jax.lax.scan(step, init, x)
    return ys


def _complex_lstm_ref(module, x):
    real, imag = jnp.split(x, 2, axis=-1)
    r2r = _lstm_ref(real, **module.real_lstm)
    i2r = _lstm_ref(imag, **module.real_lstm)
    i2i = _lstm_ref(imag, **module.imag_lstm)
    r2i = _lstm_ref(real, **module.imag_lstm)
    return jnp.concatenate([r2r - i2i, r2i + i2r], axis=-1)


if __name__ == "__main__":
    key = jax.random.PRNGKey(0)
    k_param, k_x = jax.random.split(key)

    T, B = 8, 2
    in_channels, hidden_channels = 8, 16
    x = jax.random.normal(k_x, (T, B, in_channels), jnp.float32)

    # f32-MXU build: tight structural check against the lax.scan reference.
    mod_f32 = ComplexLSTMPallas(in_channels, hidden_channels, k_param,
                                mxu_dtype=jnp.float32)
    out_f32 = jax.block_until_ready(mod_f32(x))
    ref = _complex_lstm_ref(mod_f32, x)
    assert out_f32.shape == (T, B, hidden_channels)
    assert jnp.allclose(out_f32, ref, atol=1e-4, rtol=1e-4), "f32 mismatch"

    # Default bf16-MXU build (production setting per perf review); looser
    # tolerance because the reference accumulates in f32 end to end.
    mod_bf16 = ComplexLSTMPallas(in_channels, hidden_channels, k_param)
    out_bf16 = jax.block_until_ready(mod_bf16(x))
    assert out_bf16.shape == (T, B, hidden_channels)
    assert jnp.allclose(out_bf16, ref, atol=5e-2, rtol=5e-2), "bf16 mismatch"

    print("KERNEL_OK")
</pallas_src>

<mosaic_0001>
module attributes {stable_mosaic.version = 11 : i64} {
  func.func @_fused_lstm_kernel(%arg0: i32, %arg1: memref<64x8xf32, #tpu.memory_space<vmem>>, %arg2: memref<8x1024xf32, #tpu.memory_space<vmem>>, %arg3: memref<256x1024xf32, #tpu.memory_space<vmem>>, %arg4: memref<1x1024xf32, #tpu.memory_space<vmem>>, %arg5: memref<64x256xf32, #tpu.memory_space<vmem>>, %arg6: memref<64x1024xf32, #tpu.memory_space<vmem>>, %arg7: memref<8x256xf32, #tpu.memory_space<vmem>>, %arg8: memref<8x256xf32, #tpu.memory_space<vmem>>) attributes {dimension_semantics = [#tpu.dimension_semantics<arbitrary>], iteration_bounds = array<i64: 1>, scalar_prefetch = 0 : i64, scratch_operands = 3 : i64, tpu.core_type = #tpu.core_type<tc>, window_params = [{transform_indices = @transform_0, window_bounds = array<i64: 64, 8>}, {pipeline_mode = #tpu.pipeline_mode<synchronous>, transform_indices = @transform_1, window_bounds = array<i64: 8, 1024>}, {pipeline_mode = #tpu.pipeline_mode<synchronous>, transform_indices = @transform_2, window_bounds = array<i64: 256, 1024>}, {pipeline_mode = #tpu.pipeline_mode<synchronous>, transform_indices = @transform_3, window_bounds = array<i64: 1, 1024>}, {transform_indices = @transform_4, window_bounds = array<i64: 64, 256>}]} {
    %c0_i32 = arith.constant 0 : i32
    %0 = arith.cmpi eq, %arg0, %c0_i32 : i32
    %1 = arith.extui %0 : i1 to i32
    %c0_i32_0 = arith.constant 0 : i32
    %2 = arith.cmpi ne, %1, %c0_i32_0 : i32
    scf.if %2 {
      %cst_99 = arith.constant 0.000000e+00 : f32
      %279 = vector.broadcast %cst_99 : f32 to vector<8x256xf32>
      %c0_100 = arith.constant 0 : index
      %c0_101 = arith.constant 0 : index
      %280 = vector.load %arg7[%c0_100, %c0_101] : memref<8x256xf32, #tpu.memory_space<vmem>>, vector<8x256xf32>
      tpu.vector_store %arg7[%c0_100, %c0_101], %279 {strides = array<i32>} : memref<8x256xf32, #tpu.memory_space<vmem>>, vector<8x256xf32>,
      %cst_102 = arith.constant 0.000000e+00 : f32
      %281 = vector.broadcast %cst_102 : f32 to vector<8x256xf32>
      %c0_103 = arith.constant 0 : index
      %c0_104 = arith.constant 0 : index
      %282 = vector.load %arg8[%c0_103, %c0_104] : memref<8x256xf32, #tpu.memory_space<vmem>>, vector<8x256xf32>
      tpu.vector_store %arg8[%c0_103, %c0_104], %281 {strides = array<i32>} : memref<8x256xf32, #tpu.memory_space<vmem>>, vector<8x256xf32>,
    } else {
    }
    %c0 = arith.constant 0 : index
    %c0_1 = arith.constant 0 : index
    %3 = vector.load %arg1[%c0, %c0_1] : memref<64x8xf32, #tpu.memory_space<vmem>>, vector<64x8xf32>
    %c0_2 = arith.constant 0 : index
    %c0_3 = arith.constant 0 : index
    %4 = vector.load %arg2[%c0_2, %c0_3] : memref<8x1024xf32, #tpu.memory_space<vmem>>, vector<8x1024xf32>
    %cst = arith.constant dense<0.000000e+00> : vector<64x1024xf32>
    %5 = tpu.matmul %3, %4, %cst {dimension_numbers = #tpu.dot_dimension_numbers<[1], [0], [0], [1], [0, 0, 1, 1], [], []>} : vector<64x8xf32>, vector<8x1024xf32>, vector<64x1024xf32> -> vector<64x1024xf32>
    %c0_4 = arith.constant 0 : index
    %c0_5 = arith.constant 0 : index
    %6 = vector.load %arg4[%c0_4, %c0_5] : memref<1x1024xf32, #tpu.memory_space<vmem>>, vector<1x1024xf32>
    %7 = vector.broadcast %6 : vector<1x1024xf32> to vector<64x1024xf32>
    %8 = arith.addf %5, %7 : vector<64x1024xf32>
    %c0_6 = arith.constant 0 : index
    %c0_7 = arith.constant 0 : index
    %9 = vector.load %arg6[%c0_6, %c0_7] : memref<64x1024xf32, #tpu.memory_space<vmem>>, vector<64x1024xf32>
    tpu.vector_store %arg6[%c0_6, %c0_7], %8 {strides = array<i32>} : memref<64x1024xf32, #tpu.memory_space<vmem>>, vector<64x1024xf32>,
    %c0_8 = arith.constant 0 : index
    %c0_9 = arith.constant 0 : index
    %10 = vector.load %arg3[%c0_8, %c0_9] : memref<256x1024xf32, #tpu.memory_space<vmem>>, vector<256x1024xf32>
    %c0_10 = arith.constant 0 : index
    %c0_11 = arith.constant 0 : index
    %11 = vector.load %arg7[%c0_10, %c0_11] : memref<8x256xf32, #tpu.memory_space<vmem>>, vector<8x256xf32>
    %c0_12 = arith.constant 0 : index
    %c0_13 = arith.constant 0 : index
    %12 = vector.load %arg8[%c0_12, %c0_13] : memref<8x256xf32, #tpu.memory_space<vmem>>, vector<8x256xf32>
    %c0_i32_14 = arith.constant 0 : i32
    %c8_i32 = arith.constant 8 : i32
    %13 = arith.muli %c0_i32_14, %c8_i32 : i32
    %14 = tpu.assume_multiple %13, 8 : i32
    %15 = arith.index_cast %14 : i32 to index
    %c0_15 = arith.constant 0 : index
    %16 = vector.load %arg6[%15, %c0_15] : memref<64x1024xf32, #tpu.memory_space<vmem>>, vector<8x1024xf32>
    %cst_16 = arith.constant dense<0.000000e+00> : vector<8x1024xf32>
    %17 = tpu.matmul %11, %10, %cst_16 {dimension_numbers = #tpu.dot_dimension_numbers<[1], [0], [0], [1], [0, 0, 1, 1], [], []>} : vector<8x256xf32>, vector<256x1024xf32>, vector<8x1024xf32> -> vector<8x1024xf32>
    %18 = arith.addf %16, %17 : vector<8x1024xf32>
    %19 = vector.extract_strided_slice %18 {offsets = [0, 0], sizes = [8, 512], strides = [1, 1]} : vector<8x1024xf32> to vector<8x512xf32>
    %cst_17 = arith.constant 5.000000e-01 : f32
    %20 = vector.broadcast %cst_17 : f32 to vector<8x512xf32>
    %21 = arith.mulf %20, %19 : vector<8x512xf32>
    %22 = math.tanh %21 : vector<8x512xf32>
    %cst_18 = arith.constant 5.000000e-01 : f32
    %23 = vector.broadcast %cst_18 : f32 to vector<8x512xf32>
    %24 = arith.mulf %23, %22 : vector<8x512xf32>
    %cst_19 = arith.constant 5.000000e-01 : f32
    %25 = vector.broadcast %cst_19 : f32 to vector<8x512xf32>
    %26 = arith.addf %24, %25 : vector<8x512xf32>
    %27 = vector.extract_strided_slice %26 {offsets = [0, 0], sizes = [8, 256], strides = [1, 1]} : vector<8x512xf32> to vector<8x256xf32>
    %28 = vector.extract_strided_slice %26 {offsets = [0, 256], sizes = [8, 256], strides = [1, 1]} : vector<8x512xf32> to vector<8x256xf32>
    %29 = vector.extract_strided_slice %18 {offsets = [0, 512], sizes = [8, 256], strides = [1, 1]} : vector<8x1024xf32> to vector<8x256xf32>
    %30 = math.tanh %29 : vector<8x256xf32>
    %31 = vector.extract_strided_slice %18 {offsets = [0, 768], sizes = [8, 256], strides = [1, 1]} : vector<8x1024xf32> to vector<8x256xf32>
    %cst_20 = arith.constant 5.000000e-01 : f32
    %32 = vector.broadcast %cst_20 : f32 to vector<8x256xf32>
    %33 = arith.mulf %32, %31 : vector<8x256xf32>
    %34 = math.tanh %33 : vector<8x256xf32>
    %cst_21 = arith.constant 5.000000e-01 : f32
    %35 = vector.broadcast %cst_21 : f32 to vector<8x256xf32>
    %36 = arith.mulf %35, %34 : vector<8x256xf32>
    %cst_22 = arith.constant 5.000000e-01 : f32
    %37 = vector.broadcast %cst_22 : f32 to vector<8x256xf32>
    %38 = arith.addf %36, %37 : vector<8x256xf32>
    %39 = arith.mulf %28, %12 : vector<8x256xf32>
    %40 = arith.mulf %27, %30 : vector<8x256xf32>
    %41 = arith.addf %39, %40 : vector<8x256xf32>
    %42 = math.tanh %41 : vector<8x256xf32>
    %43 = arith.mulf %38, %42 : vector<8x256xf32>
    %44 = arith.index_cast %14 : i32 to index
    %c0_23 = arith.constant 0 : index
    %45 = vector.load %arg5[%44, %c0_23] : memref<64x256xf32, #tpu.memory_space<vmem>>, vector<8x256xf32>
    tpu.vector_store %arg5[%44, %c0_23], %43 {strides = array<i32>} : memref<64x256xf32, #tpu.memory_space<vmem>>, vector<8x256xf32>,
    %c1_i32 = arith.constant 1 : i32
    %c8_i32_24 = arith.constant 8 : i32
    %46 = arith.muli %c1_i32, %c8_i32_24 : i32
    %47 = tpu.assume_multiple %46, 8 : i32
    %48 = arith.index_cast %47 : i32 to index
    %c0_25 = arith.constant 0 : index
    %49 = vector.load %arg6[%48, %c0_25] : memref<64x1024xf32, #tpu.memory_space<vmem>>, vector<8x1024xf32>
    %cst_26 = arith.constant dense<0.000000e+00> : vector<8x1024xf32>
    %50 = tpu.matmul %43, %10, %cst_26 {dimension_numbers = #tpu.dot_dimension_numbers<[1], [0], [0], [1], [0, 0, 1, 1], [], []>} : vector<8x256xf32>, vector<256x1024xf32>, vector<8x1024xf32> -> vector<8x1024xf32>
    %51 = arith.addf %49, %50 : vector<8x1024xf32>
    %52 = vector.extract_strided_slice %51 {offsets = [0, 0], sizes = [8, 512], strides = [1, 1]} : vector<8x1024xf32> to vector<8x512xf32>
    %cst_27 = arith.constant 5.000000e-01 : f32
    %53 = vector.broadcast %cst_27 : f32 to vector<8x512xf32>
    %54 = arith.mulf %53, %52 : vector<8x512xf32>
    %55 = math.tanh %54 : vector<8x512xf32>
    %cst_28 = arith.constant 5.000000e-01 : f32
    %56 = vector.broadcast %cst_28 : f32 to vector<8x512xf32>
    %57 = arith.mulf %56, %55 : vector<8x512xf32>
    %cst_29 = arith.constant 5.000000e-01 : f32
    %58 = vector.broadcast %cst_29 : f32 to vector<8x512xf32>
    %59 = arith.addf %57, %58 : vector<8x512xf32>
    %60 = vector.extract_strided_slice %59 {offsets = [0, 0], sizes = [8, 256], strides = [1, 1]} : vector<8x512xf32> to vector<8x256xf32>
    %61 = vector.extract_strided_slice %59 {offsets = [0, 256], sizes = [8, 256], strides = [1, 1]} : vector<8x512xf32> to vector<8x256xf32>
    %62 = vector.extract_strided_slice %51 {offsets = [0, 512], sizes = [8, 256], strides = [1, 1]} : vector<8x1024xf32> to vector<8x256xf32>
    %63 = math.tanh %62 : vector<8x256xf32>
    %64 = vector.extract_strided_slice %51 {offsets = [0, 768], sizes = [8, 256], strides = [1, 1]} : vector<8x1024xf32> to vector<8x256xf32>
    %cst_30 = arith.constant 5.000000e-01 : f32
    %65 = vector.broadcast %cst_30 : f32 to vector<8x256xf32>
    %66 = arith.mulf %65, %64 : vector<8x256xf32>
    %67 = math.tanh %66 : vector<8x256xf32>
    %cst_31 = arith.constant 5.000000e-01 : f32
    %68 = vector.broadcast %cst_31 : f32 to vector<8x256xf32>
    %69 = arith.mulf %68, %67 : vector<8x256xf32>
    %cst_32 = arith.constant 5.000000e-01 : f32
    %70 = vector.broadcast %cst_32 : f32 to vector<8x256xf32>
    %71 = arith.addf %69, %70 : vector<8x256xf32>
    %72 = arith.mulf %61, %41 : vector<8x256xf32>
    %73 = arith.mulf %60, %63 : vector<8x256xf32>
    %74 = arith.addf %72, %73 : vector<8x256xf32>
    %75 = math.tanh %74 : vector<8x256xf32>
    %76 = arith.mulf %71, %75 : vector<8x256xf32>
    %77 = arith.index_cast %47 : i32 to index
    %c0_33 = arith.constant 0 : index
    %78 = vector.load %arg5[%77, %c0_33] : memref<64x256xf32, #tpu.memory_space<vmem>>, vector<8x256xf32>
    tpu.vector_store %arg5[%77, %c0_33], %76 {strides = array<i32>} : memref<64x256xf32, #tpu.memory_space<vmem>>, vector<8x256xf32>,
    %c2_i32 = arith.constant 2 : i32
    %c8_i32_34 = arith.constant 8 : i32
    %79 = arith.muli %c2_i32, %c8_i32_34 : i32
    %80 = tpu.assume_multiple %79, 8 : i32
    %81 = arith.index_cast %80 : i32 to index
    %c0_35 = arith.constant 0 : index
    %82 = vector.load %arg6[%81, %c0_35] : memref<64x1024xf32, #tpu.memory_space<vmem>>, vector<8x1024xf32>
    %cst_36 = arith.constant dense<0.000000e+00> : vector<8x1024xf32>
    %83 = tpu.matmul %76, %10, %cst_36 {dimension_numbers = #tpu.dot_dimension_numbers<[1], [0], [0], [1], [0, 0, 1, 1], [], []>} : vector<8x256xf32>, vector<256x1024xf32>, vector<8x1024xf32> -> vector<8x1024xf32>
    %84 = arith.addf %82, %83 : vector<8x1024xf32>
    %85 = vector.extract_strided_slice %84 {offsets = [0, 0], sizes = [8, 512], strides = [1, 1]} : vector<8x1024xf32> to vector<8x512xf32>
    %cst_37 = arith.constant 5.000000e-01 : f32
    %86 = vector.broadcast %cst_37 : f32 to vector<8x512xf32>
    %87 = arith.mulf %86, %85 : vector<8x512xf32>
    %88 = math.tanh %87 : vector<8x512xf32>
    %cst_38 = arith.constant 5.000000e-01 : f32
    %89 = vector.broadcast %cst_38 : f32 to vector<8x512xf32>
    %90 = arith.mulf %89, %88 : vector<8x512xf32>
    %cst_39 = arith.constant 5.000000e-01 : f32
    %91 = vector.broadcast %cst_39 : f32 to vector<8x512xf32>
    %92 = arith.addf %90, %91 : vector<8x512xf32>
    %93 = vector.extract_strided_slice %92 {offsets = [0, 0], sizes = [8, 256], strides = [1, 1]} : vector<8x512xf32> to vector<8x256xf32>
    %94 = vector.extract_strided_slice %92 {offsets = [0, 256], sizes = [8, 256], strides = [1, 1]} : vector<8x512xf32> to vector<8x256xf32>
    %95 = vector.extract_strided_slice %84 {offsets = [0, 512], sizes = [8, 256], strides = [1, 1]} : vector<8x1024xf32> to vector<8x256xf32>
    %96 = math.tanh %95 : vector<8x256xf32>
    %97 = vector.extract_strided_slice %84 {offsets = [0, 768], sizes = [8, 256], strides = [1, 1]} : vector<8x1024xf32> to vector<8x256xf32>
    %cst_40 = arith.constant 5.000000e-01 : f32
    %98 = vector.broadcast %cst_40 : f32 to vector<8x256xf32>
    %99 = arith.mulf %98, %97 : vector<8x256xf32>
    %100 = math.tanh %99 : vector<8x256xf32>
    %cst_41 = arith.constant 5.000000e-01 : f32
    %101 = vector.broadcast %cst_41 : f32 to vector<8x256xf32>
    %102 = arith.mulf %101, %100 : vector<8x256xf32>
    %cst_42 = arith.constant 5.000000e-01 : f32
    %103 = vector.broadcast %cst_42 : f32 to vector<8x256xf32>
    %104 = arith.addf %102, %103 : vector<8x256xf32>
    %105 = arith.mulf %94, %74 : vector<8x256xf32>
    %106 = arith.mulf %93, %96 : vector<8x256xf32>
    %107 = arith.addf %105, %106 : vector<8x256xf32>
    %108 = math.tanh %107 : vector<8x256xf32>
    %109 = arith.mulf %104, %108 : vector<8x256xf32>
    %110 = arith.index_cast %80 : i32 to index
    %c0_43 = arith.constant 0 : index
    %111 = vector.load %arg5[%110, %c0_43] : memref<64x256xf32, #tpu.memory_space<vmem>>, vector<8x256xf32>
    tpu.vector_store %arg5[%110, %c0_43], %109 {strides = array<i32>} : memref<64x256xf32, #tpu.memory_space<vmem>>, vector<8x256xf32>,
    %c3_i32 = arith.constant 3 : i32
    %c8_i32_44 = arith.constant 8 : i32
    %112 = arith.muli %c3_i32, %c8_i32_44 : i32
    %113 = tpu.assume_multiple %112, 8 : i32
    %114 = arith.index_cast %113 : i32 to index
    %c0_45 = arith.constant 0 : index
    %115 = vector.load %arg6[%114, %c0_45] : memref<64x1024xf32, #tpu.memory_space<vmem>>, vector<8x1024xf32>
    %cst_46 = arith.constant dense<0.000000e+00> : vector<8x1024xf32>
    %116 = tpu.matmul %109, %10, %cst_46 {dimension_numbers = #tpu.dot_dimension_numbers<[1], [0], [0], [1], [0, 0, 1, 1], [], []>} : vector<8x256xf32>, vector<256x1024xf32>, vector<8x1024xf32> -> vector<8x1024xf32>
    %117 = arith.addf %115, %116 : vector<8x1024xf32>
    %118 = vector.extract_strided_slice %117 {offsets = [0, 0], sizes = [8, 512], strides = [1, 1]} : vector<8x1024xf32> to vector<8x512xf32>
    %cst_47 = arith.constant 5.000000e-01 : f32
    %119 = vector.broadcast %cst_47 : f32 to vector<8x512xf32>
    %120 = arith.mulf %119, %118 : vector<8x512xf32>
    %121 = math.tanh %120 : vector<8x512xf32>
    %cst_48 = arith.constant 5.000000e-01 : f32
    %122 = vector.broadcast %cst_48 : f32 to vector<8x512xf32>
    %123 = arith.mulf %122, %121 : vector<8x512xf32>
    %cst_49 = arith.constant 5.000000e-01 : f32
    %124 = vector.broadcast %cst_49 : f32 to vector<8x512xf32>
    %125 = arith.addf %123, %124 : vector<8x512xf32>
    %126 = vector.extract_strided_slice %125 {offsets = [0, 0], sizes = [8, 256], strides = [1, 1]} : vector<8x512xf32> to vector<8x256xf32>
    %127 = vector.extract_strided_slice %125 {offsets = [0, 256], sizes = [8, 256], strides = [1, 1]} : vector<8x512xf32> to vector<8x256xf32>
    %128 = vector.extract_strided_slice %117 {offsets = [0, 512], sizes = [8, 256], strides = [1, 1]} : vector<8x1024xf32> to vector<8x256xf32>
    %129 = math.tanh %128 : vector<8x256xf32>
    %130 = vector.extract_strided_slice %117 {offsets = [0, 768], sizes = [8, 256], strides = [1, 1]} : vector<8x1024xf32> to vector<8x256xf32>
    %cst_50 = arith.constant 5.000000e-01 : f32
    %131 = vector.broadcast %cst_50 : f32 to vector<8x256xf32>
    %132 = arith.mulf %131, %130 : vector<8x256xf32>
    %133 = math.tanh %132 : vector<8x256xf32>
    %cst_51 = arith.constant 5.000000e-01 : f32
    %134 = vector.broadcast %cst_51 : f32 to vector<8x256xf32>
    %135 = arith.mulf %134, %133 : vector<8x256xf32>
    %cst_52 = arith.constant 5.000000e-01 : f32
    %136 = vector.broadcast %cst_52 : f32 to vector<8x256xf32>
    %137 = arith.addf %135, %136 : vector<8x256xf32>
    %138 = arith.mulf %127, %107 : vector<8x256xf32>
    %139 = arith.mulf %126, %129 : vector<8x256xf32>
    %140 = arith.addf %138, %139 : vector<8x256xf32>
    %141 = math.tanh %140 : vector<8x256xf32>
    %142 = arith.mulf %137, %141 : vector<8x256xf32>
    %143 = arith.index_cast %113 : i32 to index
    %c0_53 = arith.constant 0 : index
    %144 = vector.load %arg5[%143, %c0_53] : memref<64x256xf32, #tpu.memory_space<vmem>>, vector<8x256xf32>
    tpu.vector_store %arg5[%143, %c0_53], %142 {strides = array<i32>} : memref<64x256xf32, #tpu.memory_space<vmem>>, vector<8x256xf32>,
    %c4_i32 = arith.constant 4 : i32
    %c8_i32_54 = arith.constant 8 : i32
    %145 = arith.muli %c4_i32, %c8_i32_54 : i32
    %146 = tpu.assume_multiple %145, 8 : i32
    %147 = arith.index_cast %146 : i32 to index
    %c0_55 = arith.constant 0 : index
    %148 = vector.load %arg6[%147, %c0_55] : memref<64x1024xf32, #tpu.memory_space<vmem>>, vector<8x1024xf32>
    %cst_56 = arith.constant dense<0.000000e+00> : vector<8x1024xf32>
    %149 = tpu.matmul %142, %10, %cst_56 {dimension_numbers = #tpu.dot_dimension_numbers<[1], [0], [0], [1], [0, 0, 1, 1], [], []>} : vector<8x256xf32>, vector<256x1024xf32>, vector<8x1024xf32> -> vector<8x1024xf32>
    %150 = arith.addf %148, %149 : vector<8x1024xf32>
    %151 = vector.extract_strided_slice %150 {offsets = [0, 0], sizes = [8, 512], strides = [1, 1]} : vector<8x1024xf32> to vector<8x512xf32>
    %cst_57 = arith.constant 5.000000e-01 : f32
    %152 = vector.broadcast %cst_57 : f32 to vector<8x512xf32>
    %153 = arith.mulf %152, %151 : vector<8x512xf32>
    %154 = math.tanh %153 : vector<8x512xf32>
    %cst_58 = arith.constant 5.000000e-01 : f32
    %155 = vector.broadcast %cst_58 : f32 to vector<8x512xf32>
    %156 = arith.mulf %155, %154 : vector<8x512xf32>
    %cst_59 = arith.constant 5.000000e-01 : f32
    %157 = vector.broadcast %cst_59 : f32 to vector<8x512xf32>
    %158 = arith.addf %156, %157 : vector<8x512xf32>
    %159 = vector.extract_strided_slice %158 {offsets = [0, 0], sizes = [8, 256], strides = [1, 1]} : vector<8x512xf32> to vector<8x256xf32>
    %160 = vector.extract_strided_slice %158 {offsets = [0, 256], sizes = [8, 256], strides = [1, 1]} : vector<8x512xf32> to vector<8x256xf32>
    %161 = vector.extract_strided_slice %150 {offsets = [0, 512], sizes = [8, 256], strides = [1, 1]} : vector<8x1024xf32> to vector<8x256xf32>
    %162 = math.tanh %161 : vector<8x256xf32>
    %163 = vector.extract_strided_slice %150 {offsets = [0, 768], sizes = [8, 256], strides = [1, 1]} : vector<8x1024xf32> to vector<8x256xf32>
    %cst_60 = arith.constant 5.000000e-01 : f32
    %164 = vector.broadcast %cst_60 : f32 to vector<8x256xf32>
    %165 = arith.mulf %164, %163 : vector<8x256xf32>
    %166 = math.tanh %165 : vector<8x256xf32>
    %cst_61 = arith.constant 5.000000e-01 : f32
    %167 = vector.broadcast %cst_61 : f32 to vector<8x256xf32>
    %168 = arith.mulf %167, %166 : vector<8x256xf32>
    %cst_62 = arith.constant 5.000000e-01 : f32
    %169 = vector.broadcast %cst_62 : f32 to vector<8x256xf32>
    %170 = arith.addf %168, %169 : vector<8x256xf32>
    %171 = arith.mulf %160, %140 : vector<8x256xf32>
    %172 = arith.mulf %159, %162 : vector<8x256xf32>
    %173 = arith.addf %171, %172 : vector<8x256xf32>
    %174 = math.tanh %173 : vector<8x256xf32>
    %175 = arith.mulf %170, %174 : vector<8x256xf32>
    %176 = arith.index_cast %146 : i32 to index
    %c0_63 = arith.constant 0 : index
    %177 = vector.load %arg5[%176, %c0_63] : memref<64x256xf32, #tpu.memory_space<vmem>>, vector<8x256xf32>
    tpu.vector_store %arg5[%176, %c0_63], %175 {strides = array<i32>} : memref<64x256xf32, #tpu.memory_space<vmem>>, vector<8x256xf32>,
    %c5_i32 = arith.constant 5 : i32
    %c8_i32_64 = arith.constant 8 : i32
    %178 = arith.muli %c5_i32, %c8_i32_64 : i32
    %179 = tpu.assume_multiple %178, 8 : i32
    %180 = arith.index_cast %179 : i32 to index
    %c0_65 = arith.constant 0 : index
    %181 = vector.load %arg6[%180, %c0_65] : memref<64x1024xf32, #tpu.memory_space<vmem>>, vector<8x1024xf32>
    %cst_66 = arith.constant dense<0.000000e+00> : vector<8x1024xf32>
    %182 = tpu.matmul %175, %10, %cst_66 {dimension_numbers = #tpu.dot_dimension_numbers<[1], [0], [0], [1], [0, 0, 1, 1], [], []>} : vector<8x256xf32>, vector<256x1024xf32>, vector<8x1024xf32> -> vector<8x1024xf32>
    %183 = arith.addf %181, %182 : vector<8x1024xf32>
    %184 = vector.extract_strided_slice %183 {offsets = [0, 0], sizes = [8, 512], strides = [1, 1]} : vector<8x1024xf32> to vector<8x512xf32>
    %cst_67 = arith.constant 5.000000e-01 : f32
    %185 = vector.broadcast %cst_67 : f32 to vector<8x512xf32>
    %186 = arith.mulf %185, %184 : vector<8x512xf32>
    %187 = math.tanh %186 : vector<8x512xf32>
    %cst_68 = arith.constant 5.000000e-01 : f32
    %188 = vector.broadcast %cst_68 : f32 to vector<8x512xf32>
    %189 = arith.mulf %188, %187 : vector<8x512xf32>
    %cst_69 = arith.constant 5.000000e-01 : f32
    %190 = vector.broadcast %cst_69 : f32 to vector<8x512xf32>
    %191 = arith.addf %189, %190 : vector<8x512xf32>
    %192 = vector.extract_strided_slice %191 {offsets = [0, 0], sizes = [8, 256], strides = [1, 1]} : vector<8x512xf32> to vector<8x256xf32>
    %193 = vector.extract_strided_slice %191 {offsets = [0, 256], sizes = [8, 256], strides = [1, 1]} : vector<8x512xf32> to vector<8x256xf32>
    %194 = vector.extract_strided_slice %183 {offsets = [0, 512], sizes = [8, 256], strides = [1, 1]} : vector<8x1024xf32> to vector<8x256xf32>
    %195 = math.tanh %194 : vector<8x256xf32>
    %196 = vector.extract_strided_slice %183 {offsets = [0, 768], sizes = [8, 256], strides = [1, 1]} : vector<8x1024xf32> to vector<8x256xf32>
    %cst_70 = arith.constant 5.000000e-01 : f32
    %197 = vector.broadcast %cst_70 : f32 to vector<8x256xf32>
    %198 = arith.mulf %197, %196 : vector<8x256xf32>
    %199 = math.tanh %198 : vector<8x256xf32>
    %cst_71 = arith.constant 5.000000e-01 : f32
    %200 = vector.broadcast %cst_71 : f32 to vector<8x256xf32>
    %201 = arith.mulf %200, %199 : vector<8x256xf32>
    %cst_72 = arith.constant 5.000000e-01 : f32
    %202 = vector.broadcast %cst_72 : f32 to vector<8x256xf32>
    %203 = arith.addf %201, %202 : vector<8x256xf32>
    %204 = arith.mulf %193, %173 : vector<8x256xf32>
    %205 = arith.mulf %192, %195 : vector<8x256xf32>
    %206 = arith.addf %204, %205 : vector<8x256xf32>
    %207 = math.tanh %206 : vector<8x256xf32>
    %208 = arith.mulf %203, %207 : vector<8x256xf32>
    %209 = arith.index_cast %179 : i32 to index
    %c0_73 = arith.constant 0 : index
    %210 = vector.load %arg5[%209, %c0_73] : memref<64x256xf32, #tpu.memory_space<vmem>>, vector<8x256xf32>
    tpu.vector_store %arg5[%209, %c0_73], %208 {strides = array<i32>} : memref<64x256xf32, #tpu.memory_space<vmem>>, vector<8x256xf32>,
    %c6_i32 = arith.constant 6 : i32
    %c8_i32_74 = arith.constant 8 : i32
    %211 = arith.muli %c6_i32, %c8_i32_74 : i32
    %212 = tpu.assume_multiple %211, 8 : i32
    %213 = arith.index_cast %212 : i32 to index
    %c0_75 = arith.constant 0 : index
    %214 = vector.load %arg6[%213, %c0_75] : memref<64x1024xf32, #tpu.memory_space<vmem>>, vector<8x1024xf32>
    %cst_76 = arith.constant dense<0.000000e+00> : vector<8x1024xf32>
    %215 = tpu.matmul %208, %10, %cst_76 {dimension_numbers = #tpu.dot_dimension_numbers<[1], [0], [0], [1], [0, 0, 1, 1], [], []>} : vector<8x256xf32>, vector<256x1024xf32>, vector<8x1024xf32> -> vector<8x1024xf32>
    %216 = arith.addf %214, %215 : vector<8x1024xf32>
    %217 = vector.extract_strided_slice %216 {offsets = [0, 0], sizes = [8, 512], strides = [1, 1]} : vector<8x1024xf32> to vector<8x512xf32>
    %cst_77 = arith.constant 5.000000e-01 : f32
    %218 = vector.broadcast %cst_77 : f32 to vector<8x512xf32>
    %219 = arith.mulf %218, %217 : vector<8x512xf32>
    %220 = math.tanh %219 : vector<8x512xf32>
    %cst_78 = arith.constant 5.000000e-01 : f32
    %221 = vector.broadcast %cst_78 : f32 to vector<8x512xf32>
    %222 = arith.mulf %221, %220 : vector<8x512xf32>
    %cst_79 = arith.constant 5.000000e-01 : f32
    %223 = vector.broadcast %cst_79 : f32 to vector<8x512xf32>
    %224 = arith.addf %222, %223 : vector<8x512xf32>
    %225 = vector.extract_strided_slice %224 {offsets = [0, 0], sizes = [8, 256], strides = [1, 1]} : vector<8x512xf32> to vector<8x256xf32>
    %226 = vector.extract_strided_slice %224 {offsets = [0, 256], sizes = [8, 256], strides = [1, 1]} : vector<8x512xf32> to vector<8x256xf32>
    %227 = vector.extract_strided_slice %216 {offsets = [0, 512], sizes = [8, 256], strides = [1, 1]} : vector<8x1024xf32> to vector<8x256xf32>
    %228 = math.tanh %227 : vector<8x256xf32>
    %229 = vector.extract_strided_slice %216 {offsets = [0, 768], sizes = [8, 256], strides = [1, 1]} : vector<8x1024xf32> to vector<8x256xf32>
    %cst_80 = arith.constant 5.000000e-01 : f32
    %230 = vector.broadcast %cst_80 : f32 to vector<8x256xf32>
    %231 = arith.mulf %230, %229 : vector<8x256xf32>
    %232 = math.tanh %231 : vector<8x256xf32>
    %cst_81 = arith.constant 5.000000e-01 : f32
    %233 = vector.broadcast %cst_81 : f32 to vector<8x256xf32>
    %234 = arith.mulf %233, %232 : vector<8x256xf32>
    %cst_82 = arith.constant 5.000000e-01 : f32
    %235 = vector.broadcast %cst_82 : f32 to vector<8x256xf32>
    %236 = arith.addf %234, %235 : vector<8x256xf32>
    %237 = arith.mulf %226, %206 : vector<8x256xf32>
    %238 = arith.mulf %225, %228 : vector<8x256xf32>
    %239 = arith.addf %237, %238 : vector<8x256xf32>
    %240 = math.tanh %239 : vector<8x256xf32>
    %241 = arith.mulf %236, %240 : vector<8x256xf32>
    %242 = arith.index_cast %212 : i32 to index
    %c0_83 = arith.constant 0 : index
    %243 = vector.load %arg5[%242, %c0_83] : memref<64x256xf32, #tpu.memory_space<vmem>>, vector<8x256xf32>
    tpu.vector_store %arg5[%242, %c0_83], %241 {strides = array<i32>} : memref<64x256xf32, #tpu.memory_space<vmem>>, vector<8x256xf32>,
    %c7_i32 = arith.constant 7 : i32
    %c8_i32_84 = arith.constant 8 : i32
    %244 = arith.muli %c7_i32, %c8_i32_84 : i32
    %245 = tpu.assume_multiple %244, 8 : i32
    %246 = arith.index_cast %245 : i32 to index
    %c0_85 = arith.constant 0 : index
    %247 = vector.load %arg6[%246, %c0_85] : memref<64x1024xf32, #tpu.memory_space<vmem>>, vector<8x1024xf32>
    %cst_86 = arith.constant dense<0.000000e+00> : vector<8x1024xf32>
    %248 = tpu.matmul %241, %10, %cst_86 {dimension_numbers = #tpu.dot_dimension_numbers<[1], [0], [0], [1], [0, 0, 1, 1], [], []>} : vector<8x256xf32>, vector<256x1024xf32>, vector<8x1024xf32> -> vector<8x1024xf32>
    %249 = arith.addf %247, %248 : vector<8x1024xf32>
    %250 = vector.extract_strided_slice %249 {offsets = [0, 0], sizes = [8, 512], strides = [1, 1]} : vector<8x1024xf32> to vector<8x512xf32>
    %cst_87 = arith.constant 5.000000e-01 : f32
    %251 = vector.broadcast %cst_87 : f32 to vector<8x512xf32>
    %252 = arith.mulf %251, %250 : vector<8x512xf32>
    %253 = math.tanh %252 : vector<8x512xf32>
    %cst_88 = arith.constant 5.000000e-01 : f32
    %254 = vector.broadcast %cst_88 : f32 to vector<8x512xf32>
    %255 = arith.mulf %254, %253 : vector<8x512xf32>
    %cst_89 = arith.constant 5.000000e-01 : f32
    %256 = vector.broadcast %cst_89 : f32 to vector<8x512xf32>
    %257 = arith.addf %255, %256 : vector<8x512xf32>
    %258 = vector.extract_strided_slice %257 {offsets = [0, 0], sizes = [8, 256], strides = [1, 1]} : vector<8x512xf32> to vector<8x256xf32>
    %259 = vector.extract_strided_slice %257 {offsets = [0, 256], sizes = [8, 256], strides = [1, 1]} : vector<8x512xf32> to vector<8x256xf32>
    %260 = vector.extract_strided_slice %249 {offsets = [0, 512], sizes = [8, 256], strides = [1, 1]} : vector<8x1024xf32> to vector<8x256xf32>
    %261 = math.tanh %260 : vector<8x256xf32>
    %262 = vector.extract_strided_slice %249 {offsets = [0, 768], sizes = [8, 256], strides = [1, 1]} : vector<8x1024xf32> to vector<8x256xf32>
    %cst_90 = arith.constant 5.000000e-01 : f32
    %263 = vector.broadcast %cst_90 : f32 to vector<8x256xf32>
    %264 = arith.mulf %263, %262 : vector<8x256xf32>
    %265 = math.tanh %264 : vector<8x256xf32>
    %cst_91 = arith.constant 5.000000e-01 : f32
    %266 = vector.broadcast %cst_91 : f32 to vector<8x256xf32>
    %267 = arith.mulf %266, %265 : vector<8x256xf32>
    %cst_92 = arith.constant 5.000000e-01 : f32
    %268 = vector.broadcast %cst_92 : f32 to vector<8x256xf32>
    %269 = arith.addf %267, %268 : vector<8x256xf32>
    %270 = arith.mulf %259, %239 : vector<8x256xf32>
    %271 = arith.mulf %258, %261 : vector<8x256xf32>
    %272 = arith.addf %270, %271 : vector<8x256xf32>
    %273 = math.tanh %272 : vector<8x256xf32>
    %274 = arith.mulf %269, %273 : vector<8x256xf32>
    %275 = arith.index_cast %245 : i32 to index
    %c0_93 = arith.constant 0 : index
    %276 = vector.load %arg5[%275, %c0_93] : memref<64x256xf32, #tpu.memory_space<vmem>>, vector<8x256xf32>
    tpu.vector_store %arg5[%275, %c0_93], %274 {strides = array<i32>} : memref<64x256xf32, #tpu.memory_space<vmem>>, vector<8x256xf32>,
    %c8_i32_94 = arith.constant 8 : i32
    %c0_95 = arith.constant 0 : index
    %c0_96 = arith.constant 0 : index
    %277 = vector.load %arg7[%c0_95, %c0_96] : memref<8x256xf32, #tpu.memory_space<vmem>>, vector<8x256xf32>
    tpu.vector_store %arg7[%c0_95, %c0_96], %274 {strides = array<i32>} : memref<8x256xf32, #tpu.memory_space<vmem>>, vector<8x256xf32>,
    %c0_97 = arith.constant 0 : index
    %c0_98 = arith.constant 0 : index
    %278 = vector.load %arg8[%c0_97, %c0_98] : memref<8x256xf32, #tpu.memory_space<vmem>>, vector<8x256xf32>
    tpu.vector_store %arg8[%c0_97, %c0_98], %272 {strides = array<i32>} : memref<8x256xf32, #tpu.memory_space<vmem>>, vector<8x256xf32>,
    return
  }
  func.func @transform_0(%arg0: i32) -> (i32, i32) {
    %c0_i32 = arith.constant 0 : i32
    %c0_i32_0 = arith.constant 0 : i32
    return %arg0, %c0_i32 : i32, i32
  }
  func.func @transform_1(%arg0: i32) -> (i32, i32) {
    %c0_i32 = arith.constant 0 : i32
    %c0_i32_0 = arith.constant 0 : i32
    %c0_i32_1 = arith.constant 0 : i32
    return %c0_i32, %c0_i32_0 : i32, i32
  }
  func.func @transform_2(%arg0: i32) -> (i32, i32) {
    %c0_i32 = arith.constant 0 : i32
    %c0_i32_0 = arith.constant 0 : i32
    %c0_i32_1 = arith.constant 0 : i32
    return %c0_i32, %c0_i32_0 : i32, i32
  }
  func.func @transform_3(%arg0: i32) -> (i32, i32) {
    %c0_i32 = arith.constant 0 : i32
    %c0_i32_0 = arith.constant 0 : i32
    %c0_i32_1 = arith.constant 0 : i32
    return %c0_i32, %c0_i32_0 : i32, i32
  }
  func.func @transform_4(%arg0: i32) -> (i32, i32) {
    %c0_i32 = arith.constant 0 : i32
    %c0_i32_0 = arith.constant 0 : i32
    return %arg0, %c0_i32 : i32, i32
  }
}

</mosaic_0001>

<llo_original>
// kernel: tpu_custom_call.1
$region0: #{tpu_custom_call.1}
  #allocation0 [shape = 'u32[]', space=smem, size = 0x4, offset = 0x4, fixed_abs, tag = 'smem constant byte address 0x4 - core index']
  #allocation1 [shape = 'u32[72,128]{1,0:T(1,128)}', space=vmem, size = 0x9000, scoped, tag = 'internal scratch']
  #allocation2 [shape = 'f32[64,1024]{1,0:T(8,128)}', space=vmem, size = 0x40000, scoped, tag = 'scratch operand']
  #allocation3 [shape = 'f32[8,256]{1,0:T(8,128)}', space=vmem, size = 0x2000, scoped, tag = 'scratch operand']
  #allocation4 [shape = 'f32[8,256]{1,0:T(8,128)}', space=vmem, size = 0x2000, scoped, tag = 'scratch operand']
  %s0 = inlined_call_operand.vmem [shape: f32[64,8], index: 0, kind: input, shape index: {}]
  %s1 = inlined_call_operand.vmem [shape: f32[8,1024], index: 1, kind: input, shape index: {}]
  %s2 = inlined_call_operand.hbm [shape: f32[256,1024], index: 2, kind: input, shape index: {}]
  %s3 = inlined_call_operand.vmem [shape: f32[1,1024], index: 3, kind: input, shape index: {}]
  %s4 = inlined_call_operand.hbm [shape: f32[64,256], index: 4, kind: output, shape index: {}]
  %s5 = sld [smem:[#allocation0]]
  $region34: #{tpu_custom_call.1} parent=0
    _
  %s7 = ssub.s32 1, %s5
  %s8 = scalar_select 0, %s7, %s5
  $region1: #{tpu_custom_call.1} parent=0
    #allocation5 [shape = 'u8[1048576]{0}', space=vmem, size = 0x100000, scoped, tag = 'input window, operand 2, single buffered']
    #allocation6 [shape = 's32[1]{0}', space=sflag, size = 0x4, scoped, tag = 'scoped memory for tpu_custom_call.1']
    #allocation7 [shape = 's32[1]{0}', space=sflag, size = 0x4, scoped, tag = 'scoped memory for tpu_custom_call.1']
    #allocation8 [shape = 'u8[65536]{0}', space=vmem, size = 0x10000, scoped, tag = 'output window, operand 0, single buffered']
    %9 = vsyncpa [#allocation6], 0
    %10 = vsyncpa [#allocation7], 0
    // Predicated region
    $region2: #{tpu_custom_call.1} parent=1 // pred_check
      _
    $region3: #{tpu_custom_call.1} parent=1 // pred_check_branch
      %12 = sbr.rel (0) target = $region5
    $region4: #{tpu_custom_call.1} parent=1 // pred_region
      _
    $region5: #{tpu_custom_call.1} parent=1 // pred_fallthru
      _
    // Predicated region
    $region6: #{tpu_custom_call.1} parent=1 // pred_check
      _
    $region7: #{tpu_custom_call.1} parent=1 // pred_check_branch
      %14 = sbr.rel (0) target = $region9
    $region8: #{tpu_custom_call.1} parent=1 // pred_region
      _
    $region9: #{tpu_custom_call.1} parent=1 // pred_fallthru
      _
    // Predicated region
    $region10: #{tpu_custom_call.1} parent=1 // pred_check
      _
    $region11: #{tpu_custom_call.1} parent=1 // pred_check_branch
      %16 = sbr.rel (0) target = $region13
    $region12: #{tpu_custom_call.1} parent=1 // pred_region
      %18 = vsyncadd [#allocation6], 0
      %s19 = sshll.u32 %s2, 4
      %s20 = int_to_ptr.hbm [resolvable:$true] %s19
      %s21 = sshll.u32 [#allocation5], 4
      %s22 = int_to_ptr.vmem [resolvable:$true] %s21
      %27 = dma.hbm_to_vmem [thread:$0]  %s20, 32768, %s22, [#allocation6], 1024, 1024, 64
    $region13: #{tpu_custom_call.1} parent=1 // pred_fallthru
      _
    // Predicated region
    $region14: #{tpu_custom_call.1} parent=1 // pred_check
      _
    $region15: #{tpu_custom_call.1} parent=1 // pred_check_branch
      %29 = sbr.rel (0) target = $region17
    $region16: #{tpu_custom_call.1} parent=1 // pred_region
      _
    $region17: #{tpu_custom_call.1} parent=1 // pred_fallthru
      _
    // Predicated region
    $region18: #{tpu_custom_call.1} parent=1 // pred_check
      _
    $region19: #{tpu_custom_call.1} parent=1 // pred_check_branch
      %31 = sbr.rel (0) target = $region21
    $region20: #{tpu_custom_call.1} parent=1 // pred_region
      %33 = dma.done [#allocation6], 32768
    $region21: #{tpu_custom_call.1} parent=1 // pred_fallthru
      _
    %p34 = scmp.eq.s32.totalorder 0, 0
    // Predicated region
    $region22: #{tpu_custom_call.1} parent=1 // pred_check
      %p35 = pneg %p34
    $region23: #{tpu_custom_call.1} parent=1 // pred_check_branch
      %37 = sbr.rel (%p35) target = $region25
    $region24: #{tpu_custom_call.1} parent=1 // pred_region
      %38 = vst [vmem:[#allocation3] sm:$0xff] 0.0
      %39 = vst [vmem:[#allocation3 + $0x8] sm:$0xff] 0.0
      %40 = vst [vmem:[#allocation4] sm:$0xff] 0.0
      %41 = vst [vmem:[#allocation4 + $0x8] sm:$0xff] 0.0
    $region25: #{tpu_custom_call.1} parent=1 // pred_fallthru
      _
    %v42 = vld [vmem:[%s0] sm:$0xff]
    %v43 = vld [vmem:[%s0 + $0x8] sm:$0xff]
    %v44 = vld [vmem:[%s0 + $0x10] sm:$0xff]
    %v45 = vld [vmem:[%s0 + $0x18] sm:$0xff]
    %v46 = vld [vmem:[%s0 + $0x20] sm:$0xff]
    %v47 = vld [vmem:[%s0 + $0x28] sm:$0xff]
    %v48 = vld [vmem:[%s0 + $0x30] sm:$0xff]
    %v49 = vld [vmem:[%s0 + $0x38] sm:$0xff]
    %v50 = vld [vmem:[%s1] sm:$0xff]
    %v51 = vld [vmem:[%s1 + $0x8] sm:$0xff]
    %v52 = vld [vmem:[%s1 + $0x10] sm:$0xff]
    %v53 = vld [vmem:[%s1 + $0x18] sm:$0xff]
    %v54 = vld [vmem:[%s1 + $0x20] sm:$0xff]
    %v55 = vld [vmem:[%s1 + $0x28] sm:$0xff]
    %v56 = vld [vmem:[%s1 + $0x30] sm:$0xff]
    %v57 = vld [vmem:[%s1 + $0x38] sm:$0xff]
    %v58 = vld [vmem:[%s3] sm:$0xff]
    %v60 = vperm.slane %v58, 0
    %v61 = vperm.slane %v58, 1
    %v62 = vperm.slane %v58, 2
    %v63 = vperm.slane %v58, 3
    %v64 = vperm.slane %v58, 4
    %v65 = vperm.slane %v58, 5
    %v66 = vperm.slane %v58, 6
    %v67 = vperm.slane %v58, 7
    %vm76 = vcmask 64512
    %v78 = vsel %vm76, %v42, 0
    %v81 = vsel %vm76, %v43, 0
    %v84 = vsel %vm76, %v44, 0
    %v87 = vsel %vm76, %v45, 0
    %v90 = vsel %vm76, %v46, 0
    %v93 = vsel %vm76, %v47, 0
    %v96 = vsel %vm76, %v48, 0
    %v99 = vsel %vm76, %v49, 0
    %101 = vmatpush.msra.mxu0 0.0
    %102 = vmatpush.msra.mxu0 0.0
    %103 = vmatpush.msra.mxu0 0.0
    %104 = vmatpush.msra.mxu0 0.0
    %105 = vmatpush.msra.mxu0 0.0
    %106 = vmatpush.msra.mxu0 0.0
    %107 = vmatpush.msra.mxu0 0.0
    %108 = vmatpush.msra.mxu0 0.0
    %109 = vmatpush.msra.mxu0 0.0
    %110 = vmatpush.msra.mxu0 0.0
    %111 = vmatpush.msra.mxu0 0.0
    %112 = vmatpush.msra.mxu0 0.0
    %113 = vmatpush.msra.mxu0 0.0
    %114 = vmatpush.msra.mxu0 0.0
    %115 = vmatpush.msra.mxu0 0.0
    %116 = vmatpush.msra.mxu0 %v50
    %117 = vmatmul.f32.gmra.mxu0 %v78
    %v118 = vpop.f32.mrf.mxu0
    %v119 = vadd.f32 %v60, %v118
    %120 = vmatmul.f32.gmra.mxu0 %v81
    %v121 = vpop.f32.mrf.mxu0
    %v122 = vadd.f32 %v60, %v121
    %123 = vmatmul.f32.gmra.mxu0 %v84
    %v124 = vpop.f32.mrf.mxu0
    %v125 = vadd.f32 %v60, %v124
    %126 = vmatmul.f32.gmra.mxu0 %v87
    %v127 = vpop.f32.mrf.mxu0
    %v128 = vadd.f32 %v60, %v127
    %129 = vmatmul.f32.gmra.mxu0 %v90
    %v130 = vpop.f32.mrf.mxu0
    %v131 = vadd.f32 %v60, %v130
    %132 = vmatmul.f32.gmra.mxu0 %v93
    %v133 = vpop.f32.mrf.mxu0
    %v134 = vadd.f32 %v60, %v133
    %135 = vmatmul.f32.gmra.mxu0 %v96
    %v136 = vpop.f32.mrf.mxu0
    %v137 = vadd.f32 %v60, %v136
    %138 = vmatmul.f32.gmra.mxu0 %v99
    %v139 = vpop.f32.mrf.mxu0
    %v140 = vadd.f32 %v60, %v139
    %141 = vdwg.mxu0
    %142 = vmatpush.msra.mxu0 0.0
    %143 = vmatpush.msra.mxu0 0.0
    %144 = vmatpush.msra.mxu0 0.0
    %145 = vmatpush.msra.mxu0 0.0
    %146 = vmatpush.msra.mxu0 0.0
    %147 = vmatpush.msra.mxu0 0.0
    %148 = vmatpush.msra.mxu0 0.0
    %149 = vmatpush.msra.mxu0 0.0
    %150 = vmatpush.msra.mxu0 0.0
    %151 = vmatpush.msra.mxu0 0.0
    %152 = vmatpush.msra.mxu0 0.0
    %153 = vmatpush.msra.mxu0 0.0
    %154 = vmatpush.msra.mxu0 0.0
    %155 = vmatpush.msra.mxu0 0.0
    %156 = vmatpush.msra.mxu0 0.0
    %157 = vmatpush.msra.mxu0 %v51
    %158 = vmatmul.f32.gmra.mxu0 %v78
    %v159 = vpop.f32.mrf.mxu0
    %v160 = vadd.f32 %v61, %v159
    %161 = vmatmul.f32.gmra.mxu0 %v81
    %v162 = vpop.f32.mrf.mxu0
    %v163 = vadd.f32 %v61, %v162
    %164 = vmatmul.f32.gmra.mxu0 %v84
    %v165 = vpop.f32.mrf.mxu0
    %v166 = vadd.f32 %v61, %v165
    %167 = vmatmul.f32.gmra.mxu0 %v87
    %v168 = vpop.f32.mrf.mxu0
    %v169 = vadd.f32 %v61, %v168
    %170 = vmatmul.f32.gmra.mxu0 %v90
    %v171 = vpop.f32.mrf.mxu0
    %v172 = vadd.f32 %v61, %v171
    %173 = vmatmul.f32.gmra.mxu0 %v93
    %v174 = vpop.f32.mrf.mxu0
    %v175 = vadd.f32 %v61, %v174
    %176 = vmatmul.f32.gmra.mxu0 %v96
    %v177 = vpop.f32.mrf.mxu0
    %v178 = vadd.f32 %v61, %v177
    %179 = vmatmul.f32.gmra.mxu0 %v99
    %v180 = vpop.f32.mrf.mxu0
    %v181 = vadd.f32 %v61, %v180
    %182 = vdwg.mxu0
    %183 = vmatpush.msra.mxu0 0.0
    %184 = vmatpush.msra.mxu0 0.0
    %185 = vmatpush.msra.mxu0 0.0
    %186 = vmatpush.msra.mxu0 0.0
    %187 = vmatpush.msra.mxu0 0.0
    %188 = vmatpush.msra.mxu0 0.0
    %189 = vmatpush.msra.mxu0 0.0
    %190 = vmatpush.msra.mxu0 0.0
    %191 = vmatpush.msra.mxu0 0.0
    %192 = vmatpush.msra.mxu0 0.0
    %193 = vmatpush.msra.mxu0 0.0
    %194 = vmatpush.msra.mxu0 0.0
    %195 = vmatpush.msra.mxu0 0.0
    %196 = vmatpush.msra.mxu0 0.0
    %197 = vmatpush.msra.mxu0 0.0
    %198 = vmatpush.msra.mxu0 %v52
    %199 = vmatmul.f32.gmra.mxu0 %v78
    %v200 = vpop.f32.mrf.mxu0
    %v201 = vadd.f32 %v62, %v200
    %202 = vmatmul.f32.gmra.mxu0 %v81
    %v203 = vpop.f32.mrf.mxu0
    %v204 = vadd.f32 %v62, %v203
    %205 = vmatmul.f32.gmra.mxu0 %v84
    %v206 = vpop.f32.mrf.mxu0
    %v207 = vadd.f32 %v62, %v206
    %208 = vmatmul.f32.gmra.mxu0 %v87
    %v209 = vpop.f32.mrf.mxu0
    %v210 = vadd.f32 %v62, %v209
    %211 = vmatmul.f32.gmra.mxu0 %v90
    %v212 = vpop.f32.mrf.mxu0
    %v213 = vadd.f32 %v62, %v212
    %214 = vmatmul.f32.gmra.mxu0 %v93
    %v215 = vpop.f32.mrf.mxu0
    %v216 = vadd.f32 %v62, %v215
    %217 = vmatmul.f32.gmra.mxu0 %v96
    %v218 = vpop.f32.mrf.mxu0
    %v219 = vadd.f32 %v62, %v218
    %220 = vmatmul.f32.gmra.mxu0 %v99
    %v221 = vpop.f32.mrf.mxu0
    %v222 = vadd.f32 %v62, %v221
    %223 = vdwg.mxu0
    %224 = vmatpush.msra.mxu0 0.0
    %225 = vmatpush.msra.mxu0 0.0
    %226 = vmatpush.msra.mxu0 0.0
    %227 = vmatpush.msra.mxu0 0.0
    %228 = vmatpush.msra.mxu0 0.0
    %229 = vmatpush.msra.mxu0 0.0
    %230 = vmatpush.msra.mxu0 0.0
    %231 = vmatpush.msra.mxu0 0.0
    %232 = vmatpush.msra.mxu0 0.0
    %233 = vmatpush.msra.mxu0 0.0
    %234 = vmatpush.msra.mxu0 0.0
    %235 = vmatpush.msra.mxu0 0.0
    %236 = vmatpush.msra.mxu0 0.0
    %237 = vmatpush.msra.mxu0 0.0
    %238 = vmatpush.msra.mxu0 0.0
    %239 = vmatpush.msra.mxu0 %v53
    %240 = vmatmul.f32.gmra.mxu0 %v78
    %v241 = vpop.f32.mrf.mxu0
    %v242 = vadd.f32 %v63, %v241
    %243 = vmatmul.f32.gmra.mxu0 %v81
    %v244 = vpop.f32.mrf.mxu0
    %v245 = vadd.f32 %v63, %v244
    %246 = vmatmul.f32.gmra.mxu0 %v84
    %v247 = vpop.f32.mrf.mxu0
    %v248 = vadd.f32 %v63, %v247
    %249 = vmatmul.f32.gmra.mxu0 %v87
    %v250 = vpop.f32.mrf.mxu0
    %v251 = vadd.f32 %v63, %v250
    %252 = vmatmul.f32.gmra.mxu0 %v90
    %v253 = vpop.f32.mrf.mxu0
    %v254 = vadd.f32 %v63, %v253
    %255 = vmatmul.f32.gmra.mxu0 %v93
    %v256 = vpop.f32.mrf.mxu0
    %v257 = vadd.f32 %v63, %v256
    %258 = vmatmul.f32.gmra.mxu0 %v96
    %v259 = vpop.f32.mrf.mxu0
    %v260 = vadd.f32 %v63, %v259
    %261 = vmatmul.f32.gmra.mxu0 %v99
    %v262 = vpop.f32.mrf.mxu0
    %v263 = vadd.f32 %v63, %v262
    %264 = vdwg.mxu0
    %265 = vmatpush.msra.mxu0 0.0
    %266 = vmatpush.msra.mxu0 0.0
    %267 = vmatpush.msra.mxu0 0.0
    %268 = vmatpush.msra.mxu0 0.0
    %269 = vmatpush.msra.mxu0 0.0
    %270 = vmatpush.msra.mxu0 0.0
    %271 = vmatpush.msra.mxu0 0.0
    %272 = vmatpush.msra.mxu0 0.0
    %273 = vmatpush.msra.mxu0 0.0
    %274 = vmatpush.msra.mxu0 0.0
    %275 = vmatpush.msra.mxu0 0.0
    %276 = vmatpush.msra.mxu0 0.0
    %277 = vmatpush.msra.mxu0 0.0
    %278 = vmatpush.msra.mxu0 0.0
    %279 = vmatpush.msra.mxu0 0.0
    %280 = vmatpush.msra.mxu0 %v54
    %281 = vmatmul.f32.gmra.mxu0 %v78
    %v282 = vpop.f32.mrf.mxu0
    %v283 = vadd.f32 %v64, %v282
    %284 = vmatmul.f32.gmra.mxu0 %v81
    %v285 = vpop.f32.mrf.mxu0
    %v286 = vadd.f32 %v64, %v285
    %287 = vmatmul.f32.gmra.mxu0 %v84
    %v288 = vpop.f32.mrf.mxu0
    %v289 = vadd.f32 %v64, %v288
    %290 = vmatmul.f32.gmra.mxu0 %v87
    %v291 = vpop.f32.mrf.mxu0
    %v292 = vadd.f32 %v64, %v291
    %293 = vmatmul.f32.gmra.mxu0 %v90
    %v294 = vpop.f32.mrf.mxu0
    %v295 = vadd.f32 %v64, %v294
    %296 = vmatmul.f32.gmra.mxu0 %v93
    %v297 = vpop.f32.mrf.mxu0
    %v298 = vadd.f32 %v64, %v297
    %299 = vmatmul.f32.gmra.mxu0 %v96
    %v300 = vpop.f32.mrf.mxu0
    %v301 = vadd.f32 %v64, %v300
    %302 = vmatmul.f32.gmra.mxu0 %v99
    %v303 = vpop.f32.mrf.mxu0
    %v304 = vadd.f32 %v64, %v303
    %305 = vdwg.mxu0
    %306 = vmatpush.msra.mxu0 0.0
    %307 = vmatpush.msra.mxu0 0.0
    %308 = vmatpush.msra.mxu0 0.0
    %309 = vmatpush.msra.mxu0 0.0
    %310 = vmatpush.msra.mxu0 0.0
    %311 = vmatpush.msra.mxu0 0.0
    %312 = vmatpush.msra.mxu0 0.0
    %313 = vmatpush.msra.mxu0 0.0
    %314 = vmatpush.msra.mxu0 0.0
    %315 = vmatpush.msra.mxu0 0.0
    %316 = vmatpush.msra.mxu0 0.0
    %317 = vmatpush.msra.mxu0 0.0
    %318 = vmatpush.msra.mxu0 0.0
    %319 = vmatpush.msra.mxu0 0.0
    %320 = vmatpush.msra.mxu0 0.0
    %321 = vmatpush.msra.mxu0 %v55
    %322 = vmatmul.f32.gmra.mxu0 %v78
    %v323 = vpop.f32.mrf.mxu0
    %v324 = vadd.f32 %v65, %v323
    %325 = vmatmul.f32.gmra.mxu0 %v81
    %v326 = vpop.f32.mrf.mxu0
    %v327 = vadd.f32 %v65, %v326
    %328 = vmatmul.f32.gmra.mxu0 %v84
    %v329 = vpop.f32.mrf.mxu0
    %v330 = vadd.f32 %v65, %v329
    %331 = vmatmul.f32.gmra.mxu0 %v87
    %v332 = vpop.f32.mrf.mxu0
    %v333 = vadd.f32 %v65, %v332
    %334 = vmatmul.f32.gmra.mxu0 %v90
    %v335 = vpop.f32.mrf.mxu0
    %v336 = vadd.f32 %v65, %v335
    %337 = vmatmul.f32.gmra.mxu0 %v93
    %v338 = vpop.f32.mrf.mxu0
    %v339 = vadd.f32 %v65, %v338
    %340 = vmatmul.f32.gmra.mxu0 %v96
    %v341 = vpop.f32.mrf.mxu0
    %v342 = vadd.f32 %v65, %v341
    %343 = vmatmul.f32.gmra.mxu0 %v99
    %v344 = vpop.f32.mrf.mxu0
    %v345 = vadd.f32 %v65, %v344
    %346 = vdwg.mxu0
    %347 = vmatpush.msra.mxu0 0.0
    %348 = vmatpush.msra.mxu0 0.0
    %349 = vmatpush.msra.mxu0 0.0
    %350 = vmatpush.msra.mxu0 0.0
    %351 = vmatpush.msra.mxu0 0.0
    %352 = vmatpush.msra.mxu0 0.0
    %353 = vmatpush.msra.mxu0 0.0
    %354 = vmatpush.msra.mxu0 0.0
    %355 = vmatpush.msra.mxu0 0.0
    %356 = vmatpush.msra.mxu0 0.0
    %357 = vmatpush.msra.mxu0 0.0
    %358 = vmatpush.msra.mxu0 0.0
    %359 = vmatpush.msra.mxu0 0.0
    %360 = vmatpush.msra.mxu0 0.0
    %361 = vmatpush.msra.mxu0 0.0
    %362 = vmatpush.msra.mxu0 %v56
    %363 = vmatmul.f32.gmra.mxu0 %v78
    %v364 = vpop.f32.mrf.mxu0
    %v365 = vadd.f32 %v66, %v364
    %366 = vmatmul.f32.gmra.mxu0 %v81
    %v367 = vpop.f32.mrf.mxu0
    %v368 = vadd.f32 %v66, %v367
    %369 = vmatmul.f32.gmra.mxu0 %v84
    %v370 = vpop.f32.mrf.mxu0
    %v371 = vadd.f32 %v66, %v370
    %372 = vmatmul.f32.gmra.mxu0 %v87
    %v373 = vpop.f32.mrf.mxu0
    %v374 = vadd.f32 %v66, %v373
    %375 = vmatmul.f32.gmra.mxu0 %v90
    %v376 = vpop.f32.mrf.mxu0
    %v377 = vadd.f32 %v66, %v376
    %378 = vmatmul.f32.gmra.mxu0 %v93
    %v379 = vpop.f32.mrf.mxu0
    %v380 = vadd.f32 %v66, %v379
    %381 = vmatmul.f32.gmra.mxu0 %v96
    %v382 = vpop.f32.mrf.mxu0
    %v383 = vadd.f32 %v66, %v382
    %384 = vmatmul.f32.gmra.mxu0 %v99
    %v385 = vpop.f32.mrf.mxu0
    %v386 = vadd.f32 %v66, %v385
    %387 = vdwg.mxu0
    %388 = vmatpush.msra.mxu0 0.0
    %389 = vmatpush.msra.mxu0 0.0
    %390 = vmatpush.msra.mxu0 0.0
    %391 = vmatpush.msra.mxu0 0.0
    %392 = vmatpush.msra.mxu0 0.0
    %393 = vmatpush.msra.mxu0 0.0
    %394 = vmatpush.msra.mxu0 0.0
    %395 = vmatpush.msra.mxu0 0.0
    %396 = vmatpush.msra.mxu0 0.0
    %397 = vmatpush.msra.mxu0 0.0
    %398 = vmatpush.msra.mxu0 0.0
    %399 = vmatpush.msra.mxu0 0.0
    %400 = vmatpush.msra.mxu0 0.0
    %401 = vmatpush.msra.mxu0 0.0
    %402 = vmatpush.msra.mxu0 0.0
    %403 = vmatpush.msra.mxu0 %v57
    %404 = vmatmul.f32.gmra.mxu0 %v78
    %v405 = vpop.f32.mrf.mxu0
    %v406 = vadd.f32 %v67, %v405
    %407 = vmatmul.f32.gmra.mxu0 %v81
    %v408 = vpop.f32.mrf.mxu0
    %v409 = vadd.f32 %v67, %v408
    %410 = vmatmul.f32.gmra.mxu0 %v84
    %v411 = vpop.f32.mrf.mxu0
    %v412 = vadd.f32 %v67, %v411
    %413 = vmatmul.f32.gmra.mxu0 %v87
    %v414 = vpop.f32.mrf.mxu0
    %v415 = vadd.f32 %v67, %v414
    %416 = vmatmul.f32.gmra.mxu0 %v90
    %v417 = vpop.f32.mrf.mxu0
    %v418 = vadd.f32 %v67, %v417
    %419 = vmatmul.f32.gmra.mxu0 %v93
    %v420 = vpop.f32.mrf.mxu0
    %v421 = vadd.f32 %v67, %v420
    %422 = vmatmul.f32.gmra.mxu0 %v96
    %v423 = vpop.f32.mrf.mxu0
    %v424 = vadd.f32 %v67, %v423
    %425 = vmatmul.f32.gmra.mxu0 %v99
    %v426 = vpop.f32.mrf.mxu0
    %v427 = vadd.f32 %v67, %v426
    %428 = vdwg.mxu0
    %429 = vst [vmem:[#allocation2] sm:$0xff] %v119
    %430 = vst [vmem:[#allocation2 + $0x8] sm:$0xff] %v160
    %431 = vst [vmem:[#allocation2 + $0x10] sm:$0xff] %v201
    %432 = vst [vmem:[#allocation2 + $0x18] sm:$0xff] %v242
    %433 = vst [vmem:[#allocation2 + $0x20] sm:$0xff] %v283
    %434 = vst [vmem:[#allocation2 + $0x28] sm:$0xff] %v324
    %435 = vst [vmem:[#allocation2 + $0x30] sm:$0xff] %v365
    %436 = vst [vmem:[#allocation2 + $0x38] sm:$0xff] %v406
    %437 = vst [vmem:[#allocation2 + $0x40] sm:$0xff] %v122
    %438 = vst [vmem:[#allocation2 + $0x48] sm:$0xff] %v163
    %439 = vst [vmem:[#allocation2 + $0x50] sm:$0xff] %v204
    %440 = vst [vmem:[#allocation2 + $0x58] sm:$0xff] %v245
    %441 = vst [vmem:[#allocation2 + $0x60] sm:$0xff] %v286
    %442 = vst [vmem:[#allocation2 + $0x68] sm:$0xff] %v327
    %443 = vst [vmem:[#allocation2 + $0x70] sm:$0xff] %v368
    %444 = vst [vmem:[#allocation2 + $0x78] sm:$0xff] %v409
    %445 = vst [vmem:[#allocation2 + $0x80] sm:$0xff] %v125
    %446 = vst [vmem:[#allocation2 + $0x88] sm:$0xff] %v166
    %447 = vst [vmem:[#allocation2 + $0x90] sm:$0xff] %v207
    %448 = vst [vmem:[#allocation2 + $0x98] sm:$0xff] %v248
    %449 = vst [vmem:[#allocation2 + $0xa0] sm:$0xff] %v289
    %450 = vst [vmem:[#allocation2 + $0xa8] sm:$0xff] %v330
    %451 = vst [vmem:[#allocation2 + $0xb0] sm:$0xff] %v371
    %452 = vst [vmem:[#allocation2 + $0xb8] sm:$0xff] %v412
    %453 = vst [vmem:[#allocation2 + $0xc0] sm:$0xff] %v128
    %454 = vst [vmem:[#allocation2 + $0xc8] sm:$0xff] %v169
    %455 = vst [vmem:[#allocation2 + $0xd0] sm:$0xff] %v210
    %456 = vst [vmem:[#allocation2 + $0xd8] sm:$0xff] %v251
    %457 = vst [vmem:[#allocation2 + $0xe0] sm:$0xff] %v292
    %458 = vst [vmem:[#allocation2 + $0xe8] sm:$0xff] %v333
    %459 = vst [vmem:[#allocation2 + $0xf0] sm:$0xff] %v374
    %460 = vst [vmem:[#allocation2 + $0xf8] sm:$0xff] %v415
    %461 = vst [vmem:[#allocation2 + $0x100] sm:$0xff] %v131
    %462 = vst [vmem:[#allocation2 + $0x108] sm:$0xff] %v172
    %463 = vst [vmem:[#allocation2 + $0x110] sm:$0xff] %v213
    %464 = vst [vmem:[#allocation2 + $0x118] sm:$0xff] %v254
    %465 = vst [vmem:[#allocation2 + $0x120] sm:$0xff] %v295
    %466 = vst [vmem:[#allocation2 + $0x128] sm:$0xff] %v336
    %467 = vst [vmem:[#allocation2 + $0x130] sm:$0xff] %v377
    %468 = vst [vmem:[#allocation2 + $0x138] sm:$0xff] %v418
    %469 = vst [vmem:[#allocation2 + $0x140] sm:$0xff] %v134
    %470 = vst [vmem:[#allocation2 + $0x148] sm:$0xff] %v175
    %471 = vst [vmem:[#allocation2 + $0x150] sm:$0xff] %v216
    %472 = vst [vmem:[#allocation2 + $0x158] sm:$0xff] %v257
    %473 = vst [vmem:[#allocation2 + $0x160] sm:$0xff] %v298
    %474 = vst [vmem:[#allocation2 + $0x168] sm:$0xff] %v339
    %475 = vst [vmem:[#allocation2 + $0x170] sm:$0xff] %v380
    %476 = vst [vmem:[#allocation2 + $0x178] sm:$0xff] %v421
    %477 = vst [vmem:[#allocation2 + $0x180] sm:$0xff] %v137
    %478 = vst [vmem:[#allocation2 + $0x188] sm:$0xff] %v178
    %479 = vst [vmem:[#allocation2 + $0x190] sm:$0xff] %v219
    %480 = vst [vmem:[#allocation2 + $0x198] sm:$0xff] %v260
    %481 = vst [vmem:[#allocation2 + $0x1a0] sm:$0xff] %v301
    %482 = vst [vmem:[#allocation2 + $0x1a8] sm:$0xff] %v342
    %483 = vst [vmem:[#allocation2 + $0x1b0] sm:$0xff] %v383
    %484 = vst [vmem:[#allocation2 + $0x1b8] sm:$0xff] %v424
    %485 = vst [vmem:[#allocation2 + $0x1c0] sm:$0xff] %v140
    %486 = vst [vmem:[#allocation2 + $0x1c8] sm:$0xff] %v181
    %487 = vst [vmem:[#allocation2 + $0x1d0] sm:$0xff] %v222
    %488 = vst [vmem:[#allocation2 + $0x1d8] sm:$0xff] %v263
    %489 = vst [vmem:[#allocation2 + $0x1e0] sm:$0xff] %v304
    %490 = vst [vmem:[#allocation2 + $0x1e8] sm:$0xff] %v345
    %491 = vst [vmem:[#allocation2 + $0x1f0] sm:$0xff] %v386
    %492 = vst [vmem:[#allocation2 + $0x1f8] sm:$0xff] %v427
    %v493 = vld [vmem:[#allocation5] sm:$0xff]
    %v494 = vld [vmem:[#allocation5 + $0x8] sm:$0xff]
    %v495 = vld [vmem:[#allocation5 + $0x10] sm:$0xff]
    %v496 = vld [vmem:[#allocation5 + $0x18] sm:$0xff]
    %v497 = vld [vmem:[#allocation5 + $0x20] sm:$0xff]
    %v498 = vld [vmem:[#allocation5 + $0x28] sm:$0xff]
    %v499 = vld [vmem:[#allocation5 + $0x30] sm:$0xff]
    %v500 = vld [vmem:[#allocation5 + $0x38] sm:$0xff]
    %v501 = vld [vmem:[#allocation5 + $0x40] sm:$0xff]
    %v502 = vld [vmem:[#allocation5 + $0x48] sm:$0xff]
    %v503 = vld [vmem:[#allocation5 + $0x50] sm:$0xff]
    %v504 = vld [vmem:[#allocation5 + $0x58] sm:$0xff]
    %v505 = vld [vmem:[#allocation5 + $0x60] sm:$0xff]
    %v506 = vld [vmem:[#allocation5 + $0x68] sm:$0xff]
    %v507 = vld [vmem:[#allocation5 + $0x70] sm:$0xff]
    %v508 = vld [vmem:[#allocation5 + $0x78] sm:$0xff]
    %v509 = vld [vmem:[#allocation5 + $0x80] sm:$0xff]
    %v510 = vld [vmem:[#allocation5 + $0x88] sm:$0xff]
    %v511 = vld [vmem:[#allocation5 + $0x90] sm:$0xff]
    %v512 = vld [vmem:[#allocation5 + $0x98] sm:$0xff]
    %v513 = vld [vmem:[#allocation5 + $0xa0] sm:$0xff]
    %v514 = vld [vmem:[#allocation5 + $0xa8] sm:$0xff]
    %v515 = vld [vmem:[#allocation5 + $0xb0] sm:$0xff]
    %v516 = vld [vmem:[#allocation5 + $0xb8] sm:$0xff]
    %v517 = vld [vmem:[#allocation5 + $0xc0] sm:$0xff]
    %v518 = vld [vmem:[#allocation5 + $0xc8] sm:$0xff]
    %v519 = vld [vmem:[#allocation5 + $0xd0] sm:$0xff]
    %v520 = vld [vmem:[#allocation5 + $0xd8] sm:$0xff]
    %v521 = vld [vmem:[#allocation5 + $0xe0] sm:$0xff]
    %v522 = vld [vmem:[#allocation5 + $0xe8] sm:$0xff]
    %v523 = vld [vmem:[#allocation5 + $0xf0] sm:$0xff]
    %v524 = vld [vmem:[#allocation5 + $0xf8] sm:$0xff]
    %v525 = vld [vmem:[#allocation5 + $0x100] sm:$0xff]
    %v526 = vld [vmem:[#allocation5 + $0x108] sm:$0xff]
    %v527 = vld [vmem:[#allocation5 + $0x110] sm:$0xff]
    %v528 = vld [vmem:[#allocation5 + $0x118] sm:$0xff]
    %v529 = vld [vmem:[#allocation5 + $0x120] sm:$0xff]
    %v530 = vld [vmem:[#allocation5 + $0x128] sm:$0xff]
    %v531 = vld [vmem:[#allocation5 + $0x130] sm:$0xff]
    %v532 = vld [vmem:[#allocation5 + $0x138] sm:$0xff]
    %v533 = vld [vmem:[#allocation5 + $0x140] sm:$0xff]
    %v534 = vld [vmem:[#allocation5 + $0x148] sm:$0xff]
    %v535 = vld [vmem:[#allocation5 + $0x150] sm:$0xff]
    %v536 = vld [vmem:[#allocation5 + $0x158] sm:$0xff]
    %v537 = vld [vmem:[#allocation5 + $0x160] sm:$0xff]
    %v538 = vld [vmem:[#allocation5 + $0x168] sm:$0xff]
    %v539 = vld [vmem:[#allocation5 + $0x170] sm:$0xff]
    %v540 = vld [vmem:[#allocation5 + $0x178] sm:$0xff]
    %v541 = vld [vmem:[#allocation5 + $0x180] sm:$0xff]
    %v542 = vld [vmem:[#allocation5 + $0x188] sm:$0xff]
    %v543 = vld [vmem:[#allocation5 + $0x190] sm:$0xff]
    %v544 = vld [vmem:[#allocation5 + $0x198] sm:$0xff]
    %v545 = vld [vmem:[#allocation5 + $0x1a0] sm:$0xff]
    %v546 = vld [vmem:[#allocation5 + $0x1a8] sm:$0xff]
    %v547 = vld [vmem:[#allocation5 + $0x1b0] sm:$0xff]
    %v548 = vld [vmem:[#allocation5 + $0x1b8] sm:$0xff]
    %v549 = vld [vmem:[#allocation5 + $0x1c0] sm:$0xff]
    %v550 = vld [vmem:[#allocation5 + $0x1c8] sm:$0xff]
    %v551 = vld [vmem:[#allocation5 + $0x1d0] sm:$0xff]
    %v552 = vld [vmem:[#allocation5 + $0x1d8] sm:$0xff]
    %v553 = vld [vmem:[#allocation5 + $0x1e0] sm:$0xff]
    %v554 = vld [vmem:[#allocation5 + $0x1e8] sm:$0xff]
    %v555 = vld [vmem:[#allocation5 + $0x1f0] sm:$0xff]
    %v556 = vld [vmem:[#allocation5 + $0x1f8] sm:$0xff]
    %v557 = vld [vmem:[#allocation5 + $0x200] sm:$0xff]
    %v558 = vld [vmem:[#allocation5 + $0x208] sm:$0xff]
    %v559 = vld [vmem:[#allocation5 + $0x210] sm:$0xff]
    %v560 = vld [vmem:[#allocation5 + $0x218] sm:$0xff]
    %v561 = vld [vmem:[#allocation5 + $0x220] sm:$0xff]
    %v562 = vld [vmem:[#allocation5 + $0x228] sm:$0xff]
    %v563 = vld [vmem:[#allocation5 + $0x230] sm:$0xff]
    %v564 = vld [vmem:[#allocation5 + $0x238] sm:$0xff]
    %v565 = vld [vmem:[#allocation5 + $0x240] sm:$0xff]
    %v566 = vld [vmem:[#allocation5 + $0x248] sm:$0xff]
    %v567 = vld [vmem:[#allocation5 + $0x250] sm:$0xff]
    %v568 = vld [vmem:[#allocation5 + $0x258] sm:$0xff]
    %v569 = vld [vmem:[#allocation5 + $0x260] sm:$0xff]
    %v570 = vld [vmem:[#allocation5 + $0x268] sm:$0xff]
    %v571 = vld [vmem:[#allocation5 + $0x270] sm:$0xff]
    %v572 = vld [vmem:[#allocation5 + $0x278] sm:$0xff]
    %v573 = vld [vmem:[#allocation5 + $0x280] sm:$0xff]
    %v574 = vld [vmem:[#allocation5 + $0x288] sm:$0xff]
    %v575 = vld [vmem:[#allocation5 + $0x290] sm:$0xff]
    %v576 = vld [vmem:[#allocation5 + $0x298] sm:$0xff]
    %v577 = vld [vmem:[#allocation5 + $0x2a0] sm:$0xff]
    %v578 = vld [vmem:[#allocation5 + $0x2a8] sm:$0xff]
    %v579 = vld [vmem:[#allocation5 + $0x2b0] sm:$0xff]
    %v580 = vld [vmem:[#allocation5 + $0x2b8] sm:$0xff]
    %v581 = vld [vmem:[#allocation5 + $0x2c0] sm:$0xff]
    %v582 = vld [vmem:[#allocation5 + $0x2c8] sm:$0xff]
    %v583 = vld [vmem:[#allocation5 + $0x2d0] sm:$0xff]
    %v584 = vld [vmem:[#allocation5 + $0x2d8] sm:$0xff]
    %v585 = vld [vmem:[#allocation5 + $0x2e0] sm:$0xff]
    %v586 = vld [vmem:[#allocation5 + $0x2e8] sm:$0xff]
    %v587 = vld [vmem:[#allocation5 + $0x2f0] sm:$0xff]
    %v588 = vld [vmem:[#allocation5 + $0x2f8] sm:$0xff]
    %v589 = vld [vmem:[#allocation5 + $0x300] sm:$0xff]
    %v590 = vld [vmem:[#allocation5 + $0x308] sm:$0xff]
    %v591 = vld [vmem:[#allocation5 + $0x310] sm:$0xff]
    %v592 = vld [vmem:[#allocation5 + $0x318] sm:$0xff]
    %v593 = vld [vmem:[#allocation5 + $0x320] sm:$0xff]
    %v594 = vld [vmem:[#allocation5 + $0x328] sm:$0xff]
    %v595 = vld [vmem:[#allocation5 + $0x330] sm:$0xff]
    %v596 = vld [vmem:[#allocation5 + $0x338] sm:$0xff]
    %v597 = vld [vmem:[#allocation5 + $0x340] sm:$0xff]
    %v598 = vld [vmem:[#allocation5 + $0x348] sm:$0xff]
    %v599 = vld [vmem:[#allocation5 + $0x350] sm:$0xff]
    %v600 = vld [vmem:[#allocation5 + $0x358] sm:$0xff]
    %v601 = vld [vmem:[#allocation5 + $0x360] sm:$0xff]
    %v602 = vld [vmem:[#allocation5 + $0x368] sm:$0xff]
    %v603 = vld [vmem:[#allocation5 + $0x370] sm:$0xff]
    %v604 = vld [vmem:[#allocation5 + $0x378] sm:$0xff]
    %v605 = vld [vmem:[#allocation5 + $0x380] sm:$0xff]
    %v606 = vld [vmem:[#allocation5 + $0x388] sm:$0xff]
    %v607 = vld [vmem:[#allocation5 + $0x390] sm:$0xff]
    %v608 = vld [vmem:[#allocation5 + $0x398] sm:$0xff]
    %v609 = vld [vmem:[#allocation5 + $0x3a0] sm:$0xff]
    %v610 = vld [vmem:[#allocation5 + $0x3a8] sm:$0xff]
    %v611 = vld [vmem:[#allocation5 + $0x3b0] sm:$0xff]
    %v612 = vld [vmem:[#allocation5 + $0x3b8] sm:$0xff]
    %v613 = vld [vmem:[#allocation5 + $0x3c0] sm:$0xff]
    %v614 = vld [vmem:[#allocation5 + $0x3c8] sm:$0xff]
    %v615 = vld [vmem:[#allocation5 + $0x3d0] sm:$0xff]
    %v616 = vld [vmem:[#allocation5 + $0x3d8] sm:$0xff]
    %v617 = vld [vmem:[#allocation5 + $0x3e0] sm:$0xff]
    %v618 = vld [vmem:[#allocation5 + $0x3e8] sm:$0xff]
    %v619 = vld [vmem:[#allocation5 + $0x3f0] sm:$0xff]
    %v620 = vld [vmem:[#allocation5 + $0x3f8] sm:$0xff]
    %v621 = vld [vmem:[#allocation5 + $0x400] sm:$0xff]
    %v622 = vld [vmem:[#allocation5 + $0x408] sm:$0xff]
    %v623 = vld [vmem:[#allocation5 + $0x410] sm:$0xff]
    %v624 = vld [vmem:[#allocation5 + $0x418] sm:$0xff]
    %v625 = vld [vmem:[#allocation5 + $0x420] sm:$0xff]
    %v626 = vld [vmem:[#allocation5 + $0x428] sm:$0xff]
    %v627 = vld [vmem:[#allocation5 + $0x430] sm:$0xff]
    %v628 = vld [vmem:[#allocation5 + $0x438] sm:$0xff]
    %v629 = vld [vmem:[#allocation5 + $0x440] sm:$0xff]
    %v630 = vld [vmem:[#allocation5 + $0x448] sm:$0xff]
    %v631 = vld [vmem:[#allocation5 + $0x450] sm:$0xff]
    %v632 = vld [vmem:[#allocation5 + $0x458] sm:$0xff]
    %v633 = vld [vmem:[#allocation5 + $0x460] sm:$0xff]
    %v634 = vld [vmem:[#allocation5 + $0x468] sm:$0xff]
    %v635 = vld [vmem:[#allocation5 + $0x470] sm:$0xff]
    %v636 = vld [vmem:[#allocation5 + $0x478] sm:$0xff]
    %v637 = vld [vmem:[#allocation5 + $0x480] sm:$0xff]
    %v638 = vld [vmem:[#allocation5 + $0x488] sm:$0xff]
    %v639 = vld [vmem:[#allocation5 + $0x490] sm:$0xff]
    %v640 = vld [vmem:[#allocation5 + $0x498] sm:$0xff]
    %v641 = vld [vmem:[#allocation5 + $0x4a0] sm:$0xff]
    %v642 = vld [vmem:[#allocation5 + $0x4a8] sm:$0xff]
    %v643 = vld [vmem:[#allocation5 + $0x4b0] sm:$0xff]
    %v644 = vld [vmem:[#allocation5 + $0x4b8] sm:$0xff]
    %v645 = vld [vmem:[#allocation5 + $0x4c0] sm:$0xff]
    %v646 = vld [vmem:[#allocation5 + $0x4c8] sm:$0xff]
    %v647 = vld [vmem:[#allocation5 + $0x4d0] sm:$0xff]
    %v648 = vld [vmem:[#allocation5 + $0x4d8] sm:$0xff]
    %v649 = vld [vmem:[#allocation5 + $0x4e0] sm:$0xff]
    %v650 = vld [vmem:[#allocation5 + $0x4e8] sm:$0xff]
    %v651 = vld [vmem:[#allocation5 + $0x4f0] sm:$0xff]
    %v652 = vld [vmem:[#allocation5 + $0x4f8] sm:$0xff]
    %v653 = vld [vmem:[#allocation5 + $0x500] sm:$0xff]
    %v654 = vld [vmem:[#allocation5 + $0x508] sm:$0xff]
    %v655 = vld [vmem:[#allocation5 + $0x510] sm:$0xff]
    %v656 = vld [vmem:[#allocation5 + $0x518] sm:$0xff]
    %v657 = vld [vmem:[#allocation5 + $0x520] sm:$0xff]
    %v658 = vld [vmem:[#allocation5 + $0x528] sm:$0xff]
    %v659 = vld [vmem:[#allocation5 + $0x530] sm:$0xff]
    %v660 = vld [vmem:[#allocation5 + $0x538] sm:$0xff]
    %v661 = vld [vmem:[#allocation5 + $0x540] sm:$0xff]
    %v662 = vld [vmem:[#allocation5 + $0x548] sm:$0xff]
    %v663 = vld [vmem:[#allocation5 + $0x550] sm:$0xff]
    %v664 = vld [vmem:[#allocation5 + $0x558] sm:$0xff]
    %v665 = vld [vmem:[#allocation5 + $0x560] sm:$0xff]
    %v666 = vld [vmem:[#allocation5 + $0x568] sm:$0xff]
    %v667 = vld [vmem:[#allocation5 + $0x570] sm:$0xff]
    %v668 = vld [vmem:[#allocation5 + $0x578] sm:$0xff]
    %v669 = vld [vmem:[#allocation5 + $0x580] sm:$0xff]
    %v670 = vld [vmem:[#allocation5 + $0x588] sm:$0xff]
    %v671 = vld [vmem:[#allocation5 + $0x590] sm:$0xff]
    %v672 = vld [vmem:[#allocation5 + $0x598] sm:$0xff]
    %v673 = vld [vmem:[#allocation5 + $0x5a0] sm:$0xff]
    %v674 = vld [vmem:[#allocation5 + $0x5a8] sm:$0xff]
    %v675 = vld [vmem:[#allocation5 + $0x5b0] sm:$0xff]
    %v676 = vld [vmem:[#allocation5 + $0x5b8] sm:$0xff]
    %v677 = vld [vmem:[#allocation5 + $0x5c0] sm:$0xff]
    %v678 = vld [vmem:[#allocation5 + $0x5c8] sm:$0xff]
    %v679 = vld [vmem:[#allocation5 + $0x5d0] sm:$0xff]
    %v680 = vld [vmem:[#allocation5 + $0x5d8] sm:$0xff]
    %v681 = vld [vmem:[#allocation5 + $0x5e0] sm:$0xff]
    %v682 = vld [vmem:[#allocation5 + $0x5e8] sm:$0xff]
    %v683 = vld [vmem:[#allocation5 + $0x5f0] sm:$0xff]
    %v684 = vld [vmem:[#allocation5 + $0x5f8] sm:$0xff]
    %v685 = vld [vmem:[#allocation5 + $0x600] sm:$0xff]
    %v686 = vld [vmem:[#allocation5 + $0x608] sm:$0xff]
    %v687 = vld [vmem:[#allocation5 + $0x610] sm:$0xff]
    %v688 = vld [vmem:[#allocation5 + $0x618] sm:$0xff]
    %v689 = vld [vmem:[#allocation5 + $0x620] sm:$0xff]
    %v690 = vld [vmem:[#allocation5 + $0x628] sm:$0xff]
    %v691 = vld [vmem:[#allocation5 + $0x630] sm:$0xff]
    %v692 = vld [vmem:[#allocation5 + $0x638] sm:$0xff]
    %v693 = vld [vmem:[#allocation5 + $0x640] sm:$0xff]
    %v694 = vld [vmem:[#allocation5 + $0x648] sm:$0xff]
    %v695 = vld [vmem:[#allocation5 + $0x650] sm:$0xff]
    %v696 = vld [vmem:[#allocation5 + $0x658] sm:$0xff]
    %v697 = vld [vmem:[#allocation5 + $0x660] sm:$0xff]
    %v698 = vld [vmem:[#allocation5 + $0x668] sm:$0xff]
    %v699 = vld [vmem:[#allocation5 + $0x670] sm:$0xff]
    %v700 = vld [vmem:[#allocation5 + $0x678] sm:$0xff]
    %v701 = vld [vmem:[#allocation5 + $0x680] sm:$0xff]
    %v702 = vld [vmem:[#allocation5 + $0x688] sm:$0xff]
    %v703 = vld [vmem:[#allocation5 + $0x690] sm:$0xff]
    %v704 = vld [vmem:[#allocation5 + $0x698] sm:$0xff]
    %v705 = vld [vmem:[#allocation5 + $0x6a0] sm:$0xff]
    %v706 = vld [vmem:[#allocation5 + $0x6a8] sm:$0xff]
    %v707 = vld [vmem:[#allocation5 + $0x6b0] sm:$0xff]
    %v708 = vld [vmem:[#allocation5 + $0x6b8] sm:$0xff]
    %v709 = vld [vmem:[#allocation5 + $0x6c0] sm:$0xff]
    %v710 = vld [vmem:[#allocation5 + $0x6c8] sm:$0xff]
    %v711 = vld [vmem:[#allocation5 + $0x6d0] sm:$0xff]
    %v712 = vld [vmem:[#allocation5 + $0x6d8] sm:$0xff]
    %v713 = vld [vmem:[#allocation5 + $0x6e0] sm:$0xff]
    %v714 = vld [vmem:[#allocation5 + $0x6e8] sm:$0xff]
    %v715 = vld [vmem:[#allocation5 + $0x6f0] sm:$0xff]
    %v716 = vld [vmem:[#allocation5 + $0x6f8] sm:$0xff]
    %v717 = vld [vmem:[#allocation5 + $0x700] sm:$0xff]
    %v718 = vld [vmem:[#allocation5 + $0x708] sm:$0xff]
    %v719 = vld [vmem:[#allocation5 + $0x710] sm:$0xff]
    %v720 = vld [vmem:[#allocation5 + $0x718] sm:$0xff]
    %v721 = vld [vmem:[#allocation5 + $0x720] sm:$0xff]
    %v722 = vld [vmem:[#allocation5 + $0x728] sm:$0xff]
    %v723 = vld [vmem:[#allocation5 + $0x730] sm:$0xff]
    %v724 = vld [vmem:[#allocation5 + $0x738] sm:$0xff]
    %v725 = vld [vmem:[#allocation5 + $0x740] sm:$0xff]
    %v726 = vld [vmem:[#allocation5 + $0x748] sm:$0xff]
    %v727 = vld [vmem:[#allocation5 + $0x750] sm:$0xff]
    %v728 = vld [vmem:[#allocation5 + $0x758] sm:$0xff]
    %v729 = vld [vmem:[#allocation5 + $0x760] sm:$0xff]
    %v730 = vld [vmem:[#allocation5 + $0x768] sm:$0xff]
    %v731 = vld [vmem:[#allocation5 + $0x770] sm:$0xff]
    %v732 = vld [vmem:[#allocation5 + $0x778] sm:$0xff]
    %v733 = vld [vmem:[#allocation5 + $0x780] sm:$0xff]
    %v734 = vld [vmem:[#allocation5 + $0x788] sm:$0xff]
    %v735 = vld [vmem:[#allocation5 + $0x790] sm:$0xff]
    %v736 = vld [vmem:[#allocation5 + $0x798] sm:$0xff]
    %v737 = vld [vmem:[#allocation5 + $0x7a0] sm:$0xff]
    %v738 = vld [vmem:[#allocation5 + $0x7a8] sm:$0xff]
    %v739 = vld [vmem:[#allocation5 + $0x7b0] sm:$0xff]
    %v740 = vld [vmem:[#allocation5 + $0x7b8] sm:$0xff]
    %v741 = vld [vmem:[#allocation5 + $0x7c0] sm:$0xff]
    %v742 = vld [vmem:[#allocation5 + $0x7c8] sm:$0xff]
    %v743 = vld [vmem:[#allocation5 + $0x7d0] sm:$0xff]
    %v744 = vld [vmem:[#allocation5 + $0x7d8] sm:$0xff]
    %v745 = vld [vmem:[#allocation5 + $0x7e0] sm:$0xff]
    %v746 = vld [vmem:[#allocation5 + $0x7e8] sm:$0xff]
    %v747 = vld [vmem:[#allocation5 + $0x7f0] sm:$0xff]
    %v748 = vld [vmem:[#allocation5 + $0x7f8] sm:$0xff]
    %v749 = vld [vmem:[#allocation3] sm:$0xff]
    %v750 = vld [vmem:[#allocation3 + $0x8] sm:$0xff]
    %v751 = vld [vmem:[#allocation4] sm:$0xff]
    %v752 = vld [vmem:[#allocation4 + $0x8] sm:$0xff]
    %s753 = smul.u32 0, 8
    %s754 = smul.addr %s753, 8
    %s755 = scalar_lea.vmem [#allocation2], %s754
    %v756 = vld [vmem:[%s755] sm:$0xff]
    %v757 = vld [vmem:[%s755 + $0x8] sm:$0xff]
    %v758 = vld [vmem:[%s755 + $0x10] sm:$0xff]
    %v759 = vld [vmem:[%s755 + $0x18] sm:$0xff]
    %v760 = vld [vmem:[%s755 + $0x20] sm:$0xff]
    %v761 = vld [vmem:[%s755 + $0x28] sm:$0xff]
    %v762 = vld [vmem:[%s755 + $0x30] sm:$0xff]
    %v763 = vld [vmem:[%s755 + $0x38] sm:$0xff]
    %764 = vmatpush.msra.mxu0 %v613
    %765 = vmatpush.msra.mxu0 %v605
    %766 = vmatpush.msra.mxu0 %v597
    %767 = vmatpush.msra.mxu0 %v589
    %768 = vmatpush.msra.mxu0 %v581
    %769 = vmatpush.msra.mxu0 %v573
    %770 = vmatpush.msra.mxu0 %v565
    %771 = vmatpush.msra.mxu0 %v557
    %772 = vmatpush.msra.mxu0 %v549
    %773 = vmatpush.msra.mxu0 %v541
    %774 = vmatpush.msra.mxu0 %v533
    %775 = vmatpush.msra.mxu0 %v525
    %776 = vmatpush.msra.mxu0 %v517
    %777 = vmatpush.msra.mxu0 %v509
    %778 = vmatpush.msra.mxu0 %v501
    %779 = vmatpush.msra.mxu0 %v493
    %780 = vmatmul.f32.gmra.mxu0 %v749
    %v781 = vpop.f32.mrf.mxu0
    %v782 = vadd.f32 0.0, %v781
    %783 = vdwg.mxu0
    %784 = vmatpush.msra.mxu0 %v741
    %785 = vmatpush.msra.mxu0 %v733
    %786 = vmatpush.msra.mxu0 %v725
    %787 = vmatpush.msra.mxu0 %v717
    %788 = vmatpush.msra.mxu0 %v709
    %789 = vmatpush.msra.mxu0 %v701
    %790 = vmatpush.msra.mxu0 %v693
    %791 = vmatpush.msra.mxu0 %v685
    %792 = vmatpush.msra.mxu0 %v677
    %793 = vmatpush.msra.mxu0 %v669
    %794 = vmatpush.msra.mxu0 %v661
    %795 = vmatpush.msra.mxu0 %v653
    %796 = vmatpush.msra.mxu0 %v645
    %797 = vmatpush.msra.mxu0 %v637
    %798 = vmatpush.msra.mxu0 %v629
    %799 = vmatpush.msra.mxu0 %v621
    %800 = vmatmul.f32.gmra.mxu0 %v750
    %v801 = vpop.f32.mrf.mxu0
    %v802 = vadd.f32 %v782, %v801
    %803 = vdwg.mxu0
    %804 = vmatpush.msra.mxu0 %v614
    %805 = vmatpush.msra.mxu0 %v606
    %806 = vmatpush.msra.mxu0 %v598
    %807 = vmatpush.msra.mxu0 %v590
    %808 = vmatpush.msra.mxu0 %v582
    %809 = vmatpush.msra.mxu0 %v574
    %810 = vmatpush.msra.mxu0 %v566
    %811 = vmatpush.msra.mxu0 %v558
    %812 = vmatpush.msra.mxu0 %v550
    %813 = vmatpush.msra.mxu0 %v542
    %814 = vmatpush.msra.mxu0 %v534
    %815 = vmatpush.msra.mxu0 %v526
    %816 = vmatpush.msra.mxu0 %v518
    %817 = vmatpush.msra.mxu0 %v510
    %818 = vmatpush.msra.mxu0 %v502
    %819 = vmatpush.msra.mxu0 %v494
    %820 = vmatmul.f32.gmra.mxu0 %v749
    %v821 = vpop.f32.mrf.mxu0
    %v822 = vadd.f32 0.0, %v821
    %823 = vdwg.mxu0
    %824 = vmatpush.msra.mxu0 %v742
    %825 = vmatpush.msra.mxu0 %v734
    %826 = vmatpush.msra.mxu0 %v726
    %827 = vmatpush.msra.mxu0 %v718
    %828 = vmatpush.msra.mxu0 %v710
    %829 = vmatpush.msra.mxu0 %v702
    %830 = vmatpush.msra.mxu0 %v694
    %831 = vmatpush.msra.mxu0 %v686
    %832 = vmatpush.msra.mxu0 %v678
    %833 = vmatpush.msra.mxu0 %v670
    %834 = vmatpush.msra.mxu0 %v662
    %835 = vmatpush.msra.mxu0 %v654
    %836 = vmatpush.msra.mxu0 %v646
    %837 = vmatpush.msra.mxu0 %v638
    %838 = vmatpush.msra.mxu0 %v630
    %839 = vmatpush.msra.mxu0 %v622
    %840 = vmatmul.f32.gmra.mxu0 %v750
    %v841 = vpop.f32.mrf.mxu0
    %v842 = vadd.f32 %v822, %v841
    %843 = vdwg.mxu0
    %844 = vmatpush.msra.mxu0 %v615
    %845 = vmatpush.msra.mxu0 %v607
    %846 = vmatpush.msra.mxu0 %v599
    %847 = vmatpush.msra.mxu0 %v591
    %848 = vmatpush.msra.mxu0 %v583
    %849 = vmatpush.msra.mxu0 %v575
    %850 = vmatpush.msra.mxu0 %v567
    %851 = vmatpush.msra.mxu0 %v559
    %852 = vmatpush.msra.mxu0 %v551
    %853 = vmatpush.msra.mxu0 %v543
    %854 = vmatpush.msra.mxu0 %v535
    %855 = vmatpush.msra.mxu0 %v527
    %856 = vmatpush.msra.mxu0 %v519
    %857 = vmatpush.msra.mxu0 %v511
    %858 = vmatpush.msra.mxu0 %v503
    %859 = vmatpush.msra.mxu0 %v495
    %860 = vmatmul.f32.gmra.mxu0 %v749
    %v861 = vpop.f32.mrf.mxu0
    %v862 = vadd.f32 0.0, %v861
    %863 = vdwg.mxu0
    %864 = vmatpush.msra.mxu0 %v743
    %865 = vmatpush.msra.mxu0 %v735
    %866 = vmatpush.msra.mxu0 %v727
    %867 = vmatpush.msra.mxu0 %v719
    %868 = vmatpush.msra.mxu0 %v711
    %869 = vmatpush.msra.mxu0 %v703
    %870 = vmatpush.msra.mxu0 %v695
    %871 = vmatpush.msra.mxu0 %v687
    %872 = vmatpush.msra.mxu0 %v679
    %873 = vmatpush.msra.mxu0 %v671
    %874 = vmatpush.msra.mxu0 %v663
    %875 = vmatpush.msra.mxu0 %v655
    %876 = vmatpush.msra.mxu0 %v647
    %877 = vmatpush.msra.mxu0 %v639
    %878 = vmatpush.msra.mxu0 %v631
    %879 = vmatpush.msra.mxu0 %v623
    %880 = vmatmul.f32.gmra.mxu0 %v750
    %v881 = vpop.f32.mrf.mxu0
    %v882 = vadd.f32 %v862, %v881
    %883 = vdwg.mxu0
    %884 = vmatpush.msra.mxu0 %v616
    %885 = vmatpush.msra.mxu0 %v608
    %886 = vmatpush.msra.mxu0 %v600
    %887 = vmatpush.msra.mxu0 %v592
    %888 = vmatpush.msra.mxu0 %v584
    %889 = vmatpush.msra.mxu0 %v576
    %890 = vmatpush.msra.mxu0 %v568
    %891 = vmatpush.msra.mxu0 %v560
    %892 = vmatpush.msra.mxu0 %v552
    %893 = vmatpush.msra.mxu0 %v544
    %894 = vmatpush.msra.mxu0 %v536
    %895 = vmatpush.msra.mxu0 %v528
    %896 = vmatpush.msra.mxu0 %v520
    %897 = vmatpush.msra.mxu0 %v512
    %898 = vmatpush.msra.mxu0 %v504
    %899 = vmatpush.msra.mxu0 %v496
    %900 = vmatmul.f32.gmra.mxu0 %v749
    %v901 = vpop.f32.mrf.mxu0
    %v902 = vadd.f32 0.0, %v901
    %903 = vdwg.mxu0
    %904 = vmatpush.msra.mxu0 %v744
    %905 = vmatpush.msra.mxu0 %v736
    %906 = vmatpush.msra.mxu0 %v728
    %907 = vmatpush.msra.mxu0 %v720
    %908 = vmatpush.msra.mxu0 %v712
    %909 = vmatpush.msra.mxu0 %v704
    %910 = vmatpush.msra.mxu0 %v696
    %911 = vmatpush.msra.mxu0 %v688
    %912 = vmatpush.msra.mxu0 %v680
    %913 = vmatpush.msra.mxu0 %v672
    %914 = vmatpush.msra.mxu0 %v664
    %915 = vmatpush.msra.mxu0 %v656
    %916 = vmatpush.msra.mxu0 %v648
    %917 = vmatpush.msra.mxu0 %v640
    %918 = vmatpush.msra.mxu0 %v632
    %919 = vmatpush.msra.mxu0 %v624
    %920 = vmatmul.f32.gmra.mxu0 %v750
    %v921 = vpop.f32.mrf.mxu0
    %v922 = vadd.f32 %v902, %v921
    %923 = vdwg.mxu0
    %924 = vmatpush.msra.mxu0 %v617
    %925 = vmatpush.msra.mxu0 %v609
    %926 = vmatpush.msra.mxu0 %v601
    %927 = vmatpush.msra.mxu0 %v593
    %928 = vmatpush.msra.mxu0 %v585
    %929 = vmatpush.msra.mxu0 %v577
    %930 = vmatpush.msra.mxu0 %v569
    %931 = vmatpush.msra.mxu0 %v561
    %932 = vmatpush.msra.mxu0 %v553
    %933 = vmatpush.msra.mxu0 %v545
    %934 = vmatpush.msra.mxu0 %v537
    %935 = vmatpush.msra.mxu0 %v529
    %936 = vmatpush.msra.mxu0 %v521
    %937 = vmatpush.msra.mxu0 %v513
    %938 = vmatpush.msra.mxu0 %v505
    %939 = vmatpush.msra.mxu0 %v497
    %940 = vmatmul.f32.gmra.mxu0 %v749
    %v941 = vpop.f32.mrf.mxu0
    %v942 = vadd.f32 0.0, %v941
    %943 = vdwg.mxu0
    %944 = vmatpush.msra.mxu0 %v745
    %945 = vmatpush.msra.mxu0 %v737
    %946 = vmatpush.msra.mxu0 %v729
    %947 = vmatpush.msra.mxu0 %v721
    %948 = vmatpush.msra.mxu0 %v713
    %949 = vmatpush.msra.mxu0 %v705
    %950 = vmatpush.msra.mxu0 %v697
    %951 = vmatpush.msra.mxu0 %v689
    %952 = vmatpush.msra.mxu0 %v681
    %953 = vmatpush.msra.mxu0 %v673
    %954 = vmatpush.msra.mxu0 %v665
    %955 = vmatpush.msra.mxu0 %v657
    %956 = vmatpush.msra.mxu0 %v649
    %957 = vmatpush.msra.mxu0 %v641
    %958 = vmatpush.msra.mxu0 %v633
    %959 = vmatpush.msra.mxu0 %v625
    %960 = vmatmul.f32.gmra.mxu0 %v750
    %v961 = vpop.f32.mrf.mxu0
    %v962 = vadd.f32 %v942, %v961
    %963 = vdwg.mxu0
    %964 = vmatpush.msra.mxu0 %v618
    %965 = vmatpush.msra.mxu0 %v610
    %966 = vmatpush.msra.mxu0 %v602
    %967 = vmatpush.msra.mxu0 %v594
    %968 = vmatpush.msra.mxu0 %v586
    %969 = vmatpush.msra.mxu0 %v578
    %970 = vmatpush.msra.mxu0 %v570
    %971 = vmatpush.msra.mxu0 %v562
    %972 = vmatpush.msra.mxu0 %v554
    %973 = vmatpush.msra.mxu0 %v546
    %974 = vmatpush.msra.mxu0 %v538
    %975 = vmatpush.msra.mxu0 %v530
    %976 = vmatpush.msra.mxu0 %v522
    %977 = vmatpush.msra.mxu0 %v514
    %978 = vmatpush.msra.mxu0 %v506
    %979 = vmatpush.msra.mxu0 %v498
    %980 = vmatmul.f32.gmra.mxu0 %v749
    %v981 = vpop.f32.mrf.mxu0
    %v982 = vadd.f32 0.0, %v981
    %983 = vdwg.mxu0
    %984 = vmatpush.msra.mxu0 %v746
    %985 = vmatpush.msra.mxu0 %v738
    %986 = vmatpush.msra.mxu0 %v730
    %987 = vmatpush.msra.mxu0 %v722
    %988 = vmatpush.msra.mxu0 %v714
    %989 = vmatpush.msra.mxu0 %v706
    %990 = vmatpush.msra.mxu0 %v698
    %991 = vmatpush.msra.mxu0 %v690
    %992 = vmatpush.msra.mxu0 %v682
    %993 = vmatpush.msra.mxu0 %v674
    %994 = vmatpush.msra.mxu0 %v666
    %995 = vmatpush.msra.mxu0 %v658
    %996 = vmatpush.msra.mxu0 %v650
    %997 = vmatpush.msra.mxu0 %v642
    %998 = vmatpush.msra.mxu0 %v634
    %999 = vmatpush.msra.mxu0 %v626
    %1000 = vmatmul.f32.gmra.mxu0 %v750
    %v1001 = vpop.f32.mrf.mxu0
    %v1002 = vadd.f32 %v982, %v1001
    %1003 = vdwg.mxu0
    %1004 = vmatpush.msra.mxu0 %v619
    %1005 = vmatpush.msra.mxu0 %v611
    %1006 = vmatpush.msra.mxu0 %v603
    %1007 = vmatpush.msra.mxu0 %v595
    %1008 = vmatpush.msra.mxu0 %v587
    %1009 = vmatpush.msra.mxu0 %v579
    %1010 = vmatpush.msra.mxu0 %v571
    %1011 = vmatpush.msra.mxu0 %v563
    %1012 = vmatpush.msra.mxu0 %v555
    %1013 = vmatpush.msra.mxu0 %v547
    %1014 = vmatpush.msra.mxu0 %v539
    %1015 = vmatpush.msra.mxu0 %v531
    %1016 = vmatpush.msra.mxu0 %v523
    %1017 = vmatpush.msra.mxu0 %v515
    %1018 = vmatpush.msra.mxu0 %v507
    %1019 = vmatpush.msra.mxu0 %v499
    %1020 = vmatmul.f32.gmra.mxu0 %v749
    %v1021 = vpop.f32.mrf.mxu0
    %v1022 = vadd.f32 0.0, %v1021
    %1023 = vdwg.mxu0
    %1024 = vmatpush.msra.mxu0 %v747
    %1025 = vmatpush.msra.mxu0 %v739
    %1026 = vmatpush.msra.mxu0 %v731
    %1027 = vmatpush.msra.mxu0 %v723
    %1028 = vmatpush.msra.mxu0 %v715
    %1029 = vmatpush.msra.mxu0 %v707
    %1030 = vmatpush.msra.mxu0 %v699
    %1031 = vmatpush.msra.mxu0 %v691
    %1032 = vmatpush.msra.mxu0 %v683
    %1033 = vmatpush.msra.mxu0 %v675
    %1034 = vmatpush.msra.mxu0 %v667
    %1035 = vmatpush.msra.mxu0 %v659
    %1036 = vmatpush.msra.mxu0 %v651
    %1037 = vmatpush.msra.mxu0 %v643
    %1038 = vmatpush.msra.mxu0 %v635
    %1039 = vmatpush.msra.mxu0 %v627
    %1040 = vmatmul.f32.gmra.mxu0 %v750
    %v1041 = vpop.f32.mrf.mxu0
    %v1042 = vadd.f32 %v1022, %v1041
    %1043 = vdwg.mxu0
    %1044 = vmatpush.msra.mxu0 %v620
    %1045 = vmatpush.msra.mxu0 %v612
    %1046 = vmatpush.msra.mxu0 %v604
    %1047 = vmatpush.msra.mxu0 %v596
    %1048 = vmatpush.msra.mxu0 %v588
    %1049 = vmatpush.msra.mxu0 %v580
    %1050 = vmatpush.msra.mxu0 %v572
    %1051 = vmatpush.msra.mxu0 %v564
    %1052 = vmatpush.msra.mxu0 %v556
    %1053 = vmatpush.msra.mxu0 %v548
    %1054 = vmatpush.msra.mxu0 %v540
    %1055 = vmatpush.msra.mxu0 %v532
    %1056 = vmatpush.msra.mxu0 %v524
    %1057 = vmatpush.msra.mxu0 %v516
    %1058 = vmatpush.msra.mxu0 %v508
    %1059 = vmatpush.msra.mxu0 %v500
    %1060 = vmatmul.f32.gmra.mxu0 %v749
    %v1061 = vpop.f32.mrf.mxu0
    %v1062 = vadd.f32 0.0, %v1061
    %1063 = vdwg.mxu0
    %1064 = vmatpush.msra.mxu0 %v748
    %1065 = vmatpush.msra.mxu0 %v740
    %1066 = vmatpush.msra.mxu0 %v732
    %1067 = vmatpush.msra.mxu0 %v724
    %1068 = vmatpush.msra.mxu0 %v716
    %1069 = vmatpush.msra.mxu0 %v708
    %1070 = vmatpush.msra.mxu0 %v700
    %1071 = vmatpush.msra.mxu0 %v692
    %1072 = vmatpush.msra.mxu0 %v684
    %1073 = vmatpush.msra.mxu0 %v676
    %1074 = vmatpush.msra.mxu0 %v668
    %1075 = vmatpush.msra.mxu0 %v660
    %1076 = vmatpush.msra.mxu0 %v652
    %1077 = vmatpush.msra.mxu0 %v644
    %1078 = vmatpush.msra.mxu0 %v636
    %1079 = vmatpush.msra.mxu0 %v628
    %1080 = vmatmul.f32.gmra.mxu0 %v750
    %v1081 = vpop.f32.mrf.mxu0
    %v1082 = vadd.f32 %v1062, %v1081
    %1083 = vdwg.mxu0
    %v1084 = vadd.f32 %v756, %v802
    %v1085 = vadd.f32 %v757, %v842
    %v1086 = vadd.f32 %v758, %v882
    %v1087 = vadd.f32 %v759, %v922
    %v1088 = vadd.f32 %v760, %v962
    %v1089 = vadd.f32 %v761, %v1002
    %v1090 = vadd.f32 %v762, %v1042
    %v1091 = vadd.f32 %v763, %v1082
    %v1092 = vmul.f32 %v1084, 0.5
    %v1093 = vmul.f32 %v1085, 0.5
    %v1094 = vmul.f32 %v1086, 0.5
    %v1095 = vmul.f32 %v1087, 0.5
    %v1096 = vtanh.pop %v1092
    %v1097 = vtanh.pop %v1093
    %v1098 = vtanh.pop %v1094
    %v1099 = vtanh.pop %v1095
    %v1100 = vmul.f32 %v1096, 0.5
    %v1101 = vmul.f32 %v1097, 0.5
    %v1102 = vmul.f32 %v1098, 0.5
    %v1103 = vmul.f32 %v1099, 0.5
    %v1104 = vadd.f32 %v1100, 0.5
    %v1105 = vadd.f32 %v1101, 0.5
    %v1106 = vadd.f32 %v1102, 0.5
    %v1107 = vadd.f32 %v1103, 0.5
    %v1108 = vtanh.pop %v1088
    %v1109 = vtanh.pop %v1089
    %v1110 = vmul.f32 %v1090, 0.5
    %v1111 = vmul.f32 %v1091, 0.5
    %v1112 = vtanh.pop %v1110
    %v1113 = vtanh.pop %v1111
    %v1114 = vmul.f32 %v1112, 0.5
    %v1115 = vmul.f32 %v1113, 0.5
    %v1116 = vadd.f32 %v1114, 0.5
    %v1117 = vadd.f32 %v1115, 0.5
    %v1118 = vmul.f32 %v1106, %v751
    %v1119 = vmul.f32 %v1107, %v752
    %v1120 = vmul.f32 %v1104, %v1108
    %v1121 = vmul.f32 %v1105, %v1109
    %v1122 = vadd.f32 %v1118, %v1120
    %v1123 = vadd.f32 %v1119, %v1121
    %v1124 = vtanh.pop %v1122
    %v1125 = vtanh.pop %v1123
    %v1126 = vmul.f32 %v1116, %v1124
    %v1127 = vmul.f32 %v1117, %v1125
    %s1128 = smul.u32 0, 2
    %s1129 = smul.addr %s1128, 8
    %s1130 = scalar_lea.vmem [#allocation8], %s1129
    %1131 = vst [vmem:[%s1130] sm:$0xff] %v1126
    %1132 = vst [vmem:[%s1130 + $0x8] sm:$0xff] %v1127
    %s1133 = smul.u32 1, 8
    %s1134 = smul.addr %s1133, 8
    %s1135 = scalar_lea.vmem [#allocation2], %s1134
    %v1136 = vld [vmem:[%s1135] sm:$0xff]
    %v1137 = vld [vmem:[%s1135 + $0x8] sm:$0xff]
    %v1138 = vld [vmem:[%s1135 + $0x10] sm:$0xff]
    %v1139 = vld [vmem:[%s1135 + $0x18] sm:$0xff]
    %v1140 = vld [vmem:[%s1135 + $0x20] sm:$0xff]
    %v1141 = vld [vmem:[%s1135 + $0x28] sm:$0xff]
    %v1142 = vld [vmem:[%s1135 + $0x30] sm:$0xff]
    %v1143 = vld [vmem:[%s1135 + $0x38] sm:$0xff]
    %1144 = vmatpush.msra.mxu0 %v613
    %1145 = vmatpush.msra.mxu0 %v605
    %1146 = vmatpush.msra.mxu0 %v597
    %1147 = vmatpush.msra.mxu0 %v589
    %1148 = vmatpush.msra.mxu0 %v581
    %1149 = vmatpush.msra.mxu0 %v573
    %1150 = vmatpush.msra.mxu0 %v565
    %1151 = vmatpush.msra.mxu0 %v557
    %1152 = vmatpush.msra.mxu0 %v549
    %1153 = vmatpush.msra.mxu0 %v541
    %1154 = vmatpush.msra.mxu0 %v533
    %1155 = vmatpush.msra.mxu0 %v525
    %1156 = vmatpush.msra.mxu0 %v517
    %1157 = vmatpush.msra.mxu0 %v509
    %1158 = vmatpush.msra.mxu0 %v501
    %1159 = vmatpush.msra.mxu0 %v493
    %1160 = vmatmul.f32.gmra.mxu0 %v1126
    %v1161 = vpop.f32.mrf.mxu0
    %v1162 = vadd.f32 0.0, %v1161
    %1163 = vdwg.mxu0
    %1164 = vmatpush.msra.mxu0 %v741
    %1165 = vmatpush.msra.mxu0 %v733
    %1166 = vmatpush.msra.mxu0 %v725
    %1167 = vmatpush.msra.mxu0 %v717
    %1168 = vmatpush.msra.mxu0 %v709
    %1169 = vmatpush.msra.mxu0 %v701
    %1170 = vmatpush.msra.mxu0 %v693
    %1171 = vmatpush.msra.mxu0 %v685
    %1172 = vmatpush.msra.mxu0 %v677
    %1173 = vmatpush.msra.mxu0 %v669
    %1174 = vmatpush.msra.mxu0 %v661
    %1175 = vmatpush.msra.mxu0 %v653
    %1176 = vmatpush.msra.mxu0 %v645
    %1177 = vmatpush.msra.mxu0 %v637
    %1178 = vmatpush.msra.mxu0 %v629
    %1179 = vmatpush.msra.mxu0 %v621
    %1180 = vmatmul.f32.gmra.mxu0 %v1127
    %v1181 = vpop.f32.mrf.mxu0
    %v1182 = vadd.f32 %v1162, %v1181
    %1183 = vdwg.mxu0
    %1184 = vmatpush.msra.mxu0 %v614
    %1185 = vmatpush.msra.mxu0 %v606
    %1186 = vmatpush.msra.mxu0 %v598
    %1187 = vmatpush.msra.mxu0 %v590
    %1188 = vmatpush.msra.mxu0 %v582
    %1189 = vmatpush.msra.mxu0 %v574
    %1190 = vmatpush.msra.mxu0 %v566
    %1191 = vmatpush.msra.mxu0 %v558
    %1192 = vmatpush.msra.mxu0 %v550
    %1193 = vmatpush.msra.mxu0 %v542
    %1194 = vmatpush.msra.mxu0 %v534
    %1195 = vmatpush.msra.mxu0 %v526
    %1196 = vmatpush.msra.mxu0 %v518
    %1197 = vmatpush.msra.mxu0 %v510
    %1198 = vmatpush.msra.mxu0 %v502
    %1199 = vmatpush.msra.mxu0 %v494
    %1200 = vmatmul.f32.gmra.mxu0 %v1126
    %v1201 = vpop.f32.mrf.mxu0
    %v1202 = vadd.f32 0.0, %v1201
    %1203 = vdwg.mxu0
    %1204 = vmatpush.msra.mxu0 %v742
    %1205 = vmatpush.msra.mxu0 %v734
    %1206 = vmatpush.msra.mxu0 %v726
    %1207 = vmatpush.msra.mxu0 %v718
    %1208 = vmatpush.msra.mxu0 %v710
    %1209 = vmatpush.msra.mxu0 %v702
    %1210 = vmatpush.msra.mxu0 %v694
    %1211 = vmatpush.msra.mxu0 %v686
    %1212 = vmatpush.msra.mxu0 %v678
    %1213 = vmatpush.msra.mxu0 %v670
    %1214 = vmatpush.msra.mxu0 %v662
    %1215 = vmatpush.msra.mxu0 %v654
    %1216 = vmatpush.msra.mxu0 %v646
    %1217 = vmatpush.msra.mxu0 %v638
    %1218 = vmatpush.msra.mxu0 %v630
    %1219 = vmatpush.msra.mxu0 %v622
    %1220 = vmatmul.f32.gmra.mxu0 %v1127
    %v1221 = vpop.f32.mrf.mxu0
    %v1222 = vadd.f32 %v1202, %v1221
    %1223 = vdwg.mxu0
    %1224 = vmatpush.msra.mxu0 %v615
    %1225 = vmatpush.msra.mxu0 %v607
    %1226 = vmatpush.msra.mxu0 %v599
    %1227 = vmatpush.msra.mxu0 %v591
    %1228 = vmatpush.msra.mxu0 %v583
    %1229 = vmatpush.msra.mxu0 %v575
    %1230 = vmatpush.msra.mxu0 %v567
    %1231 = vmatpush.msra.mxu0 %v559
    %1232 = vmatpush.msra.mxu0 %v551
    %1233 = vmatpush.msra.mxu0 %v543
    %1234 = vmatpush.msra.mxu0 %v535
    %1235 = vmatpush.msra.mxu0 %v527
    %1236 = vmatpush.msra.mxu0 %v519
    %1237 = vmatpush.msra.mxu0 %v511
    %1238 = vmatpush.msra.mxu0 %v503
    %1239 = vmatpush.msra.mxu0 %v495
    %1240 = vmatmul.f32.gmra.mxu0 %v1126
    %v1241 = vpop.f32.mrf.mxu0
    %v1242 = vadd.f32 0.0, %v1241
    %1243 = vdwg.mxu0
    %1244 = vmatpush.msra.mxu0 %v743
    %1245 = vmatpush.msra.mxu0 %v735
    %1246 = vmatpush.msra.mxu0 %v727
    %1247 = vmatpush.msra.mxu0 %v719
    %1248 = vmatpush.msra.mxu0 %v711
    %1249 = vmatpush.msra.mxu0 %v703
    %1250 = vmatpush.msra.mxu0 %v695
    %1251 = vmatpush.msra.mxu0 %v687
    %1252 = vmatpush.msra.mxu0 %v679
    %1253 = vmatpush.msra.mxu0 %v671
    %1254 = vmatpush.msra.mxu0 %v663
    %1255 = vmatpush.msra.mxu0 %v655
    %1256 = vmatpush.msra.mxu0 %v647
    %1257 = vmatpush.msra.mxu0 %v639
    %1258 = vmatpush.msra.mxu0 %v631
    %1259 = vmatpush.msra.mxu0 %v623
    %1260 = vmatmul.f32.gmra.mxu0 %v1127
    %v1261 = vpop.f32.mrf.mxu0
    %v1262 = vadd.f32 %v1242, %v1261
    %1263 = vdwg.mxu0
    %1264 = vmatpush.msra.mxu0 %v616
    %1265 = vmatpush.msra.mxu0 %v608
    %1266 = vmatpush.msra.mxu0 %v600
    %1267 = vmatpush.msra.mxu0 %v592
    %1268 = vmatpush.msra.mxu0 %v584
    %1269 = vmatpush.msra.mxu0 %v576
    %1270 = vmatpush.msra.mxu0 %v568
    %1271 = vmatpush.msra.mxu0 %v560
    %1272 = vmatpush.msra.mxu0 %v552
    %1273 = vmatpush.msra.mxu0 %v544
    %1274 = vmatpush.msra.mxu0 %v536
    %1275 = vmatpush.msra.mxu0 %v528
    %1276 = vmatpush.msra.mxu0 %v520
    %1277 = vmatpush.msra.mxu0 %v512
    %1278 = vmatpush.msra.mxu0 %v504
    %1279 = vmatpush.msra.mxu0 %v496
    %1280 = vmatmul.f32.gmra.mxu0 %v1126
    %v1281 = vpop.f32.mrf.mxu0
    %v1282 = vadd.f32 0.0, %v1281
    %1283 = vdwg.mxu0
    %1284 = vmatpush.msra.mxu0 %v744
    %1285 = vmatpush.msra.mxu0 %v736
    %1286 = vmatpush.msra.mxu0 %v728
    %1287 = vmatpush.msra.mxu0 %v720
    %1288 = vmatpush.msra.mxu0 %v712
    %1289 = vmatpush.msra.mxu0 %v704
    %1290 = vmatpush.msra.mxu0 %v696
    %1291 = vmatpush.msra.mxu0 %v688
    %1292 = vmatpush.msra.mxu0 %v680
    %1293 = vmatpush.msra.mxu0 %v672
    %1294 = vmatpush.msra.mxu0 %v664
    %1295 = vmatpush.msra.mxu0 %v656
    %1296 = vmatpush.msra.mxu0 %v648
    %1297 = vmatpush.msra.mxu0 %v640
    %1298 = vmatpush.msra.mxu0 %v632
    %1299 = vmatpush.msra.mxu0 %v624
    %1300 = vmatmul.f32.gmra.mxu0 %v1127
    %v1301 = vpop.f32.mrf.mxu0
    %v1302 = vadd.f32 %v1282, %v1301
    %1303 = vdwg.mxu0
    %1304 = vmatpush.msra.mxu0 %v617
    %1305 = vmatpush.msra.mxu0 %v609
    %1306 = vmatpush.msra.mxu0 %v601
    %1307 = vmatpush.msra.mxu0 %v593
    %1308 = vmatpush.msra.mxu0 %v585
    %1309 = vmatpush.msra.mxu0 %v577
    %1310 = vmatpush.msra.mxu0 %v569
    %1311 = vmatpush.msra.mxu0 %v561
    %1312 = vmatpush.msra.mxu0 %v553
    %1313 = vmatpush.msra.mxu0 %v545
    %1314 = vmatpush.msra.mxu0 %v537
    %1315 = vmatpush.msra.mxu0 %v529
    %1316 = vmatpush.msra.mxu0 %v521
    %1317 = vmatpush.msra.mxu0 %v513
    %1318 = vmatpush.msra.mxu0 %v505
    %1319 = vmatpush.msra.mxu0 %v497
    %1320 = vmatmul.f32.gmra.mxu0 %v1126
    %v1321 = vpop.f32.mrf.mxu0
    %v1322 = vadd.f32 0.0, %v1321
    %1323 = vdwg.mxu0
    %1324 = vmatpush.msra.mxu0 %v745
    %1325 = vmatpush.msra.mxu0 %v737
    %1326 = vmatpush.msra.mxu0 %v729
    %1327 = vmatpush.msra.mxu0 %v721
    %1328 = vmatpush.msra.mxu0 %v713
    %1329 = vmatpush.msra.mxu0 %v705
    %1330 = vmatpush.msra.mxu0 %v697
    %1331 = vmatpush.msra.mxu0 %v689
    %1332 = vmatpush.msra.mxu0 %v681
    %1333 = vmatpush.msra.mxu0 %v673
    %1334 = vmatpush.msra.mxu0 %v665
    %1335 = vmatpush.msra.mxu0 %v657
    %1336 = vmatpush.msra.mxu0 %v649
    %1337 = vmatpush.msra.mxu0 %v641
    %1338 = vmatpush.msra.mxu0 %v633
    %1339 = vmatpush.msra.mxu0 %v625
    %1340 = vmatmul.f32.gmra.mxu0 %v1127
    %v1341 = vpop.f32.mrf.mxu0
    %v1342 = vadd.f32 %v1322, %v1341
    %1343 = vdwg.mxu0
    %1344 = vmatpush.msra.mxu0 %v618
    %1345 = vmatpush.msra.mxu0 %v610
    %1346 = vmatpush.msra.mxu0 %v602
    %1347 = vmatpush.msra.mxu0 %v594
    %1348 = vmatpush.msra.mxu0 %v586
    %1349 = vmatpush.msra.mxu0 %v578
    %1350 = vmatpush.msra.mxu0 %v570
    %1351 = vmatpush.msra.mxu0 %v562
    %1352 = vmatpush.msra.mxu0 %v554
    %1353 = vmatpush.msra.mxu0 %v546
    %1354 = vmatpush.msra.mxu0 %v538
    %1355 = vmatpush.msra.mxu0 %v530
    %1356 = vmatpush.msra.mxu0 %v522
    %1357 = vmatpush.msra.mxu0 %v514
    %1358 = vmatpush.msra.mxu0 %v506
    %1359 = vmatpush.msra.mxu0 %v498
    %1360 = vmatmul.f32.gmra.mxu0 %v1126
    %v1361 = vpop.f32.mrf.mxu0
    %v1362 = vadd.f32 0.0, %v1361
    %1363 = vdwg.mxu0
    %1364 = vmatpush.msra.mxu0 %v746
    %1365 = vmatpush.msra.mxu0 %v738
    %1366 = vmatpush.msra.mxu0 %v730
    %1367 = vmatpush.msra.mxu0 %v722
    %1368 = vmatpush.msra.mxu0 %v714
    %1369 = vmatpush.msra.mxu0 %v706
    %1370 = vmatpush.msra.mxu0 %v698
    %1371 = vmatpush.msra.mxu0 %v690
    %1372 = vmatpush.msra.mxu0 %v682
    %1373 = vmatpush.msra.mxu0 %v674
    %1374 = vmatpush.msra.mxu0 %v666
    %1375 = vmatpush.msra.mxu0 %v658
    %1376 = vmatpush.msra.mxu0 %v650
    %1377 = vmatpush.msra.mxu0 %v642
    %1378 = vmatpush.msra.mxu0 %v634
    %1379 = vmatpush.msra.mxu0 %v626
    %1380 = vmatmul.f32.gmra.mxu0 %v1127
    %v1381 = vpop.f32.mrf.mxu0
    %v1382 = vadd.f32 %v1362, %v1381
    %1383 = vdwg.mxu0
    %1384 = vmatpush.msra.mxu0 %v619
    %1385 = vmatpush.msra.mxu0 %v611
    %1386 = vmatpush.msra.mxu0 %v603
    %1387 = vmatpush.msra.mxu0 %v595
    %1388 = vmatpush.msra.mxu0 %v587
    %1389 = vmatpush.msra.mxu0 %v579
    %1390 = vmatpush.msra.mxu0 %v571
    %1391 = vmatpush.msra.mxu0 %v563
    %1392 = vmatpush.msra.mxu0 %v555
    %1393 = vmatpush.msra.mxu0 %v547
    %1394 = vmatpush.msra.mxu0 %v539
    %1395 = vmatpush.msra.mxu0 %v531
    %1396 = vmatpush.msra.mxu0 %v523
    %1397 = vmatpush.msra.mxu0 %v515
    %1398 = vmatpush.msra.mxu0 %v507
    %1399 = vmatpush.msra.mxu0 %v499
    %1400 = vmatmul.f32.gmra.mxu0 %v1126
    %v1401 = vpop.f32.mrf.mxu0
    %v1402 = vadd.f32 0.0, %v1401
    %1403 = vdwg.mxu0
    %1404 = vmatpush.msra.mxu0 %v747
    %1405 = vmatpush.msra.mxu0 %v739
    %1406 = vmatpush.msra.mxu0 %v731
    %1407 = vmatpush.msra.mxu0 %v723
    %1408 = vmatpush.msra.mxu0 %v715
    %1409 = vmatpush.msra.mxu0 %v707
    %1410 = vmatpush.msra.mxu0 %v699
    %1411 = vmatpush.msra.mxu0 %v691
    %1412 = vmatpush.msra.mxu0 %v683
    %1413 = vmatpush.msra.mxu0 %v675
    %1414 = vmatpush.msra.mxu0 %v667
    %1415 = vmatpush.msra.mxu0 %v659
    %1416 = vmatpush.msra.mxu0 %v651
    %1417 = vmatpush.msra.mxu0 %v643
    %1418 = vmatpush.msra.mxu0 %v635
    %1419 = vmatpush.msra.mxu0 %v627
    %1420 = vmatmul.f32.gmra.mxu0 %v1127
    %v1421 = vpop.f32.mrf.mxu0
    %v1422 = vadd.f32 %v1402, %v1421
    %1423 = vdwg.mxu0
    %1424 = vmatpush.msra.mxu0 %v620
    %1425 = vmatpush.msra.mxu0 %v612
    %1426 = vmatpush.msra.mxu0 %v604
    %1427 = vmatpush.msra.mxu0 %v596
    %1428 = vmatpush.msra.mxu0 %v588
    %1429 = vmatpush.msra.mxu0 %v580
    %1430 = vmatpush.msra.mxu0 %v572
    %1431 = vmatpush.msra.mxu0 %v564
    %1432 = vmatpush.msra.mxu0 %v556
    %1433 = vmatpush.msra.mxu0 %v548
    %1434 = vmatpush.msra.mxu0 %v540
    %1435 = vmatpush.msra.mxu0 %v532
    %1436 = vmatpush.msra.mxu0 %v524
    %1437 = vmatpush.msra.mxu0 %v516
    %1438 = vmatpush.msra.mxu0 %v508
    %1439 = vmatpush.msra.mxu0 %v500
    %1440 = vmatmul.f32.gmra.mxu0 %v1126
    %v1441 = vpop.f32.mrf.mxu0
    %v1442 = vadd.f32 0.0, %v1441
    %1443 = vdwg.mxu0
    %1444 = vmatpush.msra.mxu0 %v748
    %1445 = vmatpush.msra.mxu0 %v740
    %1446 = vmatpush.msra.mxu0 %v732
    %1447 = vmatpush.msra.mxu0 %v724
    %1448 = vmatpush.msra.mxu0 %v716
    %1449 = vmatpush.msra.mxu0 %v708
    %1450 = vmatpush.msra.mxu0 %v700
    %1451 = vmatpush.msra.mxu0 %v692
    %1452 = vmatpush.msra.mxu0 %v684
    %1453 = vmatpush.msra.mxu0 %v676
    %1454 = vmatpush.msra.mxu0 %v668
    %1455 = vmatpush.msra.mxu0 %v660
    %1456 = vmatpush.msra.mxu0 %v652
    %1457 = vmatpush.msra.mxu0 %v644
    %1458 = vmatpush.msra.mxu0 %v636
    %1459 = vmatpush.msra.mxu0 %v628
    %1460 = vmatmul.f32.gmra.mxu0 %v1127
    %v1461 = vpop.f32.mrf.mxu0
    %v1462 = vadd.f32 %v1442, %v1461
    %1463 = vdwg.mxu0
    %v1464 = vadd.f32 %v1136, %v1182
    %v1465 = vadd.f32 %v1137, %v1222
    %v1466 = vadd.f32 %v1138, %v1262
    %v1467 = vadd.f32 %v1139, %v1302
    %v1468 = vadd.f32 %v1140, %v1342
    %v1469 = vadd.f32 %v1141, %v1382
    %v1470 = vadd.f32 %v1142, %v1422
    %v1471 = vadd.f32 %v1143, %v1462
    %v1472 = vmul.f32 %v1464, 0.5
    %v1473 = vmul.f32 %v1465, 0.5
    %v1474 = vmul.f32 %v1466, 0.5
    %v1475 = vmul.f32 %v1467, 0.5
    %v1476 = vtanh.pop %v1472
    %v1477 = vtanh.pop %v1473
    %v1478 = vtanh.pop %v1474
    %v1479 = vtanh.pop %v1475
    %v1480 = vmul.f32 %v1476, 0.5
    %v1481 = vmul.f32 %v1477, 0.5
    %v1482 = vmul.f32 %v1478, 0.5
    %v1483 = vmul.f32 %v1479, 0.5
    %v1484 = vadd.f32 %v1480, 0.5
    %v1485 = vadd.f32 %v1481, 0.5
    %v1486 = vadd.f32 %v1482, 0.5
    %v1487 = vadd.f32 %v1483, 0.5
    %v1488 = vtanh.pop %v1468
    %v1489 = vtanh.pop %v1469
    %v1490 = vmul.f32 %v1470, 0.5
    %v1491 = vmul.f32 %v1471, 0.5
    %v1492 = vtanh.pop %v1490
    %v1493 = vtanh.pop %v1491
    %v1494 = vmul.f32 %v1492, 0.5
    %v1495 = vmul.f32 %v1493, 0.5
    %v1496 = vadd.f32 %v1494, 0.5
    %v1497 = vadd.f32 %v1495, 0.5
    %v1498 = vmul.f32 %v1486, %v1122
    %v1499 = vmul.f32 %v1487, %v1123
    %v1500 = vmul.f32 %v1484, %v1488
    %v1501 = vmul.f32 %v1485, %v1489
    %v1502 = vadd.f32 %v1498, %v1500
    %v1503 = vadd.f32 %v1499, %v1501
    %v1504 = vtanh.pop %v1502
    %v1505 = vtanh.pop %v1503
    %v1506 = vmul.f32 %v1496, %v1504
    %v1507 = vmul.f32 %v1497, %v1505
    %s1508 = smul.u32 1, 2
    %s1509 = smul.addr %s1508, 8
    %s1510 = scalar_lea.vmem [#allocation8], %s1509
    %1511 = vst [vmem:[%s1510] sm:$0xff] %v1506
    %1512 = vst [vmem:[%s1510 + $0x8] sm:$0xff] %v1507
    %s1513 = smul.u32 2, 8
    %s1514 = smul.addr %s1513, 8
    %s1515 = scalar_lea.vmem [#allocation2], %s1514
    %v1516 = vld [vmem:[%s1515] sm:$0xff]
    %v1517 = vld [vmem:[%s1515 + $0x8] sm:$0xff]
    %v1518 = vld [vmem:[%s1515 + $0x10] sm:$0xff]
    %v1519 = vld [vmem:[%s1515 + $0x18] sm:$0xff]
    %v1520 = vld [vmem:[%s1515 + $0x20] sm:$0xff]
    %v1521 = vld [vmem:[%s1515 + $0x28] sm:$0xff]
    %v1522 = vld [vmem:[%s1515 + $0x30] sm:$0xff]
    %v1523 = vld [vmem:[%s1515 + $0x38] sm:$0xff]
    %1524 = vmatpush.msra.mxu0 %v613
    %1525 = vmatpush.msra.mxu0 %v605
    %1526 = vmatpush.msra.mxu0 %v597
    %1527 = vmatpush.msra.mxu0 %v589
    %1528 = vmatpush.msra.mxu0 %v581
    %1529 = vmatpush.msra.mxu0 %v573
    %1530 = vmatpush.msra.mxu0 %v565
    %1531 = vmatpush.msra.mxu0 %v557
    %1532 = vmatpush.msra.mxu0 %v549
    %1533 = vmatpush.msra.mxu0 %v541
    %1534 = vmatpush.msra.mxu0 %v533
    %1535 = vmatpush.msra.mxu0 %v525
    %1536 = vmatpush.msra.mxu0 %v517
    %1537 = vmatpush.msra.mxu0 %v509
    %1538 = vmatpush.msra.mxu0 %v501
    %1539 = vmatpush.msra.mxu0 %v493
    %1540 = vmatmul.f32.gmra.mxu0 %v1506
    %v1541 = vpop.f32.mrf.mxu0
    %v1542 = vadd.f32 0.0, %v1541
    %1543 = vdwg.mxu0
    %1544 = vmatpush.msra.mxu0 %v741
    %1545 = vmatpush.msra.mxu0 %v733
    %1546 = vmatpush.msra.mxu0 %v725
    %1547 = vmatpush.msra.mxu0 %v717
    %1548 = vmatpush.msra.mxu0 %v709
    %1549 = vmatpush.msra.mxu0 %v701
    %1550 = vmatpush.msra.mxu0 %v693
    %1551 = vmatpush.msra.mxu0 %v685
    %1552 = vmatpush.msra.mxu0 %v677
    %1553 = vmatpush.msra.mxu0 %v669
    %1554 = vmatpush.msra.mxu0 %v661
    %1555 = vmatpush.msra.mxu0 %v653
    %1556 = vmatpush.msra.mxu0 %v645
    %1557 = vmatpush.msra.mxu0 %v637
    %1558 = vmatpush.msra.mxu0 %v629
    %1559 = vmatpush.msra.mxu0 %v621
    %1560 = vmatmul.f32.gmra.mxu0 %v1507
    %v1561 = vpop.f32.mrf.mxu0
    %v1562 = vadd.f32 %v1542, %v1561
    %1563 = vdwg.mxu0
    %1564 = vmatpush.msra.mxu0 %v614
    %1565 = vmatpush.msra.mxu0 %v606
    %1566 = vmatpush.msra.mxu0 %v598
    %1567 = vmatpush.msra.mxu0 %v590
    %1568 = vmatpush.msra.mxu0 %v582
    %1569 = vmatpush.msra.mxu0 %v574
    %1570 = vmatpush.msra.mxu0 %v566
    %1571 = vmatpush.msra.mxu0 %v558
    %1572 = vmatpush.msra.mxu0 %v550
    %1573 = vmatpush.msra.mxu0 %v542
    %1574 = vmatpush.msra.mxu0 %v534
    %1575 = vmatpush.msra.mxu0 %v526
    %1576 = vmatpush.msra.mxu0 %v518
    %1577 = vmatpush.msra.mxu0 %v510
    %1578 = vmatpush.msra.mxu0 %v502
    %1579 = vmatpush.msra.mxu0 %v494
    %1580 = vmatmul.f32.gmra.mxu0 %v1506
    %v1581 = vpop.f32.mrf.mxu0
    %v1582 = vadd.f32 0.0, %v1581
    %1583 = vdwg.mxu0
    %1584 = vmatpush.msra.mxu0 %v742
    %1585 = vmatpush.msra.mxu0 %v734
    %1586 = vmatpush.msra.mxu0 %v726
    %1587 = vmatpush.msra.mxu0 %v718
    %1588 = vmatpush.msra.mxu0 %v710
    %1589 = vmatpush.msra.mxu0 %v702
    %1590 = vmatpush.msra.mxu0 %v694
    %1591 = vmatpush.msra.mxu0 %v686
    %1592 = vmatpush.msra.mxu0 %v678
    %1593 = vmatpush.msra.mxu0 %v670
    %1594 = vmatpush.msra.mxu0 %v662
    %1595 = vmatpush.msra.mxu0 %v654
    %1596 = vmatpush.msra.mxu0 %v646
    %1597 = vmatpush.msra.mxu0 %v638
    %1598 = vmatpush.msra.mxu0 %v630
    %1599 = vmatpush.msra.mxu0 %v622
    %1600 = vmatmul.f32.gmra.mxu0 %v1507
    %v1601 = vpop.f32.mrf.mxu0
    %v1602 = vadd.f32 %v1582, %v1601
    %1603 = vdwg.mxu0
    %1604 = vmatpush.msra.mxu0 %v615
    %1605 = vmatpush.msra.mxu0 %v607
    %1606 = vmatpush.msra.mxu0 %v599
    %1607 = vmatpush.msra.mxu0 %v591
    %1608 = vmatpush.msra.mxu0 %v583
    %1609 = vmatpush.msra.mxu0 %v575
    %1610 = vmatpush.msra.mxu0 %v567
    %1611 = vmatpush.msra.mxu0 %v559
    %1612 = vmatpush.msra.mxu0 %v551
    %1613 = vmatpush.msra.mxu0 %v543
    %1614 = vmatpush.msra.mxu0 %v535
    %1615 = vmatpush.msra.mxu0 %v527
    %1616 = vmatpush.msra.mxu0 %v519
    %1617 = vmatpush.msra.mxu0 %v511
    %1618 = vmatpush.msra.mxu0 %v503
    %1619 = vmatpush.msra.mxu0 %v495
    %1620 = vmatmul.f32.gmra.mxu0 %v1506
    %v1621 = vpop.f32.mrf.mxu0
    %v1622 = vadd.f32 0.0, %v1621
    %1623 = vdwg.mxu0
    %1624 = vmatpush.msra.mxu0 %v743
    %1625 = vmatpush.msra.mxu0 %v735
    %1626 = vmatpush.msra.mxu0 %v727
    %1627 = vmatpush.msra.mxu0 %v719
    %1628 = vmatpush.msra.mxu0 %v711
    %1629 = vmatpush.msra.mxu0 %v703
    %1630 = vmatpush.msra.mxu0 %v695
    %1631 = vmatpush.msra.mxu0 %v687
    %1632 = vmatpush.msra.mxu0 %v679
    %1633 = vmatpush.msra.mxu0 %v671
    %1634 = vmatpush.msra.mxu0 %v663
    %1635 = vmatpush.msra.mxu0 %v655
    %1636 = vmatpush.msra.mxu0 %v647
    %1637 = vmatpush.msra.mxu0 %v639
    %1638 = vmatpush.msra.mxu0 %v631
    %1639 = vmatpush.msra.mxu0 %v623
    %1640 = vmatmul.f32.gmra.mxu0 %v1507
    %v1641 = vpop.f32.mrf.mxu0
    %v1642 = vadd.f32 %v1622, %v1641
    %1643 = vdwg.mxu0
    %1644 = vmatpush.msra.mxu0 %v616
    %1645 = vmatpush.msra.mxu0 %v608
    %1646 = vmatpush.msra.mxu0 %v600
    %1647 = vmatpush.msra.mxu0 %v592
    %1648 = vmatpush.msra.mxu0 %v584
    %1649 = vmatpush.msra.mxu0 %v576
    %1650 = vmatpush.msra.mxu0 %v568
    %1651 = vmatpush.msra.mxu0 %v560
    %1652 = vmatpush.msra.mxu0 %v552
    %1653 = vmatpush.msra.mxu0 %v544
    %1654 = vmatpush.msra.mxu0 %v536
    %1655 = vmatpush.msra.mxu0 %v528
    %1656 = vmatpush.msra.mxu0 %v520
    %1657 = vmatpush.msra.mxu0 %v512
    %1658 = vmatpush.msra.mxu0 %v504
    %1659 = vmatpush.msra.mxu0 %v496
    %1660 = vmatmul.f32.gmra.mxu0 %v1506
    %v1661 = vpop.f32.mrf.mxu0
    %v1662 = vadd.f32 0.0, %v1661
    %1663 = vdwg.mxu0
    %1664 = vmatpush.msra.mxu0 %v744
    %1665 = vmatpush.msra.mxu0 %v736
    %1666 = vmatpush.msra.mxu0 %v728
    %1667 = vmatpush.msra.mxu0 %v720
    %1668 = vmatpush.msra.mxu0 %v712
    %1669 = vmatpush.msra.mxu0 %v704
    %1670 = vmatpush.msra.mxu0 %v696
    %1671 = vmatpush.msra.mxu0 %v688
    %1672 = vmatpush.msra.mxu0 %v680
    %1673 = vmatpush.msra.mxu0 %v672
    %1674 = vmatpush.msra.mxu0 %v664
    %1675 = vmatpush.msra.mxu0 %v656
    %1676 = vmatpush.msra.mxu0 %v648
    %1677 = vmatpush.msra.mxu0 %v640
    %1678 = vmatpush.msra.mxu0 %v632
    %1679 = vmatpush.msra.mxu0 %v624
    %1680 = vmatmul.f32.gmra.mxu0 %v1507
    %v1681 = vpop.f32.mrf.mxu0
    %v1682 = vadd.f32 %v1662, %v1681
    %1683 = vdwg.mxu0
    %1684 = vmatpush.msra.mxu0 %v617
    %1685 = vmatpush.msra.mxu0 %v609
    %1686 = vmatpush.msra.mxu0 %v601
    %1687 = vmatpush.msra.mxu0 %v593
    %1688 = vmatpush.msra.mxu0 %v585
    %1689 = vmatpush.msra.mxu0 %v577
    %1690 = vmatpush.msra.mxu0 %v569
    %1691 = vmatpush.msra.mxu0 %v561
    %1692 = vmatpush.msra.mxu0 %v553
    %1693 = vmatpush.msra.mxu0 %v545
    %1694 = vmatpush.msra.mxu0 %v537
    %1695 = vmatpush.msra.mxu0 %v529
    %1696 = vmatpush.msra.mxu0 %v521
    %1697 = vmatpush.msra.mxu0 %v513
    %1698 = vmatpush.msra.mxu0 %v505
    %1699 = vmatpush.msra.mxu0 %v497
    %1700 = vmatmul.f32.gmra.mxu0 %v1506
    %v1701 = vpop.f32.mrf.mxu0
    %v1702 = vadd.f32 0.0, %v1701
    %1703 = vdwg.mxu0
    %1704 = vmatpush.msra.mxu0 %v745
    %1705 = vmatpush.msra.mxu0 %v737
    %1706 = vmatpush.msra.mxu0 %v729
    %1707 = vmatpush.msra.mxu0 %v721
    %1708 = vmatpush.msra.mxu0 %v713
    %1709 = vmatpush.msra.mxu0 %v705
    %1710 = vmatpush.msra.mxu0 %v697
    %1711 = vmatpush.msra.mxu0 %v689
    %1712 = vmatpush.msra.mxu0 %v681
    %1713 = vmatpush.msra.mxu0 %v673
    %1714 = vmatpush.msra.mxu0 %v665
    %1715 = vmatpush.msra.mxu0 %v657
    %1716 = vmatpush.msra.mxu0 %v649
    %1717 = vmatpush.msra.mxu0 %v641
    %1718 = vmatpush.msra.mxu0 %v633
    %1719 = vmatpush.msra.mxu0 %v625
    %1720 = vmatmul.f32.gmra.mxu0 %v1507
    %v1721 = vpop.f32.mrf.mxu0
    %v1722 = vadd.f32 %v1702, %v1721
    %1723 = vdwg.mxu0
    %1724 = vmatpush.msra.mxu0 %v618
    %1725 = vmatpush.msra.mxu0 %v610
    %1726 = vmatpush.msra.mxu0 %v602
    %1727 = vmatpush.msra.mxu0 %v594
    %1728 = vmatpush.msra.mxu0 %v586
    %1729 = vmatpush.msra.mxu0 %v578
    %1730 = vmatpush.msra.mxu0 %v570
    %1731 = vmatpush.msra.mxu0 %v562
    %1732 = vmatpush.msra.mxu0 %v554
    %1733 = vmatpush.msra.mxu0 %v546
    %1734 = vmatpush.msra.mxu0 %v538
    %1735 = vmatpush.msra.mxu0 %v530
    %1736 = vmatpush.msra.mxu0 %v522
    %1737 = vmatpush.msra.mxu0 %v514
    %1738 = vmatpush.msra.mxu0 %v506
    %1739 = vmatpush.msra.mxu0 %v498
    %1740 = vmatmul.f32.gmra.mxu0 %v1506
    %v1741 = vpop.f32.mrf.mxu0
    %v1742 = vadd.f32 0.0, %v1741
    %1743 = vdwg.mxu0
    %1744 = vmatpush.msra.mxu0 %v746
    %1745 = vmatpush.msra.mxu0 %v738
    %1746 = vmatpush.msra.mxu0 %v730
    %1747 = vmatpush.msra.mxu0 %v722
    %1748 = vmatpush.msra.mxu0 %v714
    %1749 = vmatpush.msra.mxu0 %v706
    %1750 = vmatpush.msra.mxu0 %v698
    %1751 = vmatpush.msra.mxu0 %v690
    %1752 = vmatpush.msra.mxu0 %v682
    %1753 = vmatpush.msra.mxu0 %v674
    %1754 = vmatpush.msra.mxu0 %v666
    %1755 = vmatpush.msra.mxu0 %v658
    %1756 = vmatpush.msra.mxu0 %v650
    %1757 = vmatpush.msra.mxu0 %v642
    %1758 = vmatpush.msra.mxu0 %v634
    %1759 = vmatpush.msra.mxu0 %v626
    %1760 = vmatmul.f32.gmra.mxu0 %v1507
    %v1761 = vpop.f32.mrf.mxu0
    %v1762 = vadd.f32 %v1742, %v1761
    %1763 = vdwg.mxu0
    %1764 = vmatpush.msra.mxu0 %v619
    %1765 = vmatpush.msra.mxu0 %v611
    %1766 = vmatpush.msra.mxu0 %v603
    %1767 = vmatpush.msra.mxu0 %v595
    %1768 = vmatpush.msra.mxu0 %v587
    %1769 = vmatpush.msra.mxu0 %v579
    %1770 = vmatpush.msra.mxu0 %v571
    %1771 = vmatpush.msra.mxu0 %v563
    %1772 = vmatpush.msra.mxu0 %v555
    %1773 = vmatpush.msra.mxu0 %v547
    %1774 = vmatpush.msra.mxu0 %v539
    %1775 = vmatpush.msra.mxu0 %v531
    %1776 = vmatpush.msra.mxu0 %v523
    %1777 = vmatpush.msra.mxu0 %v515
    %1778 = vmatpush.msra.mxu0 %v507
    %1779 = vmatpush.msra.mxu0 %v499
    %1780 = vmatmul.f32.gmra.mxu0 %v1506
    %v1781 = vpop.f32.mrf.mxu0
    %v1782 = vadd.f32 0.0, %v1781
    %1783 = vdwg.mxu0
    %1784 = vmatpush.msra.mxu0 %v747
    %1785 = vmatpush.msra.mxu0 %v739
    %1786 = vmatpush.msra.mxu0 %v731
    %1787 = vmatpush.msra.mxu0 %v723
    %1788 = vmatpush.msra.mxu0 %v715
    %1789 = vmatpush.msra.mxu0 %v707
    %1790 = vmatpush.msra.mxu0 %v699
    %1791 = vmatpush.msra.mxu0 %v691
    %1792 = vmatpush.msra.mxu0 %v683
    %1793 = vmatpush.msra.mxu0 %v675
    %1794 = vmatpush.msra.mxu0 %v667
    %1795 = vmatpush.msra.mxu0 %v659
    %1796 = vmatpush.msra.mxu0 %v651
    %1797 = vmatpush.msra.mxu0 %v643
    %1798 = vmatpush.msra.mxu0 %v635
    %1799 = vmatpush.msra.mxu0 %v627
    %1800 = vmatmul.f32.gmra.mxu0 %v1507
    %v1801 = vpop.f32.mrf.mxu0
    %v1802 = vadd.f32 %v1782, %v1801
    %1803 = vdwg.mxu0
    %1804 = vmatpush.msra.mxu0 %v620
    %1805 = vmatpush.msra.mxu0 %v612
    %1806 = vmatpush.msra.mxu0 %v604
    %1807 = vmatpush.msra.mxu0 %v596
    %1808 = vmatpush.msra.mxu0 %v588
    %1809 = vmatpush.msra.mxu0 %v580
    %1810 = vmatpush.msra.mxu0 %v572
    %1811 = vmatpush.msra.mxu0 %v564
    %1812 = vmatpush.msra.mxu0 %v556
    %1813 = vmatpush.msra.mxu0 %v548
    %1814 = vmatpush.msra.mxu0 %v540
    %1815 = vmatpush.msra.mxu0 %v532
    %1816 = vmatpush.msra.mxu0 %v524
    %1817 = vmatpush.msra.mxu0 %v516
    %1818 = vmatpush.msra.mxu0 %v508
    %1819 = vmatpush.msra.mxu0 %v500
    %1820 = vmatmul.f32.gmra.mxu0 %v1506
    %v1821 = vpop.f32.mrf.mxu0
    %v1822 = vadd.f32 0.0, %v1821
    %1823 = vdwg.mxu0
    %1824 = vmatpush.msra.mxu0 %v748
    %1825 = vmatpush.msra.mxu0 %v740
    %1826 = vmatpush.msra.mxu0 %v732
    %1827 = vmatpush.msra.mxu0 %v724
    %1828 = vmatpush.msra.mxu0 %v716
    %1829 = vmatpush.msra.mxu0 %v708
    %1830 = vmatpush.msra.mxu0 %v700
    %1831 = vmatpush.msra.mxu0 %v692
    %1832 = vmatpush.msra.mxu0 %v684
    %1833 = vmatpush.msra.mxu0 %v676
    %1834 = vmatpush.msra.mxu0 %v668
    %1835 = vmatpush.msra.mxu0 %v660
    %1836 = vmatpush.msra.mxu0 %v652
    %1837 = vmatpush.msra.mxu0 %v644
    %1838 = vmatpush.msra.mxu0 %v636
    %1839 = vmatpush.msra.mxu0 %v628
    %1840 = vmatmul.f32.gmra.mxu0 %v1507
    %v1841 = vpop.f32.mrf.mxu0
    %v1842 = vadd.f32 %v1822, %v1841
    %1843 = vdwg.mxu0
    %v1844 = vadd.f32 %v1516, %v1562
    %v1845 = vadd.f32 %v1517, %v1602
    %v1846 = vadd.f32 %v1518, %v1642
    %v1847 = vadd.f32 %v1519, %v1682
    %v1848 = vadd.f32 %v1520, %v1722
    %v1849 = vadd.f32 %v1521, %v1762
    %v1850 = vadd.f32 %v1522, %v1802
    %v1851 = vadd.f32 %v1523, %v1842
    %v1852 = vmul.f32 %v1844, 0.5
    %v1853 = vmul.f32 %v1845, 0.5
    %v1854 = vmul.f32 %v1846, 0.5
    %v1855 = vmul.f32 %v1847, 0.5
    %v1856 = vtanh.pop %v1852
    %v1857 = vtanh.pop %v1853
    %v1858 = vtanh.pop %v1854
    %v1859 = vtanh.pop %v1855
    %v1860 = vmul.f32 %v1856, 0.5
    %v1861 = vmul.f32 %v1857, 0.5
    %v1862 = vmul.f32 %v1858, 0.5
    %v1863 = vmul.f32 %v1859, 0.5
    %v1864 = vadd.f32 %v1860, 0.5
    %v1865 = vadd.f32 %v1861, 0.5
    %v1866 = vadd.f32 %v1862, 0.5
    %v1867 = vadd.f32 %v1863, 0.5
    %v1868 = vtanh.pop %v1848
    %v1869 = vtanh.pop %v1849
    %v1870 = vmul.f32 %v1850, 0.5
    %v1871 = vmul.f32 %v1851, 0.5
    %v1872 = vtanh.pop %v1870
    %v1873 = vtanh.pop %v1871
    %v1874 = vmul.f32 %v1872, 0.5
    %v1875 = vmul.f32 %v1873, 0.5
    %v1876 = vadd.f32 %v1874, 0.5
    %v1877 = vadd.f32 %v1875, 0.5
    %v1878 = vmul.f32 %v1866, %v1502
    %v1879 = vmul.f32 %v1867, %v1503
    %v1880 = vmul.f32 %v1864, %v1868
    %v1881 = vmul.f32 %v1865, %v1869
    %v1882 = vadd.f32 %v1878, %v1880
    %v1883 = vadd.f32 %v1879, %v1881
    %v1884 = vtanh.pop %v1882
    %v1885 = vtanh.pop %v1883
    %v1886 = vmul.f32 %v1876, %v1884
    %v1887 = vmul.f32 %v1877, %v1885
    %s1888 = smul.u32 2, 2
    %s1889 = smul.addr %s1888, 8
    %s1890 = scalar_lea.vmem [#allocation8], %s1889
    %1891 = vst [vmem:[%s1890] sm:$0xff] %v1886
    %1892 = vst [vmem:[%s1890 + $0x8] sm:$0xff] %v1887
    %s1893 = smul.u32 3, 8
    %s1894 = smul.addr %s1893, 8
    %s1895 = scalar_lea.vmem [#allocation2], %s1894
    %v1896 = vld [vmem:[%s1895] sm:$0xff]
    %v1897 = vld [vmem:[%s1895 + $0x8] sm:$0xff]
    %v1898 = vld [vmem:[%s1895 + $0x10] sm:$0xff]
    %v1899 = vld [vmem:[%s1895 + $0x18] sm:$0xff]
    %v1900 = vld [vmem:[%s1895 + $0x20] sm:$0xff]
    %v1901 = vld [vmem:[%s1895 + $0x28] sm:$0xff]
    %v1902 = vld [vmem:[%s1895 + $0x30] sm:$0xff]
    %v1903 = vld [vmem:[%s1895 + $0x38] sm:$0xff]
    %1904 = vmatpush.msra.mxu0 %v613
    %1905 = vmatpush.msra.mxu0 %v605
    %1906 = vmatpush.msra.mxu0 %v597
    %1907 = vmatpush.msra.mxu0 %v589
    %1908 = vmatpush.msra.mxu0 %v581
    %1909 = vmatpush.msra.mxu0 %v573
    %1910 = vmatpush.msra.mxu0 %v565
    %1911 = vmatpush.msra.mxu0 %v557
    %1912 = vmatpush.msra.mxu0 %v549
    %1913 = vmatpush.msra.mxu0 %v541
    %1914 = vmatpush.msra.mxu0 %v533
    %1915 = vmatpush.msra.mxu0 %v525
    %1916 = vmatpush.msra.mxu0 %v517
    %1917 = vmatpush.msra.mxu0 %v509
    %1918 = vmatpush.msra.mxu0 %v501
    %1919 = vmatpush.msra.mxu0 %v493
    %1920 = vmatmul.f32.gmra.mxu0 %v1886
    %v1921 = vpop.f32.mrf.mxu0
    %v1922 = vadd.f32 0.0, %v1921
    %1923 = vdwg.mxu0
    %1924 = vmatpush.msra.mxu0 %v741
    %1925 = vmatpush.msra.mxu0 %v733
    %1926 = vmatpush.msra.mxu0 %v725
    %1927 = vmatpush.msra.mxu0 %v717
    %1928 = vmatpush.msra.mxu0 %v709
    %1929 = vmatpush.msra.mxu0 %v701
    %1930 = vmatpush.msra.mxu0 %v693
    %1931 = vmatpush.msra.mxu0 %v685
    %1932 = vmatpush.msra.mxu0 %v677
    %1933 = vmatpush.msra.mxu0 %v669
    %1934 = vmatpush.msra.mxu0 %v661
    %1935 = vmatpush.msra.mxu0 %v653
    %1936 = vmatpush.msra.mxu0 %v645
    %1937 = vmatpush.msra.mxu0 %v637
    %1938 = vmatpush.msra.mxu0 %v629
    %1939 = vmatpush.msra.mxu0 %v621
    %1940 = vmatmul.f32.gmra.mxu0 %v1887
    %v1941 = vpop.f32.mrf.mxu0
    %v1942 = vadd.f32 %v1922, %v1941
    %1943 = vdwg.mxu0
    %1944 = vmatpush.msra.mxu0 %v614
    %1945 = vmatpush.msra.mxu0 %v606
    %1946 = vmatpush.msra.mxu0 %v598
    %1947 = vmatpush.msra.mxu0 %v590
    %1948 = vmatpush.msra.mxu0 %v582
    %1949 = vmatpush.msra.mxu0 %v574
    %1950 = vmatpush.msra.mxu0 %v566
    %1951 = vmatpush.msra.mxu0 %v558
    %1952 = vmatpush.msra.mxu0 %v550
    %1953 = vmatpush.msra.mxu0 %v542
    %1954 = vmatpush.msra.mxu0 %v534
    %1955 = vmatpush.msra.mxu0 %v526
    %1956 = vmatpush.msra.mxu0 %v518
    %1957 = vmatpush.msra.mxu0 %v510
    %1958 = vmatpush.msra.mxu0 %v502
    %1959 = vmatpush.msra.mxu0 %v494
    %1960 = vmatmul.f32.gmra.mxu0 %v1886
    %v1961 = vpop.f32.mrf.mxu0
    %v1962 = vadd.f32 0.0, %v1961
    %1963 = vdwg.mxu0
    %1964 = vmatpush.msra.mxu0 %v742
    %1965 = vmatpush.msra.mxu0 %v734
    %1966 = vmatpush.msra.mxu0 %v726
    %1967 = vmatpush.msra.mxu0 %v718
    %1968 = vmatpush.msra.mxu0 %v710
    %1969 = vmatpush.msra.mxu0 %v702
    %1970 = vmatpush.msra.mxu0 %v694
    %1971 = vmatpush.msra.mxu0 %v686
    %1972 = vmatpush.msra.mxu0 %v678
    %1973 = vmatpush.msra.mxu0 %v670
    %1974 = vmatpush.msra.mxu0 %v662
    %1975 = vmatpush.msra.mxu0 %v654
    %1976 = vmatpush.msra.mxu0 %v646
    %1977 = vmatpush.msra.mxu0 %v638
    %1978 = vmatpush.msra.mxu0 %v630
    %1979 = vmatpush.msra.mxu0 %v622
    %1980 = vmatmul.f32.gmra.mxu0 %v1887
    %v1981 = vpop.f32.mrf.mxu0
    %v1982 = vadd.f32 %v1962, %v1981
    %1983 = vdwg.mxu0
    %1984 = vmatpush.msra.mxu0 %v615
    %1985 = vmatpush.msra.mxu0 %v607
    %1986 = vmatpush.msra.mxu0 %v599
    %1987 = vmatpush.msra.mxu0 %v591
    %1988 = vmatpush.msra.mxu0 %v583
    %1989 = vmatpush.msra.mxu0 %v575
    %1990 = vmatpush.msra.mxu0 %v567
    %1991 = vmatpush.msra.mxu0 %v559
    %1992 = vmatpush.msra.mxu0 %v551
    %1993 = vmatpush.msra.mxu0 %v543
    %1994 = vmatpush.msra.mxu0 %v535
    %1995 = vmatpush.msra.mxu0 %v527
    %1996 = vmatpush.msra.mxu0 %v519
    %1997 = vmatpush.msra.mxu0 %v511
    %1998 = vmatpush.msra.mxu0 %v503
    %1999 = vmatpush.msra.mxu0 %v495
    %2000 = vmatmul.f32.gmra.mxu0 %v1886
    %v2001 = vpop.f32.mrf.mxu0
    %v2002 = vadd.f32 0.0, %v2001
    %2003 = vdwg.mxu0
    %2004 = vmatpush.msra.mxu0 %v743
    %2005 = vmatpush.msra.mxu0 %v735
    %2006 = vmatpush.msra.mxu0 %v727
    %2007 = vmatpush.msra.mxu0 %v719
    %2008 = vmatpush.msra.mxu0 %v711
    %2009 = vmatpush.msra.mxu0 %v703
    %2010 = vmatpush.msra.mxu0 %v695
    %2011 = vmatpush.msra.mxu0 %v687
    %2012 = vmatpush.msra.mxu0 %v679
    %2013 = vmatpush.msra.mxu0 %v671
    %2014 = vmatpush.msra.mxu0 %v663
    %2015 = vmatpush.msra.mxu0 %v655
    %2016 = vmatpush.msra.mxu0 %v647
    %2017 = vmatpush.msra.mxu0 %v639
    %2018 = vmatpush.msra.mxu0 %v631
    %2019 = vmatpush.msra.mxu0 %v623
    %2020 = vmatmul.f32.gmra.mxu0 %v1887
    %v2021 = vpop.f32.mrf.mxu0
    %v2022 = vadd.f32 %v2002, %v2021
    %2023 = vdwg.mxu0
    %2024 = vmatpush.msra.mxu0 %v616
    %2025 = vmatpush.msra.mxu0 %v608
    %2026 = vmatpush.msra.mxu0 %v600
    %2027 = vmatpush.msra.mxu0 %v592
    %2028 = vmatpush.msra.mxu0 %v584
    %2029 = vmatpush.msra.mxu0 %v576
    %2030 = vmatpush.msra.mxu0 %v568
    %2031 = vmatpush.msra.mxu0 %v560
    %2032 = vmatpush.msra.mxu0 %v552
    %2033 = vmatpush.msra.mxu0 %v544
    %2034 = vmatpush.msra.mxu0 %v536
    %2035 = vmatpush.msra.mxu0 %v528
    %2036 = vmatpush.msra.mxu0 %v520
    %2037 = vmatpush.msra.mxu0 %v512
    %2038 = vmatpush.msra.mxu0 %v504
    %2039 = vmatpush.msra.mxu0 %v496
    %2040 = vmatmul.f32.gmra.mxu0 %v1886
    %v2041 = vpop.f32.mrf.mxu0
    %v2042 = vadd.f32 0.0, %v2041
    %2043 = vdwg.mxu0
    %2044 = vmatpush.msra.mxu0 %v744
    %2045 = vmatpush.msra.mxu0 %v736
    %2046 = vmatpush.msra.mxu0 %v728
    %2047 = vmatpush.msra.mxu0 %v720
    %2048 = vmatpush.msra.mxu0 %v712
    %2049 = vmatpush.msra.mxu0 %v704
    %2050 = vmatpush.msra.mxu0 %v696
    %2051 = vmatpush.msra.mxu0 %v688
    %2052 = vmatpush.msra.mxu0 %v680
    %2053 = vmatpush.msra.mxu0 %v672
    %2054 = vmatpush.msra.mxu0 %v664
    %2055 = vmatpush.msra.mxu0 %v656
    %2056 = vmatpush.msra.mxu0 %v648
    %2057 = vmatpush.msra.mxu0 %v640
    %2058 = vmatpush.msra.mxu0 %v632
    %2059 = vmatpush.msra.mxu0 %v624
    %2060 = vmatmul.f32.gmra.mxu0 %v1887
    %v2061 = vpop.f32.mrf.mxu0
    %v2062 = vadd.f32 %v2042, %v2061
    %2063 = vdwg.mxu0
    %2064 = vmatpush.msra.mxu0 %v617
    %2065 = vmatpush.msra.mxu0 %v609
    %2066 = vmatpush.msra.mxu0 %v601
    %2067 = vmatpush.msra.mxu0 %v593
    %2068 = vmatpush.msra.mxu0 %v585
    %2069 = vmatpush.msra.mxu0 %v577
    %2070 = vmatpush.msra.mxu0 %v569
    %2071 = vmatpush.msra.mxu0 %v561
    %2072 = vmatpush.msra.mxu0 %v553
    %2073 = vmatpush.msra.mxu0 %v545
    %2074 = vmatpush.msra.mxu0 %v537
    %2075 = vmatpush.msra.mxu0 %v529
    %2076 = vmatpush.msra.mxu0 %v521
    %2077 = vmatpush.msra.mxu0 %v513
    %2078 = vmatpush.msra.mxu0 %v505
    %2079 = vmatpush.msra.mxu0 %v497
    %2080 = vmatmul.f32.gmra.mxu0 %v1886
    %v2081 = vpop.f32.mrf.mxu0
    %v2082 = vadd.f32 0.0, %v2081
    %2083 = vdwg.mxu0
    %2084 = vmatpush.msra.mxu0 %v745
    %2085 = vmatpush.msra.mxu0 %v737
    %2086 = vmatpush.msra.mxu0 %v729
    %2087 = vmatpush.msra.mxu0 %v721
    %2088 = vmatpush.msra.mxu0 %v713
    %2089 = vmatpush.msra.mxu0 %v705
    %2090 = vmatpush.msra.mxu0 %v697
    %2091 = vmatpush.msra.mxu0 %v689
    %2092 = vmatpush.msra.mxu0 %v681
    %2093 = vmatpush.msra.mxu0 %v673
    %2094 = vmatpush.msra.mxu0 %v665
    %2095 = vmatpush.msra.mxu0 %v657
    %2096 = vmatpush.msra.mxu0 %v649
    %2097 = vmatpush.msra.mxu0 %v641
    %2098 = vmatpush.msra.mxu0 %v633
    %2099 = vmatpush.msra.mxu0 %v625
    %2100 = vmatmul.f32.gmra.mxu0 %v1887
    %v2101 = vpop.f32.mrf.mxu0
    %v2102 = vadd.f32 %v2082, %v2101
    %2103 = vdwg.mxu0
    %2104 = vmatpush.msra.mxu0 %v618
    %2105 = vmatpush.msra.mxu0 %v610
    %2106 = vmatpush.msra.mxu0 %v602
    %2107 = vmatpush.msra.mxu0 %v594
    %2108 = vmatpush.msra.mxu0 %v586
    %2109 = vmatpush.msra.mxu0 %v578
    %2110 = vmatpush.msra.mxu0 %v570
    %2111 = vmatpush.msra.mxu0 %v562
    %2112 = vmatpush.msra.mxu0 %v554
    %2113 = vmatpush.msra.mxu0 %v546
    %2114 = vmatpush.msra.mxu0 %v538
    %2115 = vmatpush.msra.mxu0 %v530
    %2116 = vmatpush.msra.mxu0 %v522
    %2117 = vmatpush.msra.mxu0 %v514
    %2118 = vmatpush.msra.mxu0 %v506
    %2119 = vmatpush.msra.mxu0 %v498
    %2120 = vmatmul.f32.gmra.mxu0 %v1886
    %v2121 = vpop.f32.mrf.mxu0
    %v2122 = vadd.f32 0.0, %v2121
    %2123 = vdwg.mxu0
    %2124 = vmatpush.msra.mxu0 %v746
    %2125 = vmatpush.msra.mxu0 %v738
    %2126 = vmatpush.msra.mxu0 %v730
    %2127 = vmatpush.msra.mxu0 %v722
    %2128 = vmatpush.msra.mxu0 %v714
    %2129 = vmatpush.msra.mxu0 %v706
    %2130 = vmatpush.msra.mxu0 %v698
    %2131 = vmatpush.msra.mxu0 %v690
    %2132 = vmatpush.msra.mxu0 %v682
    %2133 = vmatpush.msra.mxu0 %v674
    %2134 = vmatpush.msra.mxu0 %v666
    %2135 = vmatpush.msra.mxu0 %v658
    %2136 = vmatpush.msra.mxu0 %v650
    %2137 = vmatpush.msra.mxu0 %v642
    %2138 = vmatpush.msra.mxu0 %v634
    %2139 = vmatpush.msra.mxu0 %v626
    %2140 = vmatmul.f32.gmra.mxu0 %v1887
    %v2141 = vpop.f32.mrf.mxu0
    %v2142 = vadd.f32 %v2122, %v2141
    %2143 = vdwg.mxu0
    %2144 = vmatpush.msra.mxu0 %v619
    %2145 = vmatpush.msra.mxu0 %v611
    %2146 = vmatpush.msra.mxu0 %v603
    %2147 = vmatpush.msra.mxu0 %v595
    %2148 = vmatpush.msra.mxu0 %v587
    %2149 = vmatpush.msra.mxu0 %v579
    %2150 = vmatpush.msra.mxu0 %v571
    %2151 = vmatpush.msra.mxu0 %v563
    %2152 = vmatpush.msra.mxu0 %v555
    %2153 = vmatpush.msra.mxu0 %v547
    %2154 = vmatpush.msra.mxu0 %v539
    %2155 = vmatpush.msra.mxu0 %v531
    %2156 = vmatpush.msra.mxu0 %v523
    %2157 = vmatpush.msra.mxu0 %v515
    %2158 = vmatpush.msra.mxu0 %v507
    %2159 = vmatpush.msra.mxu0 %v499
    %2160 = vmatmul.f32.gmra.mxu0 %v1886
    %v2161 = vpop.f32.mrf.mxu0
    %v2162 = vadd.f32 0.0, %v2161
    %2163 = vdwg.mxu0
    %2164 = vmatpush.msra.mxu0 %v747
    %2165 = vmatpush.msra.mxu0 %v739
    %2166 = vmatpush.msra.mxu0 %v731
    %2167 = vmatpush.msra.mxu0 %v723
    %2168 = vmatpush.msra.mxu0 %v715
    %2169 = vmatpush.msra.mxu0 %v707
    %2170 = vmatpush.msra.mxu0 %v699
    %2171 = vmatpush.msra.mxu0 %v691
    %2172 = vmatpush.msra.mxu0 %v683
    %2173 = vmatpush.msra.mxu0 %v675
    %2174 = vmatpush.msra.mxu0 %v667
    %2175 = vmatpush.msra.mxu0 %v659
    %2176 = vmatpush.msra.mxu0 %v651
    %2177 = vmatpush.msra.mxu0 %v643
    %2178 = vmatpush.msra.mxu0 %v635
    %2179 = vmatpush.msra.mxu0 %v627
    %2180 = vmatmul.f32.gmra.mxu0 %v1887
    %v2181 = vpop.f32.mrf.mxu0
    %v2182 = vadd.f32 %v2162, %v2181
    %2183 = vdwg.mxu0
    %2184 = vmatpush.msra.mxu0 %v620
    %2185 = vmatpush.msra.mxu0 %v612
    %2186 = vmatpush.msra.mxu0 %v604
    %2187 = vmatpush.msra.mxu0 %v596
    %2188 = vmatpush.msra.mxu0 %v588
    %2189 = vmatpush.msra.mxu0 %v580
    %2190 = vmatpush.msra.mxu0 %v572
    %2191 = vmatpush.msra.mxu0 %v564
    %2192 = vmatpush.msra.mxu0 %v556
    %2193 = vmatpush.msra.mxu0 %v548
    %2194 = vmatpush.msra.mxu0 %v540
    %2195 = vmatpush.msra.mxu0 %v532
    %2196 = vmatpush.msra.mxu0 %v524
    %2197 = vmatpush.msra.mxu0 %v516
    %2198 = vmatpush.msra.mxu0 %v508
    %2199 = vmatpush.msra.mxu0 %v500
    %2200 = vmatmul.f32.gmra.mxu0 %v1886
    %v2201 = vpop.f32.mrf.mxu0
    %v2202 = vadd.f32 0.0, %v2201
    %2203 = vdwg.mxu0
    %2204 = vmatpush.msra.mxu0 %v748
    %2205 = vmatpush.msra.mxu0 %v740
    %2206 = vmatpush.msra.mxu0 %v732
    %2207 = vmatpush.msra.mxu0 %v724
    %2208 = vmatpush.msra.mxu0 %v716
    %2209 = vmatpush.msra.mxu0 %v708
    %2210 = vmatpush.msra.mxu0 %v700
    %2211 = vmatpush.msra.mxu0 %v692
    %2212 = vmatpush.msra.mxu0 %v684
    %2213 = vmatpush.msra.mxu0 %v676
    %2214 = vmatpush.msra.mxu0 %v668
    %2215 = vmatpush.msra.mxu0 %v660
    %2216 = vmatpush.msra.mxu0 %v652
    %2217 = vmatpush.msra.mxu0 %v644
    %2218 = vmatpush.msra.mxu0 %v636
    %2219 = vmatpush.msra.mxu0 %v628
    %2220 = vmatmul.f32.gmra.mxu0 %v1887
    %v2221 = vpop.f32.mrf.mxu0
    %v2222 = vadd.f32 %v2202, %v2221
    %2223 = vdwg.mxu0
    %v2224 = vadd.f32 %v1896, %v1942
    %v2225 = vadd.f32 %v1897, %v1982
    %v2226 = vadd.f32 %v1898, %v2022
    %v2227 = vadd.f32 %v1899, %v2062
    %v2228 = vadd.f32 %v1900, %v2102
    %v2229 = vadd.f32 %v1901, %v2142
    %v2230 = vadd.f32 %v1902, %v2182
    %v2231 = vadd.f32 %v1903, %v2222
    %v2232 = vmul.f32 %v2224, 0.5
    %v2233 = vmul.f32 %v2225, 0.5
    %v2234 = vmul.f32 %v2226, 0.5
    %v2235 = vmul.f32 %v2227, 0.5
    %v2236 = vtanh.pop %v2232
    %v2237 = vtanh.pop %v2233
    %v2238 = vtanh.pop %v2234
    %v2239 = vtanh.pop %v2235
    %v2240 = vmul.f32 %v2236, 0.5
    %v2241 = vmul.f32 %v2237, 0.5
    %v2242 = vmul.f32 %v2238, 0.5
    %v2243 = vmul.f32 %v2239, 0.5
    %v2244 = vadd.f32 %v2240, 0.5
    %v2245 = vadd.f32 %v2241, 0.5
    %v2246 = vadd.f32 %v2242, 0.5
    %v2247 = vadd.f32 %v2243, 0.5
    %v2248 = vtanh.pop %v2228
    %v2249 = vtanh.pop %v2229
    %v2250 = vmul.f32 %v2230, 0.5
    %v2251 = vmul.f32 %v2231, 0.5
    %v2252 = vtanh.pop %v2250
    %v2253 = vtanh.pop %v2251
    %v2254 = vmul.f32 %v2252, 0.5
    %v2255 = vmul.f32 %v2253, 0.5
    %v2256 = vadd.f32 %v2254, 0.5
    %v2257 = vadd.f32 %v2255, 0.5
    %v2258 = vmul.f32 %v2246, %v1882
    %v2259 = vmul.f32 %v2247, %v1883
    %v2260 = vmul.f32 %v2244, %v2248
    %v2261 = vmul.f32 %v2245, %v2249
    %v2262 = vadd.f32 %v2258, %v2260
    %v2263 = vadd.f32 %v2259, %v2261
    %v2264 = vtanh.pop %v2262
    %v2265 = vtanh.pop %v2263
    %v2266 = vmul.f32 %v2256, %v2264
    %v2267 = vmul.f32 %v2257, %v2265
    %s2268 = smul.u32 3, 2
    %s2269 = smul.addr %s2268, 8
    %s2270 = scalar_lea.vmem [#allocation8], %s2269
    %2271 = vst [vmem:[%s2270] sm:$0xff] %v2266
    %2272 = vst [vmem:[%s2270 + $0x8] sm:$0xff] %v2267
    %s2273 = smul.u32 4, 8
    %s2274 = smul.addr %s2273, 8
    %s2275 = scalar_lea.vmem [#allocation2], %s2274
    %v2276 = vld [vmem:[%s2275] sm:$0xff]
    %v2277 = vld [vmem:[%s2275 + $0x8] sm:$0xff]
    %v2278 = vld [vmem:[%s2275 + $0x10] sm:$0xff]
    %v2279 = vld [vmem:[%s2275 + $0x18] sm:$0xff]
    %v2280 = vld [vmem:[%s2275 + $0x20] sm:$0xff]
    %v2281 = vld [vmem:[%s2275 + $0x28] sm:$0xff]
    %v2282 = vld [vmem:[%s2275 + $0x30] sm:$0xff]
    %v2283 = vld [vmem:[%s2275 + $0x38] sm:$0xff]
    %2284 = vmatpush.msra.mxu0 %v613
    %2285 = vmatpush.msra.mxu0 %v605
    %2286 = vmatpush.msra.mxu0 %v597
    %2287 = vmatpush.msra.mxu0 %v589
    %2288 = vmatpush.msra.mxu0 %v581
    %2289 = vmatpush.msra.mxu0 %v573
    %2290 = vmatpush.msra.mxu0 %v565
    %2291 = vmatpush.msra.mxu0 %v557
    %2292 = vmatpush.msra.mxu0 %v549
    %2293 = vmatpush.msra.mxu0 %v541
    %2294 = vmatpush.msra.mxu0 %v533
    %2295 = vmatpush.msra.mxu0 %v525
    %2296 = vmatpush.msra.mxu0 %v517
    %2297 = vmatpush.msra.mxu0 %v509
    %2298 = vmatpush.msra.mxu0 %v501
    %2299 = vmatpush.msra.mxu0 %v493
    %2300 = vmatmul.f32.gmra.mxu0 %v2266
    %v2301 = vpop.f32.mrf.mxu0
    %v2302 = vadd.f32 0.0, %v2301
    %2303 = vdwg.mxu0
    %2304 = vmatpush.msra.mxu0 %v741
    %2305 = vmatpush.msra.mxu0 %v733
    %2306 = vmatpush.msra.mxu0 %v725
    %2307 = vmatpush.msra.mxu0 %v717
    %2308 = vmatpush.msra.mxu0 %v709
    %2309 = vmatpush.msra.mxu0 %v701
    %2310 = vmatpush.msra.mxu0 %v693
    %2311 = vmatpush.msra.mxu0 %v685
    %2312 = vmatpush.msra.mxu0 %v677
    %2313 = vmatpush.msra.mxu0 %v669
    %2314 = vmatpush.msra.mxu0 %v661
    %2315 = vmatpush.msra.mxu0 %v653
    %2316 = vmatpush.msra.mxu0 %v645
    %2317 = vmatpush.msra.mxu0 %v637
    %2318 = vmatpush.msra.mxu0 %v629
    %2319 = vmatpush.msra.mxu0 %v621
    %2320 = vmatmul.f32.gmra.mxu0 %v2267
    %v2321 = vpop.f32.mrf.mxu0
    %v2322 = vadd.f32 %v2302, %v2321
    %2323 = vdwg.mxu0
    %2324 = vmatpush.msra.mxu0 %v614
    %2325 = vmatpush.msra.mxu0 %v606
    %2326 = vmatpush.msra.mxu0 %v598
    %2327 = vmatpush.msra.mxu0 %v590
    %2328 = vmatpush.msra.mxu0 %v582
    %2329 = vmatpush.msra.mxu0 %v574
    %2330 = vmatpush.msra.mxu0 %v566
    %2331 = vmatpush.msra.mxu0 %v558
    %2332 = vmatpush.msra.mxu0 %v550
    %2333 = vmatpush.msra.mxu0 %v542
    %2334 = vmatpush.msra.mxu0 %v534
    %2335 = vmatpush.msra.mxu0 %v526
    %2336 = vmatpush.msra.mxu0 %v518
    %2337 = vmatpush.msra.mxu0 %v510
    %2338 = vmatpush.msra.mxu0 %v502
    %2339 = vmatpush.msra.mxu0 %v494
    %2340 = vmatmul.f32.gmra.mxu0 %v2266
    %v2341 = vpop.f32.mrf.mxu0
    %v2342 = vadd.f32 0.0, %v2341
    %2343 = vdwg.mxu0
    %2344 = vmatpush.msra.mxu0 %v742
    %2345 = vmatpush.msra.mxu0 %v734
    %2346 = vmatpush.msra.mxu0 %v726
    %2347 = vmatpush.msra.mxu0 %v718
    %2348 = vmatpush.msra.mxu0 %v710
    %2349 = vmatpush.msra.mxu0 %v702
    %2350 = vmatpush.msra.mxu0 %v694
    %2351 = vmatpush.msra.mxu0 %v686
    %2352 = vmatpush.msra.mxu0 %v678
    %2353 = vmatpush.msra.mxu0 %v670
    %2354 = vmatpush.msra.mxu0 %v662
    %2355 = vmatpush.msra.mxu0 %v654
    %2356 = vmatpush.msra.mxu0 %v646
    %2357 = vmatpush.msra.mxu0 %v638
    %2358 = vmatpush.msra.mxu0 %v630
    %2359 = vmatpush.msra.mxu0 %v622
    %2360 = vmatmul.f32.gmra.mxu0 %v2267
    %v2361 = vpop.f32.mrf.mxu0
    %v2362 = vadd.f32 %v2342, %v2361
    %2363 = vdwg.mxu0
    %2364 = vmatpush.msra.mxu0 %v615
    %2365 = vmatpush.msra.mxu0 %v607
    %2366 = vmatpush.msra.mxu0 %v599
    %2367 = vmatpush.msra.mxu0 %v591
    %2368 = vmatpush.msra.mxu0 %v583
    %2369 = vmatpush.msra.mxu0 %v575
    %2370 = vmatpush.msra.mxu0 %v567
    %2371 = vmatpush.msra.mxu0 %v559
    %2372 = vmatpush.msra.mxu0 %v551
    %2373 = vmatpush.msra.mxu0 %v543
    %2374 = vmatpush.msra.mxu0 %v535
    %2375 = vmatpush.msra.mxu0 %v527
    %2376 = vmatpush.msra.mxu0 %v519
    %2377 = vmatpush.msra.mxu0 %v511
    %2378 = vmatpush.msra.mxu0 %v503
    %2379 = vmatpush.msra.mxu0 %v495
    %2380 = vmatmul.f32.gmra.mxu0 %v2266
    %v2381 = vpop.f32.mrf.mxu0
    %v2382 = vadd.f32 0.0, %v2381
    %2383 = vdwg.mxu0
    %2384 = vmatpush.msra.mxu0 %v743
    %2385 = vmatpush.msra.mxu0 %v735
    %2386 = vmatpush.msra.mxu0 %v727
    %2387 = vmatpush.msra.mxu0 %v719
    %2388 = vmatpush.msra.mxu0 %v711
    %2389 = vmatpush.msra.mxu0 %v703
    %2390 = vmatpush.msra.mxu0 %v695
    %2391 = vmatpush.msra.mxu0 %v687
    %2392 = vmatpush.msra.mxu0 %v679
    %2393 = vmatpush.msra.mxu0 %v671
    %2394 = vmatpush.msra.mxu0 %v663
    %2395 = vmatpush.msra.mxu0 %v655
    %2396 = vmatpush.msra.mxu0 %v647
    %2397 = vmatpush.msra.mxu0 %v639
    %2398 = vmatpush.msra.mxu0 %v631
    %2399 = vmatpush.msra.mxu0 %v623
    %2400 = vmatmul.f32.gmra.mxu0 %v2267
    %v2401 = vpop.f32.mrf.mxu0
    %v2402 = vadd.f32 %v2382, %v2401
    %2403 = vdwg.mxu0
    %2404 = vmatpush.msra.mxu0 %v616
    %2405 = vmatpush.msra.mxu0 %v608
    %2406 = vmatpush.msra.mxu0 %v600
    %2407 = vmatpush.msra.mxu0 %v592
    %2408 = vmatpush.msra.mxu0 %v584
    %2409 = vmatpush.msra.mxu0 %v576
    %2410 = vmatpush.msra.mxu0 %v568
    %2411 = vmatpush.msra.mxu0 %v560
    %2412 = vmatpush.msra.mxu0 %v552
    %2413 = vmatpush.msra.mxu0 %v544
    %2414 = vmatpush.msra.mxu0 %v536
    %2415 = vmatpush.msra.mxu0 %v528
    %2416 = vmatpush.msra.mxu0 %v520
    %2417 = vmatpush.msra.mxu0 %v512
    %2418 = vmatpush.msra.mxu0 %v504
    %2419 = vmatpush.msra.mxu0 %v496
    %2420 = vmatmul.f32.gmra.mxu0 %v2266
    %v2421 = vpop.f32.mrf.mxu0
    %v2422 = vadd.f32 0.0, %v2421
    %2423 = vdwg.mxu0
    %2424 = vmatpush.msra.mxu0 %v744
    %2425 = vmatpush.msra.mxu0 %v736
    %2426 = vmatpush.msra.mxu0 %v728
    %2427 = vmatpush.msra.mxu0 %v720
    %2428 = vmatpush.msra.mxu0 %v712
    %2429 = vmatpush.msra.mxu0 %v704
    %2430 = vmatpush.msra.mxu0 %v696
    %2431 = vmatpush.msra.mxu0 %v688
    %2432 = vmatpush.msra.mxu0 %v680
    %2433 = vmatpush.msra.mxu0 %v672
    %2434 = vmatpush.msra.mxu0 %v664
    %2435 = vmatpush.msra.mxu0 %v656
    %2436 = vmatpush.msra.mxu0 %v648
    %2437 = vmatpush.msra.mxu0 %v640
    %2438 = vmatpush.msra.mxu0 %v632
    %2439 = vmatpush.msra.mxu0 %v624
    %2440 = vmatmul.f32.gmra.mxu0 %v2267
    %v2441 = vpop.f32.mrf.mxu0
    %v2442 = vadd.f32 %v2422, %v2441
    %2443 = vdwg.mxu0
    %2444 = vmatpush.msra.mxu0 %v617
    %2445 = vmatpush.msra.mxu0 %v609
    %2446 = vmatpush.msra.mxu0 %v601
    %2447 = vmatpush.msra.mxu0 %v593
    %2448 = vmatpush.msra.mxu0 %v585
    %2449 = vmatpush.msra.mxu0 %v577
    %2450 = vmatpush.msra.mxu0 %v569
    %2451 = vmatpush.msra.mxu0 %v561
    %2452 = vmatpush.msra.mxu0 %v553
    %2453 = vmatpush.msra.mxu0 %v545
    %2454 = vmatpush.msra.mxu0 %v537
    %2455 = vmatpush.msra.mxu0 %v529
    %2456 = vmatpush.msra.mxu0 %v521
    %2457 = vmatpush.msra.mxu0 %v513
    %2458 = vmatpush.msra.mxu0 %v505
    %2459 = vmatpush.msra.mxu0 %v497
    %2460 = vmatmul.f32.gmra.mxu0 %v2266
    %v2461 = vpop.f32.mrf.mxu0
    %v2462 = vadd.f32 0.0, %v2461
    %2463 = vdwg.mxu0
    %2464 = vmatpush.msra.mxu0 %v745
    %2465 = vmatpush.msra.mxu0 %v737
    %2466 = vmatpush.msra.mxu0 %v729
    %2467 = vmatpush.msra.mxu0 %v721
    %2468 = vmatpush.msra.mxu0 %v713
    %2469 = vmatpush.msra.mxu0 %v705
    %2470 = vmatpush.msra.mxu0 %v697
    %2471 = vmatpush.msra.mxu0 %v689
    %2472 = vmatpush.msra.mxu0 %v681
    %2473 = vmatpush.msra.mxu0 %v673
    %2474 = vmatpush.msra.mxu0 %v665
    %2475 = vmatpush.msra.mxu0 %v657
    %2476 = vmatpush.msra.mxu0 %v649
    %2477 = vmatpush.msra.mxu0 %v641
    %2478 = vmatpush.msra.mxu0 %v633
    %2479 = vmatpush.msra.mxu0 %v625
    %2480 = vmatmul.f32.gmra.mxu0 %v2267
    %v2481 = vpop.f32.mrf.mxu0
    %v2482 = vadd.f32 %v2462, %v2481
    %2483 = vdwg.mxu0
    %2484 = vmatpush.msra.mxu0 %v618
    %2485 = vmatpush.msra.mxu0 %v610
    %2486 = vmatpush.msra.mxu0 %v602
    %2487 = vmatpush.msra.mxu0 %v594
    %2488 = vmatpush.msra.mxu0 %v586
    %2489 = vmatpush.msra.mxu0 %v578
    %2490 = vmatpush.msra.mxu0 %v570
    %2491 = vmatpush.msra.mxu0 %v562
    %2492 = vmatpush.msra.mxu0 %v554
    %2493 = vmatpush.msra.mxu0 %v546
    %2494 = vmatpush.msra.mxu0 %v538
    %2495 = vmatpush.msra.mxu0 %v530
    %2496 = vmatpush.msra.mxu0 %v522
    %2497 = vmatpush.msra.mxu0 %v514
    %2498 = vmatpush.msra.mxu0 %v506
    %2499 = vmatpush.msra.mxu0 %v498
    %2500 = vmatmul.f32.gmra.mxu0 %v2266
    %v2501 = vpop.f32.mrf.mxu0
    %v2502 = vadd.f32 0.0, %v2501
    %2503 = vdwg.mxu0
    %2504 = vmatpush.msra.mxu0 %v746
    %2505 = vmatpush.msra.mxu0 %v738
    %2506 = vmatpush.msra.mxu0 %v730
    %2507 = vmatpush.msra.mxu0 %v722
    %2508 = vmatpush.msra.mxu0 %v714
    %2509 = vmatpush.msra.mxu0 %v706
    %2510 = vmatpush.msra.mxu0 %v698
    %2511 = vmatpush.msra.mxu0 %v690
    %2512 = vmatpush.msra.mxu0 %v682
    %2513 = vmatpush.msra.mxu0 %v674
    %2514 = vmatpush.msra.mxu0 %v666
    %2515 = vmatpush.msra.mxu0 %v658
    %2516 = vmatpush.msra.mxu0 %v650
    %2517 = vmatpush.msra.mxu0 %v642
    %2518 = vmatpush.msra.mxu0 %v634
    %2519 = vmatpush.msra.mxu0 %v626
    %2520 = vmatmul.f32.gmra.mxu0 %v2267
    %v2521 = vpop.f32.mrf.mxu0
    %v2522 = vadd.f32 %v2502, %v2521
    %2523 = vdwg.mxu0
    %2524 = vmatpush.msra.mxu0 %v619
    %2525 = vmatpush.msra.mxu0 %v611
    %2526 = vmatpush.msra.mxu0 %v603
    %2527 = vmatpush.msra.mxu0 %v595
    %2528 = vmatpush.msra.mxu0 %v587
    %2529 = vmatpush.msra.mxu0 %v579
    %2530 = vmatpush.msra.mxu0 %v571
    %2531 = vmatpush.msra.mxu0 %v563
    %2532 = vmatpush.msra.mxu0 %v555
    %2533 = vmatpush.msra.mxu0 %v547
    %2534 = vmatpush.msra.mxu0 %v539
    %2535 = vmatpush.msra.mxu0 %v531
    %2536 = vmatpush.msra.mxu0 %v523
    %2537 = vmatpush.msra.mxu0 %v515
    %2538 = vmatpush.msra.mxu0 %v507
    %2539 = vmatpush.msra.mxu0 %v499
    %2540 = vmatmul.f32.gmra.mxu0 %v2266
    %v2541 = vpop.f32.mrf.mxu0
    %v2542 = vadd.f32 0.0, %v2541
    %2543 = vdwg.mxu0
    %2544 = vmatpush.msra.mxu0 %v747
    %2545 = vmatpush.msra.mxu0 %v739
    %2546 = vmatpush.msra.mxu0 %v731
    %2547 = vmatpush.msra.mxu0 %v723
    %2548 = vmatpush.msra.mxu0 %v715
    %2549 = vmatpush.msra.mxu0 %v707
    %2550 = vmatpush.msra.mxu0 %v699
    %2551 = vmatpush.msra.mxu0 %v691
    %2552 = vmatpush.msra.mxu0 %v683
    %2553 = vmatpush.msra.mxu0 %v675
    %2554 = vmatpush.msra.mxu0 %v667
    %2555 = vmatpush.msra.mxu0 %v659
    %2556 = vmatpush.msra.mxu0 %v651
    %2557 = vmatpush.msra.mxu0 %v643
    %2558 = vmatpush.msra.mxu0 %v635
    %2559 = vmatpush.msra.mxu0 %v627
    %2560 = vmatmul.f32.gmra.mxu0 %v2267
    %v2561 = vpop.f32.mrf.mxu0
    %v2562 = vadd.f32 %v2542, %v2561
    %2563 = vdwg.mxu0
    %2564 = vmatpush.msra.mxu0 %v620
    %2565 = vmatpush.msra.mxu0 %v612
    %2566 = vmatpush.msra.mxu0 %v604
    %2567 = vmatpush.msra.mxu0 %v596
    %2568 = vmatpush.msra.mxu0 %v588
    %2569 = vmatpush.msra.mxu0 %v580
    %2570 = vmatpush.msra.mxu0 %v572
    %2571 = vmatpush.msra.mxu0 %v564
    %2572 = vmatpush.msra.mxu0 %v556
    %2573 = vmatpush.msra.mxu0 %v548
    %2574 = vmatpush.msra.mxu0 %v540
    %2575 = vmatpush.msra.mxu0 %v532
    %2576 = vmatpush.msra.mxu0 %v524
    %2577 = vmatpush.msra.mxu0 %v516
    %2578 = vmatpush.msra.mxu0 %v508
    %2579 = vmatpush.msra.mxu0 %v500
    %2580 = vmatmul.f32.gmra.mxu0 %v2266
    %v2581 = vpop.f32.mrf.mxu0
    %v2582 = vadd.f32 0.0, %v2581
    %2583 = vdwg.mxu0
    %2584 = vmatpush.msra.mxu0 %v748
    %2585 = vmatpush.msra.mxu0 %v740
    %2586 = vmatpush.msra.mxu0 %v732
    %2587 = vmatpush.msra.mxu0 %v724
    %2588 = vmatpush.msra.mxu0 %v716
    %2589 = vmatpush.msra.mxu0 %v708
    %2590 = vmatpush.msra.mxu0 %v700
    %2591 = vmatpush.msra.mxu0 %v692
    %2592 = vmatpush.msra.mxu0 %v684
    %2593 = vmatpush.msra.mxu0 %v676
    %2594 = vmatpush.msra.mxu0 %v668
    %2595 = vmatpush.msra.mxu0 %v660
    %2596 = vmatpush.msra.mxu0 %v652
    %2597 = vmatpush.msra.mxu0 %v644
    %2598 = vmatpush.msra.mxu0 %v636
    %2599 = vmatpush.msra.mxu0 %v628
    %2600 = vmatmul.f32.gmra.mxu0 %v2267
    %v2601 = vpop.f32.mrf.mxu0
    %v2602 = vadd.f32 %v2582, %v2601
    %2603 = vdwg.mxu0
    %v2604 = vadd.f32 %v2276, %v2322
    %v2605 = vadd.f32 %v2277, %v2362
    %v2606 = vadd.f32 %v2278, %v2402
    %v2607 = vadd.f32 %v2279, %v2442
    %v2608 = vadd.f32 %v2280, %v2482
    %v2609 = vadd.f32 %v2281, %v2522
    %v2610 = vadd.f32 %v2282, %v2562
    %v2611 = vadd.f32 %v2283, %v2602
    %v2612 = vmul.f32 %v2604, 0.5
    %v2613 = vmul.f32 %v2605, 0.5
    %v2614 = vmul.f32 %v2606, 0.5
    %v2615 = vmul.f32 %v2607, 0.5
    %v2616 = vtanh.pop %v2612
    %v2617 = vtanh.pop %v2613
    %v2618 = vtanh.pop %v2614
    %v2619 = vtanh.pop %v2615
    %v2620 = vmul.f32 %v2616, 0.5
    %v2621 = vmul.f32 %v2617, 0.5
    %v2622 = vmul.f32 %v2618, 0.5
    %v2623 = vmul.f32 %v2619, 0.5
    %v2624 = vadd.f32 %v2620, 0.5
    %v2625 = vadd.f32 %v2621, 0.5
    %v2626 = vadd.f32 %v2622, 0.5
    %v2627 = vadd.f32 %v2623, 0.5
    %v2628 = vtanh.pop %v2608
    %v2629 = vtanh.pop %v2609
    %v2630 = vmul.f32 %v2610, 0.5
    %v2631 = vmul.f32 %v2611, 0.5
    %v2632 = vtanh.pop %v2630
    %v2633 = vtanh.pop %v2631
    %v2634 = vmul.f32 %v2632, 0.5
    %v2635 = vmul.f32 %v2633, 0.5
    %v2636 = vadd.f32 %v2634, 0.5
    %v2637 = vadd.f32 %v2635, 0.5
    %v2638 = vmul.f32 %v2626, %v2262
    %v2639 = vmul.f32 %v2627, %v2263
    %v2640 = vmul.f32 %v2624, %v2628
    %v2641 = vmul.f32 %v2625, %v2629
    %v2642 = vadd.f32 %v2638, %v2640
    %v2643 = vadd.f32 %v2639, %v2641
    %v2644 = vtanh.pop %v2642
    %v2645 = vtanh.pop %v2643
    %v2646 = vmul.f32 %v2636, %v2644
    %v2647 = vmul.f32 %v2637, %v2645
    %s2648 = smul.u32 4, 2
    %s2649 = smul.addr %s2648, 8
    %s2650 = scalar_lea.vmem [#allocation8], %s2649
    %2651 = vst [vmem:[%s2650] sm:$0xff] %v2646
    %2652 = vst [vmem:[%s2650 + $0x8] sm:$0xff] %v2647
    %s2653 = smul.u32 5, 8
    %s2654 = smul.addr %s2653, 8
    %s2655 = scalar_lea.vmem [#allocation2], %s2654
    %v2656 = vld [vmem:[%s2655] sm:$0xff]
    %v2657 = vld [vmem:[%s2655 + $0x8] sm:$0xff]
    %v2658 = vld [vmem:[%s2655 + $0x10] sm:$0xff]
    %v2659 = vld [vmem:[%s2655 + $0x18] sm:$0xff]
    %v2660 = vld [vmem:[%s2655 + $0x20] sm:$0xff]
    %v2661 = vld [vmem:[%s2655 + $0x28] sm:$0xff]
    %v2662 = vld [vmem:[%s2655 + $0x30] sm:$0xff]
    %v2663 = vld [vmem:[%s2655 + $0x38] sm:$0xff]
    %2664 = vmatpush.msra.mxu0 %v613
    %2665 = vmatpush.msra.mxu0 %v605
    %2666 = vmatpush.msra.mxu0 %v597
    %2667 = vmatpush.msra.mxu0 %v589
    %2668 = vmatpush.msra.mxu0 %v581
    %2669 = vmatpush.msra.mxu0 %v573
    %2670 = vmatpush.msra.mxu0 %v565
    %2671 = vmatpush.msra.mxu0 %v557
    %2672 = vmatpush.msra.mxu0 %v549
    %2673 = vmatpush.msra.mxu0 %v541
    %2674 = vmatpush.msra.mxu0 %v533
    %2675 = vmatpush.msra.mxu0 %v525
    %2676 = vmatpush.msra.mxu0 %v517
    %2677 = vmatpush.msra.mxu0 %v509
    %2678 = vmatpush.msra.mxu0 %v501
    %2679 = vmatpush.msra.mxu0 %v493
    %2680 = vmatmul.f32.gmra.mxu0 %v2646
    %v2681 = vpop.f32.mrf.mxu0
    %v2682 = vadd.f32 0.0, %v2681
    %2683 = vdwg.mxu0
    %2684 = vmatpush.msra.mxu0 %v741
    %2685 = vmatpush.msra.mxu0 %v733
    %2686 = vmatpush.msra.mxu0 %v725
    %2687 = vmatpush.msra.mxu0 %v717
    %2688 = vmatpush.msra.mxu0 %v709
    %2689 = vmatpush.msra.mxu0 %v701
    %2690 = vmatpush.msra.mxu0 %v693
    %2691 = vmatpush.msra.mxu0 %v685
    %2692 = vmatpush.msra.mxu0 %v677
    %2693 = vmatpush.msra.mxu0 %v669
    %2694 = vmatpush.msra.mxu0 %v661
    %2695 = vmatpush.msra.mxu0 %v653
    %2696 = vmatpush.msra.mxu0 %v645
    %2697 = vmatpush.msra.mxu0 %v637
    %2698 = vmatpush.msra.mxu0 %v629
    %2699 = vmatpush.msra.mxu0 %v621
    %2700 = vmatmul.f32.gmra.mxu0 %v2647
    %v2701 = vpop.f32.mrf.mxu0
    %v2702 = vadd.f32 %v2682, %v2701
    %2703 = vdwg.mxu0
    %2704 = vmatpush.msra.mxu0 %v614
    %2705 = vmatpush.msra.mxu0 %v606
    %2706 = vmatpush.msra.mxu0 %v598
    %2707 = vmatpush.msra.mxu0 %v590
    %2708 = vmatpush.msra.mxu0 %v582
    %2709 = vmatpush.msra.mxu0 %v574
    %2710 = vmatpush.msra.mxu0 %v566
    %2711 = vmatpush.msra.mxu0 %v558
    %2712 = vmatpush.msra.mxu0 %v550
    %2713 = vmatpush.msra.mxu0 %v542
    %2714 = vmatpush.msra.mxu0 %v534
    %2715 = vmatpush.msra.mxu0 %v526
    %2716 = vmatpush.msra.mxu0 %v518
    %2717 = vmatpush.msra.mxu0 %v510
    %2718 = vmatpush.msra.mxu0 %v502
    %2719 = vmatpush.msra.mxu0 %v494
    %2720 = vmatmul.f32.gmra.mxu0 %v2646
    %v2721 = vpop.f32.mrf.mxu0
    %v2722 = vadd.f32 0.0, %v2721
    %2723 = vdwg.mxu0
    %2724 = vmatpush.msra.mxu0 %v742
    %2725 = vmatpush.msra.mxu0 %v734
    %2726 = vmatpush.msra.mxu0 %v726
    %2727 = vmatpush.msra.mxu0 %v718
    %2728 = vmatpush.msra.mxu0 %v710
    %2729 = vmatpush.msra.mxu0 %v702
    %2730 = vmatpush.msra.mxu0 %v694
    %2731 = vmatpush.msra.mxu0 %v686
    %2732 = vmatpush.msra.mxu0 %v678
    %2733 = vmatpush.msra.mxu0 %v670
    %2734 = vmatpush.msra.mxu0 %v662
    %2735 = vmatpush.msra.mxu0 %v654
    %2736 = vmatpush.msra.mxu0 %v646
    %2737 = vmatpush.msra.mxu0 %v638
    %2738 = vmatpush.msra.mxu0 %v630
    %2739 = vmatpush.msra.mxu0 %v622
    %2740 = vmatmul.f32.gmra.mxu0 %v2647
    %v2741 = vpop.f32.mrf.mxu0
    %v2742 = vadd.f32 %v2722, %v2741
    %2743 = vdwg.mxu0
    %2744 = vmatpush.msra.mxu0 %v615
    %2745 = vmatpush.msra.mxu0 %v607
    %2746 = vmatpush.msra.mxu0 %v599
    %2747 = vmatpush.msra.mxu0 %v591
    %2748 = vmatpush.msra.mxu0 %v583
    %2749 = vmatpush.msra.mxu0 %v575
    %2750 = vmatpush.msra.mxu0 %v567
    %2751 = vmatpush.msra.mxu0 %v559
    %2752 = vmatpush.msra.mxu0 %v551
    %2753 = vmatpush.msra.mxu0 %v543
    %2754 = vmatpush.msra.mxu0 %v535
    %2755 = vmatpush.msra.mxu0 %v527
    %2756 = vmatpush.msra.mxu0 %v519
    %2757 = vmatpush.msra.mxu0 %v511
    %2758 = vmatpush.msra.mxu0 %v503
    %2759 = vmatpush.msra.mxu0 %v495
    %2760 = vmatmul.f32.gmra.mxu0 %v2646
    %v2761 = vpop.f32.mrf.mxu0
    %v2762 = vadd.f32 0.0, %v2761
    %2763 = vdwg.mxu0
    %2764 = vmatpush.msra.mxu0 %v743
    %2765 = vmatpush.msra.mxu0 %v735
    %2766 = vmatpush.msra.mxu0 %v727
    %2767 = vmatpush.msra.mxu0 %v719
    %2768 = vmatpush.msra.mxu0 %v711
    %2769 = vmatpush.msra.mxu0 %v703
    %2770 = vmatpush.msra.mxu0 %v695
    %2771 = vmatpush.msra.mxu0 %v687
    %2772 = vmatpush.msra.mxu0 %v679
    %2773 = vmatpush.msra.mxu0 %v671
    %2774 = vmatpush.msra.mxu0 %v663
    %2775 = vmatpush.msra.mxu0 %v655
    %2776 = vmatpush.msra.mxu0 %v647
    %2777 = vmatpush.msra.mxu0 %v639
    %2778 = vmatpush.msra.mxu0 %v631
    %2779 = vmatpush.msra.mxu0 %v623
    %2780 = vmatmul.f32.gmra.mxu0 %v2647
    %v2781 = vpop.f32.mrf.mxu0
    %v2782 = vadd.f32 %v2762, %v2781
    %2783 = vdwg.mxu0
    %2784 = vmatpush.msra.mxu0 %v616
    %2785 = vmatpush.msra.mxu0 %v608
    %2786 = vmatpush.msra.mxu0 %v600
    %2787 = vmatpush.msra.mxu0 %v592
    %2788 = vmatpush.msra.mxu0 %v584
    %2789 = vmatpush.msra.mxu0 %v576
    %2790 = vmatpush.msra.mxu0 %v568
    %2791 = vmatpush.msra.mxu0 %v560
    %2792 = vmatpush.msra.mxu0 %v552
    %2793 = vmatpush.msra.mxu0 %v544
    %2794 = vmatpush.msra.mxu0 %v536
    %2795 = vmatpush.msra.mxu0 %v528
    %2796 = vmatpush.msra.mxu0 %v520
    %2797 = vmatpush.msra.mxu0 %v512
    %2798 = vmatpush.msra.mxu0 %v504
    %2799 = vmatpush.msra.mxu0 %v496
    %2800 = vmatmul.f32.gmra.mxu0 %v2646
    %v2801 = vpop.f32.mrf.mxu0
    %v2802 = vadd.f32 0.0, %v2801
    %2803 = vdwg.mxu0
    %2804 = vmatpush.msra.mxu0 %v744
    %2805 = vmatpush.msra.mxu0 %v736
    %2806 = vmatpush.msra.mxu0 %v728
    %2807 = vmatpush.msra.mxu0 %v720
    %2808 = vmatpush.msra.mxu0 %v712
    %2809 = vmatpush.msra.mxu0 %v704
    %2810 = vmatpush.msra.mxu0 %v696
    %2811 = vmatpush.msra.mxu0 %v688
    %2812 = vmatpush.msra.mxu0 %v680
    %2813 = vmatpush.msra.mxu0 %v672
    %2814 = vmatpush.msra.mxu0 %v664
    %2815 = vmatpush.msra.mxu0 %v656
    %2816 = vmatpush.msra.mxu0 %v648
    %2817 = vmatpush.msra.mxu0 %v640
    %2818 = vmatpush.msra.mxu0 %v632
    %2819 = vmatpush.msra.mxu0 %v624
    %2820 = vmatmul.f32.gmra.mxu0 %v2647
    %v2821 = vpop.f32.mrf.mxu0
    %v2822 = vadd.f32 %v2802, %v2821
    %2823 = vdwg.mxu0
    %2824 = vmatpush.msra.mxu0 %v617
    %2825 = vmatpush.msra.mxu0 %v609
    %2826 = vmatpush.msra.mxu0 %v601
    %2827 = vmatpush.msra.mxu0 %v593
    %2828 = vmatpush.msra.mxu0 %v585
    %2829 = vmatpush.msra.mxu0 %v577
    %2830 = vmatpush.msra.mxu0 %v569
    %2831 = vmatpush.msra.mxu0 %v561
    %2832 = vmatpush.msra.mxu0 %v553
    %2833 = vmatpush.msra.mxu0 %v545
    %2834 = vmatpush.msra.mxu0 %v537
    %2835 = vmatpush.msra.mxu0 %v529
    %2836 = vmatpush.msra.mxu0 %v521
    %2837 = vmatpush.msra.mxu0 %v513
    %2838 = vmatpush.msra.mxu0 %v505
    %2839 = vmatpush.msra.mxu0 %v497
    %2840 = vmatmul.f32.gmra.mxu0 %v2646
    %v2841 = vpop.f32.mrf.mxu0
    %v2842 = vadd.f32 0.0, %v2841
    %2843 = vdwg.mxu0
    %2844 = vmatpush.msra.mxu0 %v745
    %2845 = vmatpush.msra.mxu0 %v737
    %2846 = vmatpush.msra.mxu0 %v729
    %2847 = vmatpush.msra.mxu0 %v721
    %2848 = vmatpush.msra.mxu0 %v713
    %2849 = vmatpush.msra.mxu0 %v705
    %2850 = vmatpush.msra.mxu0 %v697
    %2851 = vmatpush.msra.mxu0 %v689
    %2852 = vmatpush.msra.mxu0 %v681
    %2853 = vmatpush.msra.mxu0 %v673
    %2854 = vmatpush.msra.mxu0 %v665
    %2855 = vmatpush.msra.mxu0 %v657
    %2856 = vmatpush.msra.mxu0 %v649
    %2857 = vmatpush.msra.mxu0 %v641
    %2858 = vmatpush.msra.mxu0 %v633
    %2859 = vmatpush.msra.mxu0 %v625
    %2860 = vmatmul.f32.gmra.mxu0 %v2647
    %v2861 = vpop.f32.mrf.mxu0
    %v2862 = vadd.f32 %v2842, %v2861
    %2863 = vdwg.mxu0
    %2864 = vmatpush.msra.mxu0 %v618
    %2865 = vmatpush.msra.mxu0 %v610
    %2866 = vmatpush.msra.mxu0 %v602
    %2867 = vmatpush.msra.mxu0 %v594
    %2868 = vmatpush.msra.mxu0 %v586
    %2869 = vmatpush.msra.mxu0 %v578
    %2870 = vmatpush.msra.mxu0 %v570
    %2871 = vmatpush.msra.mxu0 %v562
    %2872 = vmatpush.msra.mxu0 %v554
    %2873 = vmatpush.msra.mxu0 %v546
    %2874 = vmatpush.msra.mxu0 %v538
    %2875 = vmatpush.msra.mxu0 %v530
    %2876 = vmatpush.msra.mxu0 %v522
    %2877 = vmatpush.msra.mxu0 %v514
    %2878 = vmatpush.msra.mxu0 %v506
    %2879 = vmatpush.msra.mxu0 %v498
    %2880 = vmatmul.f32.gmra.mxu0 %v2646
    %v2881 = vpop.f32.mrf.mxu0
    %v2882 = vadd.f32 0.0, %v2881
    %2883 = vdwg.mxu0
    %2884 = vmatpush.msra.mxu0 %v746
    %2885 = vmatpush.msra.mxu0 %v738
    %2886 = vmatpush.msra.mxu0 %v730
    %2887 = vmatpush.msra.mxu0 %v722
    %2888 = vmatpush.msra.mxu0 %v714
    %2889 = vmatpush.msra.mxu0 %v706
    %2890 = vmatpush.msra.mxu0 %v698
    %2891 = vmatpush.msra.mxu0 %v690
    %2892 = vmatpush.msra.mxu0 %v682
    %2893 = vmatpush.msra.mxu0 %v674
    %2894 = vmatpush.msra.mxu0 %v666
    %2895 = vmatpush.msra.mxu0 %v658
    %2896 = vmatpush.msra.mxu0 %v650
    %2897 = vmatpush.msra.mxu0 %v642
    %2898 = vmatpush.msra.mxu0 %v634
    %2899 = vmatpush.msra.mxu0 %v626
    %2900 = vmatmul.f32.gmra.mxu0 %v2647
    %v2901 = vpop.f32.mrf.mxu0
    %v2902 = vadd.f32 %v2882, %v2901
    %2903 = vdwg.mxu0
    %2904 = vmatpush.msra.mxu0 %v619
    %2905 = vmatpush.msra.mxu0 %v611
    %2906 = vmatpush.msra.mxu0 %v603
    %2907 = vmatpush.msra.mxu0 %v595
    %2908 = vmatpush.msra.mxu0 %v587
    %2909 = vmatpush.msra.mxu0 %v579
    %2910 = vmatpush.msra.mxu0 %v571
    %2911 = vmatpush.msra.mxu0 %v563
    %2912 = vmatpush.msra.mxu0 %v555
    %2913 = vmatpush.msra.mxu0 %v547
    %2914 = vmatpush.msra.mxu0 %v539
    %2915 = vmatpush.msra.mxu0 %v531
    %2916 = vmatpush.msra.mxu0 %v523
    %2917 = vmatpush.msra.mxu0 %v515
    %2918 = vmatpush.msra.mxu0 %v507
    %2919 = vmatpush.msra.mxu0 %v499
    %2920 = vmatmul.f32.gmra.mxu0 %v2646
    %v2921 = vpop.f32.mrf.mxu0
    %v2922 = vadd.f32 0.0, %v2921
    %2923 = vdwg.mxu0
    %2924 = vmatpush.msra.mxu0 %v747
    %2925 = vmatpush.msra.mxu0 %v739
    %2926 = vmatpush.msra.mxu0 %v731
    %2927 = vmatpush.msra.mxu0 %v723
    %2928 = vmatpush.msra.mxu0 %v715
    %2929 = vmatpush.msra.mxu0 %v707
    %2930 = vmatpush.msra.mxu0 %v699
    %2931 = vmatpush.msra.mxu0 %v691
    %2932 = vmatpush.msra.mxu0 %v683
    %2933 = vmatpush.msra.mxu0 %v675
    %2934 = vmatpush.msra.mxu0 %v667
    %2935 = vmatpush.msra.mxu0 %v659
    %2936 = vmatpush.msra.mxu0 %v651
    %2937 = vmatpush.msra.mxu0 %v643
    %2938 = vmatpush.msra.mxu0 %v635
    %2939 = vmatpush.msra.mxu0 %v627
    %2940 = vmatmul.f32.gmra.mxu0 %v2647
    %v2941 = vpop.f32.mrf.mxu0
    %v2942 = vadd.f32 %v2922, %v2941
    %2943 = vdwg.mxu0
    %2944 = vmatpush.msra.mxu0 %v620
    %2945 = vmatpush.msra.mxu0 %v612
    %2946 = vmatpush.msra.mxu0 %v604
    %2947 = vmatpush.msra.mxu0 %v596
    %2948 = vmatpush.msra.mxu0 %v588
    %2949 = vmatpush.msra.mxu0 %v580
    %2950 = vmatpush.msra.mxu0 %v572
    %2951 = vmatpush.msra.mxu0 %v564
    %2952 = vmatpush.msra.mxu0 %v556
    %2953 = vmatpush.msra.mxu0 %v548
    %2954 = vmatpush.msra.mxu0 %v540
    %2955 = vmatpush.msra.mxu0 %v532
    %2956 = vmatpush.msra.mxu0 %v524
    %2957 = vmatpush.msra.mxu0 %v516
    %2958 = vmatpush.msra.mxu0 %v508
    %2959 = vmatpush.msra.mxu0 %v500
    %2960 = vmatmul.f32.gmra.mxu0 %v2646
    %v2961 = vpop.f32.mrf.mxu0
    %v2962 = vadd.f32 0.0, %v2961
    %2963 = vdwg.mxu0
    %2964 = vmatpush.msra.mxu0 %v748
    %2965 = vmatpush.msra.mxu0 %v740
    %2966 = vmatpush.msra.mxu0 %v732
    %2967 = vmatpush.msra.mxu0 %v724
    %2968 = vmatpush.msra.mxu0 %v716
    %2969 = vmatpush.msra.mxu0 %v708
    %2970 = vmatpush.msra.mxu0 %v700
    %2971 = vmatpush.msra.mxu0 %v692
    %2972 = vmatpush.msra.mxu0 %v684
    %2973 = vmatpush.msra.mxu0 %v676
    %2974 = vmatpush.msra.mxu0 %v668
    %2975 = vmatpush.msra.mxu0 %v660
    %2976 = vmatpush.msra.mxu0 %v652
    %2977 = vmatpush.msra.mxu0 %v644
    %2978 = vmatpush.msra.mxu0 %v636
    %2979 = vmatpush.msra.mxu0 %v628
    %2980 = vmatmul.f32.gmra.mxu0 %v2647
    %v2981 = vpop.f32.mrf.mxu0
    %v2982 = vadd.f32 %v2962, %v2981
    %2983 = vdwg.mxu0
    %v2984 = vadd.f32 %v2656, %v2702
    %v2985 = vadd.f32 %v2657, %v2742
    %v2986 = vadd.f32 %v2658, %v2782
    %v2987 = vadd.f32 %v2659, %v2822
    %v2988 = vadd.f32 %v2660, %v2862
    %v2989 = vadd.f32 %v2661, %v2902
    %v2990 = vadd.f32 %v2662, %v2942
    %v2991 = vadd.f32 %v2663, %v2982
    %v2992 = vmul.f32 %v2984, 0.5
    %v2993 = vmul.f32 %v2985, 0.5
    %v2994 = vmul.f32 %v2986, 0.5
    %v2995 = vmul.f32 %v2987, 0.5
    %v2996 = vtanh.pop %v2992
    %v2997 = vtanh.pop %v2993
    %v2998 = vtanh.pop %v2994
    %v2999 = vtanh.pop %v2995
    %v3000 = vmul.f32 %v2996, 0.5
    %v3001 = vmul.f32 %v2997, 0.5
    %v3002 = vmul.f32 %v2998, 0.5
    %v3003 = vmul.f32 %v2999, 0.5
    %v3004 = vadd.f32 %v3000, 0.5
    %v3005 = vadd.f32 %v3001, 0.5
    %v3006 = vadd.f32 %v3002, 0.5
    %v3007 = vadd.f32 %v3003, 0.5
    %v3008 = vtanh.pop %v2988
    %v3009 = vtanh.pop %v2989
    %v3010 = vmul.f32 %v2990, 0.5
    %v3011 = vmul.f32 %v2991, 0.5
    %v3012 = vtanh.pop %v3010
    %v3013 = vtanh.pop %v3011
    %v3014 = vmul.f32 %v3012, 0.5
    %v3015 = vmul.f32 %v3013, 0.5
    %v3016 = vadd.f32 %v3014, 0.5
    %v3017 = vadd.f32 %v3015, 0.5
    %v3018 = vmul.f32 %v3006, %v2642
    %v3019 = vmul.f32 %v3007, %v2643
    %v3020 = vmul.f32 %v3004, %v3008
    %v3021 = vmul.f32 %v3005, %v3009
    %v3022 = vadd.f32 %v3018, %v3020
    %v3023 = vadd.f32 %v3019, %v3021
    %v3024 = vtanh.pop %v3022
    %v3025 = vtanh.pop %v3023
    %v3026 = vmul.f32 %v3016, %v3024
    %v3027 = vmul.f32 %v3017, %v3025
    %s3028 = smul.u32 5, 2
    %s3029 = smul.addr %s3028, 8
    %s3030 = scalar_lea.vmem [#allocation8], %s3029
    %3031 = vst [vmem:[%s3030] sm:$0xff] %v3026
    %3032 = vst [vmem:[%s3030 + $0x8] sm:$0xff] %v3027
    %s3033 = smul.u32 6, 8
    %s3034 = smul.addr %s3033, 8
    %s3035 = scalar_lea.vmem [#allocation2], %s3034
    %v3036 = vld [vmem:[%s3035] sm:$0xff]
    %v3037 = vld [vmem:[%s3035 + $0x8] sm:$0xff]
    %v3038 = vld [vmem:[%s3035 + $0x10] sm:$0xff]
    %v3039 = vld [vmem:[%s3035 + $0x18] sm:$0xff]
    %v3040 = vld [vmem:[%s3035 + $0x20] sm:$0xff]
    %v3041 = vld [vmem:[%s3035 + $0x28] sm:$0xff]
    %v3042 = vld [vmem:[%s3035 + $0x30] sm:$0xff]
    %v3043 = vld [vmem:[%s3035 + $0x38] sm:$0xff]
    %3044 = vmatpush.msra.mxu0 %v613
    %3045 = vmatpush.msra.mxu0 %v605
    %3046 = vmatpush.msra.mxu0 %v597
    %3047 = vmatpush.msra.mxu0 %v589
    %3048 = vmatpush.msra.mxu0 %v581
    %3049 = vmatpush.msra.mxu0 %v573
    %3050 = vmatpush.msra.mxu0 %v565
    %3051 = vmatpush.msra.mxu0 %v557
    %3052 = vmatpush.msra.mxu0 %v549
    %3053 = vmatpush.msra.mxu0 %v541
    %3054 = vmatpush.msra.mxu0 %v533
    %3055 = vmatpush.msra.mxu0 %v525
    %3056 = vmatpush.msra.mxu0 %v517
    %3057 = vmatpush.msra.mxu0 %v509
    %3058 = vmatpush.msra.mxu0 %v501
    %3059 = vmatpush.msra.mxu0 %v493
    %3060 = vmatmul.f32.gmra.mxu0 %v3026
    %v3061 = vpop.f32.mrf.mxu0
    %v3062 = vadd.f32 0.0, %v3061
    %3063 = vdwg.mxu0
    %3064 = vmatpush.msra.mxu0 %v741
    %3065 = vmatpush.msra.mxu0 %v733
    %3066 = vmatpush.msra.mxu0 %v725
    %3067 = vmatpush.msra.mxu0 %v717
    %3068 = vmatpush.msra.mxu0 %v709
    %3069 = vmatpush.msra.mxu0 %v701
    %3070 = vmatpush.msra.mxu0 %v693
    %3071 = vmatpush.msra.mxu0 %v685
    %3072 = vmatpush.msra.mxu0 %v677
    %3073 = vmatpush.msra.mxu0 %v669
    %3074 = vmatpush.msra.mxu0 %v661
    %3075 = vmatpush.msra.mxu0 %v653
    %3076 = vmatpush.msra.mxu0 %v645
    %3077 = vmatpush.msra.mxu0 %v637
    %3078 = vmatpush.msra.mxu0 %v629
    %3079 = vmatpush.msra.mxu0 %v621
    %3080 = vmatmul.f32.gmra.mxu0 %v3027
    %v3081 = vpop.f32.mrf.mxu0
    %v3082 = vadd.f32 %v3062, %v3081
    %3083 = vdwg.mxu0
    %3084 = vmatpush.msra.mxu0 %v614
    %3085 = vmatpush.msra.mxu0 %v606
    %3086 = vmatpush.msra.mxu0 %v598
    %3087 = vmatpush.msra.mxu0 %v590
    %3088 = vmatpush.msra.mxu0 %v582
    %3089 = vmatpush.msra.mxu0 %v574
    %3090 = vmatpush.msra.mxu0 %v566
    %3091 = vmatpush.msra.mxu0 %v558
    %3092 = vmatpush.msra.mxu0 %v550
    %3093 = vmatpush.msra.mxu0 %v542
    %3094 = vmatpush.msra.mxu0 %v534
    %3095 = vmatpush.msra.mxu0 %v526
    %3096 = vmatpush.msra.mxu0 %v518
    %3097 = vmatpush.msra.mxu0 %v510
    %3098 = vmatpush.msra.mxu0 %v502
    %3099 = vmatpush.msra.mxu0 %v494
    %3100 = vmatmul.f32.gmra.mxu0 %v3026
    %v3101 = vpop.f32.mrf.mxu0
    %v3102 = vadd.f32 0.0, %v3101
    %3103 = vdwg.mxu0
    %3104 = vmatpush.msra.mxu0 %v742
    %3105 = vmatpush.msra.mxu0 %v734
    %3106 = vmatpush.msra.mxu0 %v726
    %3107 = vmatpush.msra.mxu0 %v718
    %3108 = vmatpush.msra.mxu0 %v710
    %3109 = vmatpush.msra.mxu0 %v702
    %3110 = vmatpush.msra.mxu0 %v694
    %3111 = vmatpush.msra.mxu0 %v686
    %3112 = vmatpush.msra.mxu0 %v678
    %3113 = vmatpush.msra.mxu0 %v670
    %3114 = vmatpush.msra.mxu0 %v662
    %3115 = vmatpush.msra.mxu0 %v654
    %3116 = vmatpush.msra.mxu0 %v646
    %3117 = vmatpush.msra.mxu0 %v638
    %3118 = vmatpush.msra.mxu0 %v630
    %3119 = vmatpush.msra.mxu0 %v622
    %3120 = vmatmul.f32.gmra.mxu0 %v3027
    %v3121 = vpop.f32.mrf.mxu0
    %v3122 = vadd.f32 %v3102, %v3121
    %3123 = vdwg.mxu0
    %3124 = vmatpush.msra.mxu0 %v615
    %3125 = vmatpush.msra.mxu0 %v607
    %3126 = vmatpush.msra.mxu0 %v599
    %3127 = vmatpush.msra.mxu0 %v591
    %3128 = vmatpush.msra.mxu0 %v583
    %3129 = vmatpush.msra.mxu0 %v575
    %3130 = vmatpush.msra.mxu0 %v567
    %3131 = vmatpush.msra.mxu0 %v559
    %3132 = vmatpush.msra.mxu0 %v551
    %3133 = vmatpush.msra.mxu0 %v543
    %3134 = vmatpush.msra.mxu0 %v535
    %3135 = vmatpush.msra.mxu0 %v527
    %3136 = vmatpush.msra.mxu0 %v519
    %3137 = vmatpush.msra.mxu0 %v511
    %3138 = vmatpush.msra.mxu0 %v503
    %3139 = vmatpush.msra.mxu0 %v495
    %3140 = vmatmul.f32.gmra.mxu0 %v3026
    %v3141 = vpop.f32.mrf.mxu0
    %v3142 = vadd.f32 0.0, %v3141
    %3143 = vdwg.mxu0
    %3144 = vmatpush.msra.mxu0 %v743
    %3145 = vmatpush.msra.mxu0 %v735
    %3146 = vmatpush.msra.mxu0 %v727
    %3147 = vmatpush.msra.mxu0 %v719
    %3148 = vmatpush.msra.mxu0 %v711
    %3149 = vmatpush.msra.mxu0 %v703
    %3150 = vmatpush.msra.mxu0 %v695
    %3151 = vmatpush.msra.mxu0 %v687
    %3152 = vmatpush.msra.mxu0 %v679
    %3153 = vmatpush.msra.mxu0 %v671
    %3154 = vmatpush.msra.mxu0 %v663
    %3155 = vmatpush.msra.mxu0 %v655
    %3156 = vmatpush.msra.mxu0 %v647
    %3157 = vmatpush.msra.mxu0 %v639
    %3158 = vmatpush.msra.mxu0 %v631
    %3159 = vmatpush.msra.mxu0 %v623
    %3160 = vmatmul.f32.gmra.mxu0 %v3027
    %v3161 = vpop.f32.mrf.mxu0
    %v3162 = vadd.f32 %v3142, %v3161
    %3163 = vdwg.mxu0
    %3164 = vmatpush.msra.mxu0 %v616
    %3165 = vmatpush.msra.mxu0 %v608
    %3166 = vmatpush.msra.mxu0 %v600
    %3167 = vmatpush.msra.mxu0 %v592
    %3168 = vmatpush.msra.mxu0 %v584
    %3169 = vmatpush.msra.mxu0 %v576
    %3170 = vmatpush.msra.mxu0 %v568
    %3171 = vmatpush.msra.mxu0 %v560
    %3172 = vmatpush.msra.mxu0 %v552
    %3173 = vmatpush.msra.mxu0 %v544
    %3174 = vmatpush.msra.mxu0 %v536
    %3175 = vmatpush.msra.mxu0 %v528
    %3176 = vmatpush.msra.mxu0 %v520
    %3177 = vmatpush.msra.mxu0 %v512
    %3178 = vmatpush.msra.mxu0 %v504
    %3179 = vmatpush.msra.mxu0 %v496
    %3180 = vmatmul.f32.gmra.mxu0 %v3026
    %v3181 = vpop.f32.mrf.mxu0
    %v3182 = vadd.f32 0.0, %v3181
    %3183 = vdwg.mxu0
    %3184 = vmatpush.msra.mxu0 %v744
    %3185 = vmatpush.msra.mxu0 %v736
    %3186 = vmatpush.msra.mxu0 %v728
    %3187 = vmatpush.msra.mxu0 %v720
    %3188 = vmatpush.msra.mxu0 %v712
    %3189 = vmatpush.msra.mxu0 %v704
    %3190 = vmatpush.msra.mxu0 %v696
    %3191 = vmatpush.msra.mxu0 %v688
    %3192 = vmatpush.msra.mxu0 %v680
    %3193 = vmatpush.msra.mxu0 %v672
    %3194 = vmatpush.msra.mxu0 %v664
    %3195 = vmatpush.msra.mxu0 %v656
    %3196 = vmatpush.msra.mxu0 %v648
    %3197 = vmatpush.msra.mxu0 %v640
    %3198 = vmatpush.msra.mxu0 %v632
    %3199 = vmatpush.msra.mxu0 %v624
    %3200 = vmatmul.f32.gmra.mxu0 %v3027
    %v3201 = vpop.f32.mrf.mxu0
    %v3202 = vadd.f32 %v3182, %v3201
    %3203 = vdwg.mxu0
    %3204 = vmatpush.msra.mxu0 %v617
    %3205 = vmatpush.msra.mxu0 %v609
    %3206 = vmatpush.msra.mxu0 %v601
    %3207 = vmatpush.msra.mxu0 %v593
    %3208 = vmatpush.msra.mxu0 %v585
    %3209 = vmatpush.msra.mxu0 %v577
    %3210 = vmatpush.msra.mxu0 %v569
    %3211 = vmatpush.msra.mxu0 %v561
    %3212 = vmatpush.msra.mxu0 %v553
    %3213 = vmatpush.msra.mxu0 %v545
    %3214 = vmatpush.msra.mxu0 %v537
    %3215 = vmatpush.msra.mxu0 %v529
    %3216 = vmatpush.msra.mxu0 %v521
    %3217 = vmatpush.msra.mxu0 %v513
    %3218 = vmatpush.msra.mxu0 %v505
    %3219 = vmatpush.msra.mxu0 %v497
    %3220 = vmatmul.f32.gmra.mxu0 %v3026
    %v3221 = vpop.f32.mrf.mxu0
    %v3222 = vadd.f32 0.0, %v3221
    %3223 = vdwg.mxu0
    %3224 = vmatpush.msra.mxu0 %v745
    %3225 = vmatpush.msra.mxu0 %v737
    %3226 = vmatpush.msra.mxu0 %v729
    %3227 = vmatpush.msra.mxu0 %v721
    %3228 = vmatpush.msra.mxu0 %v713
    %3229 = vmatpush.msra.mxu0 %v705
    %3230 = vmatpush.msra.mxu0 %v697
    %3231 = vmatpush.msra.mxu0 %v689
    %3232 = vmatpush.msra.mxu0 %v681
    %3233 = vmatpush.msra.mxu0 %v673
    %3234 = vmatpush.msra.mxu0 %v665
    %3235 = vmatpush.msra.mxu0 %v657
    %3236 = vmatpush.msra.mxu0 %v649
    %3237 = vmatpush.msra.mxu0 %v641
    %3238 = vmatpush.msra.mxu0 %v633
    %3239 = vmatpush.msra.mxu0 %v625
    %3240 = vmatmul.f32.gmra.mxu0 %v3027
    %v3241 = vpop.f32.mrf.mxu0
    %v3242 = vadd.f32 %v3222, %v3241
    %3243 = vdwg.mxu0
    %3244 = vmatpush.msra.mxu0 %v618
    %3245 = vmatpush.msra.mxu0 %v610
    %3246 = vmatpush.msra.mxu0 %v602
    %3247 = vmatpush.msra.mxu0 %v594
    %3248 = vmatpush.msra.mxu0 %v586
    %3249 = vmatpush.msra.mxu0 %v578
    %3250 = vmatpush.msra.mxu0 %v570
    %3251 = vmatpush.msra.mxu0 %v562
    %3252 = vmatpush.msra.mxu0 %v554
    %3253 = vmatpush.msra.mxu0 %v546
    %3254 = vmatpush.msra.mxu0 %v538
    %3255 = vmatpush.msra.mxu0 %v530
    %3256 = vmatpush.msra.mxu0 %v522
    %3257 = vmatpush.msra.mxu0 %v514
    %3258 = vmatpush.msra.mxu0 %v506
    %3259 = vmatpush.msra.mxu0 %v498
    %3260 = vmatmul.f32.gmra.mxu0 %v3026
    %v3261 = vpop.f32.mrf.mxu0
    %v3262 = vadd.f32 0.0, %v3261
    %3263 = vdwg.mxu0
    %3264 = vmatpush.msra.mxu0 %v746
    %3265 = vmatpush.msra.mxu0 %v738
    %3266 = vmatpush.msra.mxu0 %v730
    %3267 = vmatpush.msra.mxu0 %v722
    %3268 = vmatpush.msra.mxu0 %v714
    %3269 = vmatpush.msra.mxu0 %v706
    %3270 = vmatpush.msra.mxu0 %v698
    %3271 = vmatpush.msra.mxu0 %v690
    %3272 = vmatpush.msra.mxu0 %v682
    %3273 = vmatpush.msra.mxu0 %v674
    %3274 = vmatpush.msra.mxu0 %v666
    %3275 = vmatpush.msra.mxu0 %v658
    %3276 = vmatpush.msra.mxu0 %v650
    %3277 = vmatpush.msra.mxu0 %v642
    %3278 = vmatpush.msra.mxu0 %v634
    %3279 = vmatpush.msra.mxu0 %v626
    %3280 = vmatmul.f32.gmra.mxu0 %v3027
    %v3281 = vpop.f32.mrf.mxu0
    %v3282 = vadd.f32 %v3262, %v3281
    %3283 = vdwg.mxu0
    %3284 = vmatpush.msra.mxu0 %v619
    %3285 = vmatpush.msra.mxu0 %v611
    %3286 = vmatpush.msra.mxu0 %v603
    %3287 = vmatpush.msra.mxu0 %v595
    %3288 = vmatpush.msra.mxu0 %v587
    %3289 = vmatpush.msra.mxu0 %v579
    %3290 = vmatpush.msra.mxu0 %v571
    %3291 = vmatpush.msra.mxu0 %v563
    %3292 = vmatpush.msra.mxu0 %v555
    %3293 = vmatpush.msra.mxu0 %v547
    %3294 = vmatpush.msra.mxu0 %v539
    %3295 = vmatpush.msra.mxu0 %v531
    %3296 = vmatpush.msra.mxu0 %v523
    %3297 = vmatpush.msra.mxu0 %v515
    %3298 = vmatpush.msra.mxu0 %v507
    %3299 = vmatpush.msra.mxu0 %v499
    %3300 = vmatmul.f32.gmra.mxu0 %v3026
    %v3301 = vpop.f32.mrf.mxu0
    %v3302 = vadd.f32 0.0, %v3301
    %3303 = vdwg.mxu0
    %3304 = vmatpush.msra.mxu0 %v747
    %3305 = vmatpush.msra.mxu0 %v739
    %3306 = vmatpush.msra.mxu0 %v731
    %3307 = vmatpush.msra.mxu0 %v723
    %3308 = vmatpush.msra.mxu0 %v715
    %3309 = vmatpush.msra.mxu0 %v707
    %3310 = vmatpush.msra.mxu0 %v699
    %3311 = vmatpush.msra.mxu0 %v691
    %3312 = vmatpush.msra.mxu0 %v683
    %3313 = vmatpush.msra.mxu0 %v675
    %3314 = vmatpush.msra.mxu0 %v667
    %3315 = vmatpush.msra.mxu0 %v659
    %3316 = vmatpush.msra.mxu0 %v651
    %3317 = vmatpush.msra.mxu0 %v643
    %3318 = vmatpush.msra.mxu0 %v635
    %3319 = vmatpush.msra.mxu0 %v627
    %3320 = vmatmul.f32.gmra.mxu0 %v3027
    %v3321 = vpop.f32.mrf.mxu0
    %v3322 = vadd.f32 %v3302, %v3321
    %3323 = vdwg.mxu0
    %3324 = vmatpush.msra.mxu0 %v620
    %3325 = vmatpush.msra.mxu0 %v612
    %3326 = vmatpush.msra.mxu0 %v604
    %3327 = vmatpush.msra.mxu0 %v596
    %3328 = vmatpush.msra.mxu0 %v588
    %3329 = vmatpush.msra.mxu0 %v580
    %3330 = vmatpush.msra.mxu0 %v572
    %3331 = vmatpush.msra.mxu0 %v564
    %3332 = vmatpush.msra.mxu0 %v556
    %3333 = vmatpush.msra.mxu0 %v548
    %3334 = vmatpush.msra.mxu0 %v540
    %3335 = vmatpush.msra.mxu0 %v532
    %3336 = vmatpush.msra.mxu0 %v524
    %3337 = vmatpush.msra.mxu0 %v516
    %3338 = vmatpush.msra.mxu0 %v508
    %3339 = vmatpush.msra.mxu0 %v500
    %3340 = vmatmul.f32.gmra.mxu0 %v3026
    %v3341 = vpop.f32.mrf.mxu0
    %v3342 = vadd.f32 0.0, %v3341
    %3343 = vdwg.mxu0
    %3344 = vmatpush.msra.mxu0 %v748
    %3345 = vmatpush.msra.mxu0 %v740
    %3346 = vmatpush.msra.mxu0 %v732
    %3347 = vmatpush.msra.mxu0 %v724
    %3348 = vmatpush.msra.mxu0 %v716
    %3349 = vmatpush.msra.mxu0 %v708
    %3350 = vmatpush.msra.mxu0 %v700
    %3351 = vmatpush.msra.mxu0 %v692
    %3352 = vmatpush.msra.mxu0 %v684
    %3353 = vmatpush.msra.mxu0 %v676
    %3354 = vmatpush.msra.mxu0 %v668
    %3355 = vmatpush.msra.mxu0 %v660
    %3356 = vmatpush.msra.mxu0 %v652
    %3357 = vmatpush.msra.mxu0 %v644
    %3358 = vmatpush.msra.mxu0 %v636
    %3359 = vmatpush.msra.mxu0 %v628
    %3360 = vmatmul.f32.gmra.mxu0 %v3027
    %v3361 = vpop.f32.mrf.mxu0
    %v3362 = vadd.f32 %v3342, %v3361
    %3363 = vdwg.mxu0
    %v3364 = vadd.f32 %v3036, %v3082
    %v3365 = vadd.f32 %v3037, %v3122
    %v3366 = vadd.f32 %v3038, %v3162
    %v3367 = vadd.f32 %v3039, %v3202
    %v3368 = vadd.f32 %v3040, %v3242
    %v3369 = vadd.f32 %v3041, %v3282
    %v3370 = vadd.f32 %v3042, %v3322
    %v3371 = vadd.f32 %v3043, %v3362
    %v3372 = vmul.f32 %v3364, 0.5
    %v3373 = vmul.f32 %v3365, 0.5
    %v3374 = vmul.f32 %v3366, 0.5
    %v3375 = vmul.f32 %v3367, 0.5
    %v3376 = vtanh.pop %v3372
    %v3377 = vtanh.pop %v3373
    %v3378 = vtanh.pop %v3374
    %v3379 = vtanh.pop %v3375
    %v3380 = vmul.f32 %v3376, 0.5
    %v3381 = vmul.f32 %v3377, 0.5
    %v3382 = vmul.f32 %v3378, 0.5
    %v3383 = vmul.f32 %v3379, 0.5
    %v3384 = vadd.f32 %v3380, 0.5
    %v3385 = vadd.f32 %v3381, 0.5
    %v3386 = vadd.f32 %v3382, 0.5
    %v3387 = vadd.f32 %v3383, 0.5
    %v3388 = vtanh.pop %v3368
    %v3389 = vtanh.pop %v3369
    %v3390 = vmul.f32 %v3370, 0.5
    %v3391 = vmul.f32 %v3371, 0.5
    %v3392 = vtanh.pop %v3390
    %v3393 = vtanh.pop %v3391
    %v3394 = vmul.f32 %v3392, 0.5
    %v3395 = vmul.f32 %v3393, 0.5
    %v3396 = vadd.f32 %v3394, 0.5
    %v3397 = vadd.f32 %v3395, 0.5
    %v3398 = vmul.f32 %v3386, %v3022
    %v3399 = vmul.f32 %v3387, %v3023
    %v3400 = vmul.f32 %v3384, %v3388
    %v3401 = vmul.f32 %v3385, %v3389
    %v3402 = vadd.f32 %v3398, %v3400
    %v3403 = vadd.f32 %v3399, %v3401
    %v3404 = vtanh.pop %v3402
    %v3405 = vtanh.pop %v3403
    %v3406 = vmul.f32 %v3396, %v3404
    %v3407 = vmul.f32 %v3397, %v3405
    %s3408 = smul.u32 6, 2
    %s3409 = smul.addr %s3408, 8
    %s3410 = scalar_lea.vmem [#allocation8], %s3409
    %3411 = vst [vmem:[%s3410] sm:$0xff] %v3406
    %3412 = vst [vmem:[%s3410 + $0x8] sm:$0xff] %v3407
    %s3413 = smul.u32 7, 8
    %s3414 = smul.addr %s3413, 8
    %s3415 = scalar_lea.vmem [#allocation2], %s3414
    %v3416 = vld [vmem:[%s3415] sm:$0xff]
    %v3417 = vld [vmem:[%s3415 + $0x8] sm:$0xff]
    %v3418 = vld [vmem:[%s3415 + $0x10] sm:$0xff]
    %v3419 = vld [vmem:[%s3415 + $0x18] sm:$0xff]
    %v3420 = vld [vmem:[%s3415 + $0x20] sm:$0xff]
    %v3421 = vld [vmem:[%s3415 + $0x28] sm:$0xff]
    %v3422 = vld [vmem:[%s3415 + $0x30] sm:$0xff]
    %v3423 = vld [vmem:[%s3415 + $0x38] sm:$0xff]
    %3424 = vmatpush.msra.mxu0 %v613
    %3425 = vmatpush.msra.mxu0 %v605
    %3426 = vmatpush.msra.mxu0 %v597
    %3427 = vmatpush.msra.mxu0 %v589
    %3428 = vmatpush.msra.mxu0 %v581
    %3429 = vmatpush.msra.mxu0 %v573
    %3430 = vmatpush.msra.mxu0 %v565
    %3431 = vmatpush.msra.mxu0 %v557
    %3432 = vmatpush.msra.mxu0 %v549
    %3433 = vmatpush.msra.mxu0 %v541
    %3434 = vmatpush.msra.mxu0 %v533
    %3435 = vmatpush.msra.mxu0 %v525
    %3436 = vmatpush.msra.mxu0 %v517
    %3437 = vmatpush.msra.mxu0 %v509
    %3438 = vmatpush.msra.mxu0 %v501
    %3439 = vmatpush.msra.mxu0 %v493
    %3440 = vmatmul.f32.gmra.mxu0 %v3406
    %v3441 = vpop.f32.mrf.mxu0
    %v3442 = vadd.f32 0.0, %v3441
    %3443 = vdwg.mxu0
    %3444 = vmatpush.msra.mxu0 %v741
    %3445 = vmatpush.msra.mxu0 %v733
    %3446 = vmatpush.msra.mxu0 %v725
    %3447 = vmatpush.msra.mxu0 %v717
    %3448 = vmatpush.msra.mxu0 %v709
    %3449 = vmatpush.msra.mxu0 %v701
    %3450 = vmatpush.msra.mxu0 %v693
    %3451 = vmatpush.msra.mxu0 %v685
    %3452 = vmatpush.msra.mxu0 %v677
    %3453 = vmatpush.msra.mxu0 %v669
    %3454 = vmatpush.msra.mxu0 %v661
    %3455 = vmatpush.msra.mxu0 %v653
    %3456 = vmatpush.msra.mxu0 %v645
    %3457 = vmatpush.msra.mxu0 %v637
    %3458 = vmatpush.msra.mxu0 %v629
    %3459 = vmatpush.msra.mxu0 %v621
    %3460 = vmatmul.f32.gmra.mxu0 %v3407
    %v3461 = vpop.f32.mrf.mxu0
    %v3462 = vadd.f32 %v3442, %v3461
    %3463 = vdwg.mxu0
    %3464 = vmatpush.msra.mxu0 %v614
    %3465 = vmatpush.msra.mxu0 %v606
    %3466 = vmatpush.msra.mxu0 %v598
    %3467 = vmatpush.msra.mxu0 %v590
    %3468 = vmatpush.msra.mxu0 %v582
    %3469 = vmatpush.msra.mxu0 %v574
    %3470 = vmatpush.msra.mxu0 %v566
    %3471 = vmatpush.msra.mxu0 %v558
    %3472 = vmatpush.msra.mxu0 %v550
    %3473 = vmatpush.msra.mxu0 %v542
    %3474 = vmatpush.msra.mxu0 %v534
    %3475 = vmatpush.msra.mxu0 %v526
    %3476 = vmatpush.msra.mxu0 %v518
    %3477 = vmatpush.msra.mxu0 %v510
    %3478 = vmatpush.msra.mxu0 %v502
    %3479 = vmatpush.msra.mxu0 %v494
    %3480 = vmatmul.f32.gmra.mxu0 %v3406
    %v3481 = vpop.f32.mrf.mxu0
    %v3482 = vadd.f32 0.0, %v3481
    %3483 = vdwg.mxu0
    %3484 = vmatpush.msra.mxu0 %v742
    %3485 = vmatpush.msra.mxu0 %v734
    %3486 = vmatpush.msra.mxu0 %v726
    %3487 = vmatpush.msra.mxu0 %v718
    %3488 = vmatpush.msra.mxu0 %v710
    %3489 = vmatpush.msra.mxu0 %v702
    %3490 = vmatpush.msra.mxu0 %v694
    %3491 = vmatpush.msra.mxu0 %v686
    %3492 = vmatpush.msra.mxu0 %v678
    %3493 = vmatpush.msra.mxu0 %v670
    %3494 = vmatpush.msra.mxu0 %v662
    %3495 = vmatpush.msra.mxu0 %v654
    %3496 = vmatpush.msra.mxu0 %v646
    %3497 = vmatpush.msra.mxu0 %v638
    %3498 = vmatpush.msra.mxu0 %v630
    %3499 = vmatpush.msra.mxu0 %v622
    %3500 = vmatmul.f32.gmra.mxu0 %v3407
    %v3501 = vpop.f32.mrf.mxu0
    %v3502 = vadd.f32 %v3482, %v3501
    %3503 = vdwg.mxu0
    %3504 = vmatpush.msra.mxu0 %v615
    %3505 = vmatpush.msra.mxu0 %v607
    %3506 = vmatpush.msra.mxu0 %v599
    %3507 = vmatpush.msra.mxu0 %v591
    %3508 = vmatpush.msra.mxu0 %v583
    %3509 = vmatpush.msra.mxu0 %v575
    %3510 = vmatpush.msra.mxu0 %v567
    %3511 = vmatpush.msra.mxu0 %v559
    %3512 = vmatpush.msra.mxu0 %v551
    %3513 = vmatpush.msra.mxu0 %v543
    %3514 = vmatpush.msra.mxu0 %v535
    %3515 = vmatpush.msra.mxu0 %v527
    %3516 = vmatpush.msra.mxu0 %v519
    %3517 = vmatpush.msra.mxu0 %v511
    %3518 = vmatpush.msra.mxu0 %v503
    %3519 = vmatpush.msra.mxu0 %v495
    %3520 = vmatmul.f32.gmra.mxu0 %v3406
    %v3521 = vpop.f32.mrf.mxu0
    %v3522 = vadd.f32 0.0, %v3521
    %3523 = vdwg.mxu0
    %3524 = vmatpush.msra.mxu0 %v743
    %3525 = vmatpush.msra.mxu0 %v735
    %3526 = vmatpush.msra.mxu0 %v727
    %3527 = vmatpush.msra.mxu0 %v719
    %3528 = vmatpush.msra.mxu0 %v711
    %3529 = vmatpush.msra.mxu0 %v703
    %3530 = vmatpush.msra.mxu0 %v695
    %3531 = vmatpush.msra.mxu0 %v687
    %3532 = vmatpush.msra.mxu0 %v679
    %3533 = vmatpush.msra.mxu0 %v671
    %3534 = vmatpush.msra.mxu0 %v663
    %3535 = vmatpush.msra.mxu0 %v655
    %3536 = vmatpush.msra.mxu0 %v647
    %3537 = vmatpush.msra.mxu0 %v639
    %3538 = vmatpush.msra.mxu0 %v631
    %3539 = vmatpush.msra.mxu0 %v623
    %3540 = vmatmul.f32.gmra.mxu0 %v3407
    %v3541 = vpop.f32.mrf.mxu0
    %v3542 = vadd.f32 %v3522, %v3541
    %3543 = vdwg.mxu0
    %3544 = vmatpush.msra.mxu0 %v616
    %3545 = vmatpush.msra.mxu0 %v608
    %3546 = vmatpush.msra.mxu0 %v600
    %3547 = vmatpush.msra.mxu0 %v592
    %3548 = vmatpush.msra.mxu0 %v584
    %3549 = vmatpush.msra.mxu0 %v576
    %3550 = vmatpush.msra.mxu0 %v568
    %3551 = vmatpush.msra.mxu0 %v560
    %3552 = vmatpush.msra.mxu0 %v552
    %3553 = vmatpush.msra.mxu0 %v544
    %3554 = vmatpush.msra.mxu0 %v536
    %3555 = vmatpush.msra.mxu0 %v528
    %3556 = vmatpush.msra.mxu0 %v520
    %3557 = vmatpush.msra.mxu0 %v512
    %3558 = vmatpush.msra.mxu0 %v504
    %3559 = vmatpush.msra.mxu0 %v496
    %3560 = vmatmul.f32.gmra.mxu0 %v3406
    %v3561 = vpop.f32.mrf.mxu0
    %v3562 = vadd.f32 0.0, %v3561
    %3563 = vdwg.mxu0
    %3564 = vmatpush.msra.mxu0 %v744
    %3565 = vmatpush.msra.mxu0 %v736
    %3566 = vmatpush.msra.mxu0 %v728
    %3567 = vmatpush.msra.mxu0 %v720
    %3568 = vmatpush.msra.mxu0 %v712
    %3569 = vmatpush.msra.mxu0 %v704
    %3570 = vmatpush.msra.mxu0 %v696
    %3571 = vmatpush.msra.mxu0 %v688
    %3572 = vmatpush.msra.mxu0 %v680
    %3573 = vmatpush.msra.mxu0 %v672
    %3574 = vmatpush.msra.mxu0 %v664
    %3575 = vmatpush.msra.mxu0 %v656
    %3576 = vmatpush.msra.mxu0 %v648
    %3577 = vmatpush.msra.mxu0 %v640
    %3578 = vmatpush.msra.mxu0 %v632
    %3579 = vmatpush.msra.mxu0 %v624
    %3580 = vmatmul.f32.gmra.mxu0 %v3407
    %v3581 = vpop.f32.mrf.mxu0
    %v3582 = vadd.f32 %v3562, %v3581
    %3583 = vdwg.mxu0
    %3584 = vmatpush.msra.mxu0 %v617
    %3585 = vmatpush.msra.mxu0 %v609
    %3586 = vmatpush.msra.mxu0 %v601
    %3587 = vmatpush.msra.mxu0 %v593
    %3588 = vmatpush.msra.mxu0 %v585
    %3589 = vmatpush.msra.mxu0 %v577
    %3590 = vmatpush.msra.mxu0 %v569
    %3591 = vmatpush.msra.mxu0 %v561
    %3592 = vmatpush.msra.mxu0 %v553
    %3593 = vmatpush.msra.mxu0 %v545
    %3594 = vmatpush.msra.mxu0 %v537
    %3595 = vmatpush.msra.mxu0 %v529
    %3596 = vmatpush.msra.mxu0 %v521
    %3597 = vmatpush.msra.mxu0 %v513
    %3598 = vmatpush.msra.mxu0 %v505
    %3599 = vmatpush.msra.mxu0 %v497
    %3600 = vmatmul.f32.gmra.mxu0 %v3406
    %v3601 = vpop.f32.mrf.mxu0
    %v3602 = vadd.f32 0.0, %v3601
    %3603 = vdwg.mxu0
    %3604 = vmatpush.msra.mxu0 %v745
    %3605 = vmatpush.msra.mxu0 %v737
    %3606 = vmatpush.msra.mxu0 %v729
    %3607 = vmatpush.msra.mxu0 %v721
    %3608 = vmatpush.msra.mxu0 %v713
    %3609 = vmatpush.msra.mxu0 %v705
    %3610 = vmatpush.msra.mxu0 %v697
    %3611 = vmatpush.msra.mxu0 %v689
    %3612 = vmatpush.msra.mxu0 %v681
    %3613 = vmatpush.msra.mxu0 %v673
    %3614 = vmatpush.msra.mxu0 %v665
    %3615 = vmatpush.msra.mxu0 %v657
    %3616 = vmatpush.msra.mxu0 %v649
    %3617 = vmatpush.msra.mxu0 %v641
    %3618 = vmatpush.msra.mxu0 %v633
    %3619 = vmatpush.msra.mxu0 %v625
    %3620 = vmatmul.f32.gmra.mxu0 %v3407
    %v3621 = vpop.f32.mrf.mxu0
    %v3622 = vadd.f32 %v3602, %v3621
    %3623 = vdwg.mxu0
    %3624 = vmatpush.msra.mxu0 %v618
    %3625 = vmatpush.msra.mxu0 %v610
    %3626 = vmatpush.msra.mxu0 %v602
    %3627 = vmatpush.msra.mxu0 %v594
    %3628 = vmatpush.msra.mxu0 %v586
    %3629 = vmatpush.msra.mxu0 %v578
    %3630 = vmatpush.msra.mxu0 %v570
    %3631 = vmatpush.msra.mxu0 %v562
    %3632 = vmatpush.msra.mxu0 %v554
    %3633 = vmatpush.msra.mxu0 %v546
    %3634 = vmatpush.msra.mxu0 %v538
    %3635 = vmatpush.msra.mxu0 %v530
    %3636 = vmatpush.msra.mxu0 %v522
    %3637 = vmatpush.msra.mxu0 %v514
    %3638 = vmatpush.msra.mxu0 %v506
    %3639 = vmatpush.msra.mxu0 %v498
    %3640 = vmatmul.f32.gmra.mxu0 %v3406
    %v3641 = vpop.f32.mrf.mxu0
    %v3642 = vadd.f32 0.0, %v3641
    %3643 = vdwg.mxu0
    %3644 = vmatpush.msra.mxu0 %v746
    %3645 = vmatpush.msra.mxu0 %v738
    %3646 = vmatpush.msra.mxu0 %v730
    %3647 = vmatpush.msra.mxu0 %v722
    %3648 = vmatpush.msra.mxu0 %v714
    %3649 = vmatpush.msra.mxu0 %v706
    %3650 = vmatpush.msra.mxu0 %v698
    %3651 = vmatpush.msra.mxu0 %v690
    %3652 = vmatpush.msra.mxu0 %v682
    %3653 = vmatpush.msra.mxu0 %v674
    %3654 = vmatpush.msra.mxu0 %v666
    %3655 = vmatpush.msra.mxu0 %v658
    %3656 = vmatpush.msra.mxu0 %v650
    %3657 = vmatpush.msra.mxu0 %v642
    %3658 = vmatpush.msra.mxu0 %v634
    %3659 = vmatpush.msra.mxu0 %v626
    %3660 = vmatmul.f32.gmra.mxu0 %v3407
    %v3661 = vpop.f32.mrf.mxu0
    %v3662 = vadd.f32 %v3642, %v3661
    %3663 = vdwg.mxu0
    %3664 = vmatpush.msra.mxu0 %v619
    %3665 = vmatpush.msra.mxu0 %v611
    %3666 = vmatpush.msra.mxu0 %v603
    %3667 = vmatpush.msra.mxu0 %v595
    %3668 = vmatpush.msra.mxu0 %v587
    %3669 = vmatpush.msra.mxu0 %v579
    %3670 = vmatpush.msra.mxu0 %v571
    %3671 = vmatpush.msra.mxu0 %v563
    %3672 = vmatpush.msra.mxu0 %v555
    %3673 = vmatpush.msra.mxu0 %v547
    %3674 = vmatpush.msra.mxu0 %v539
    %3675 = vmatpush.msra.mxu0 %v531
    %3676 = vmatpush.msra.mxu0 %v523
    %3677 = vmatpush.msra.mxu0 %v515
    %3678 = vmatpush.msra.mxu0 %v507
    %3679 = vmatpush.msra.mxu0 %v499
    %3680 = vmatmul.f32.gmra.mxu0 %v3406
    %v3681 = vpop.f32.mrf.mxu0
    %v3682 = vadd.f32 0.0, %v3681
    %3683 = vdwg.mxu0
    %3684 = vmatpush.msra.mxu0 %v747
    %3685 = vmatpush.msra.mxu0 %v739
    %3686 = vmatpush.msra.mxu0 %v731
    %3687 = vmatpush.msra.mxu0 %v723
    %3688 = vmatpush.msra.mxu0 %v715
    %3689 = vmatpush.msra.mxu0 %v707
    %3690 = vmatpush.msra.mxu0 %v699
    %3691 = vmatpush.msra.mxu0 %v691
    %3692 = vmatpush.msra.mxu0 %v683
    %3693 = vmatpush.msra.mxu0 %v675
    %3694 = vmatpush.msra.mxu0 %v667
    %3695 = vmatpush.msra.mxu0 %v659
    %3696 = vmatpush.msra.mxu0 %v651
    %3697 = vmatpush.msra.mxu0 %v643
    %3698 = vmatpush.msra.mxu0 %v635
    %3699 = vmatpush.msra.mxu0 %v627
    %3700 = vmatmul.f32.gmra.mxu0 %v3407
    %v3701 = vpop.f32.mrf.mxu0
    %v3702 = vadd.f32 %v3682, %v3701
    %3703 = vdwg.mxu0
    %3704 = vmatpush.msra.mxu0 %v620
    %3705 = vmatpush.msra.mxu0 %v612
    %3706 = vmatpush.msra.mxu0 %v604
    %3707 = vmatpush.msra.mxu0 %v596
    %3708 = vmatpush.msra.mxu0 %v588
    %3709 = vmatpush.msra.mxu0 %v580
    %3710 = vmatpush.msra.mxu0 %v572
    %3711 = vmatpush.msra.mxu0 %v564
    %3712 = vmatpush.msra.mxu0 %v556
    %3713 = vmatpush.msra.mxu0 %v548
    %3714 = vmatpush.msra.mxu0 %v540
    %3715 = vmatpush.msra.mxu0 %v532
    %3716 = vmatpush.msra.mxu0 %v524
    %3717 = vmatpush.msra.mxu0 %v516
    %3718 = vmatpush.msra.mxu0 %v508
    %3719 = vmatpush.msra.mxu0 %v500
    %3720 = vmatmul.f32.gmra.mxu0 %v3406
    %v3721 = vpop.f32.mrf.mxu0
    %v3722 = vadd.f32 0.0, %v3721
    %3723 = vdwg.mxu0
    %3724 = vmatpush.msra.mxu0 %v748
    %3725 = vmatpush.msra.mxu0 %v740
    %3726 = vmatpush.msra.mxu0 %v732
    %3727 = vmatpush.msra.mxu0 %v724
    %3728 = vmatpush.msra.mxu0 %v716
    %3729 = vmatpush.msra.mxu0 %v708
    %3730 = vmatpush.msra.mxu0 %v700
    %3731 = vmatpush.msra.mxu0 %v692
    %3732 = vmatpush.msra.mxu0 %v684
    %3733 = vmatpush.msra.mxu0 %v676
    %3734 = vmatpush.msra.mxu0 %v668
    %3735 = vmatpush.msra.mxu0 %v660
    %3736 = vmatpush.msra.mxu0 %v652
    %3737 = vmatpush.msra.mxu0 %v644
    %3738 = vmatpush.msra.mxu0 %v636
    %3739 = vmatpush.msra.mxu0 %v628
    %3740 = vmatmul.f32.gmra.mxu0 %v3407
    %v3741 = vpop.f32.mrf.mxu0
    %v3742 = vadd.f32 %v3722, %v3741
    %3743 = vdwg.mxu0
    %v3744 = vadd.f32 %v3416, %v3462
    %v3745 = vadd.f32 %v3417, %v3502
    %v3746 = vadd.f32 %v3418, %v3542
    %v3747 = vadd.f32 %v3419, %v3582
    %v3748 = vadd.f32 %v3420, %v3622
    %v3749 = vadd.f32 %v3421, %v3662
    %v3750 = vadd.f32 %v3422, %v3702
    %v3751 = vadd.f32 %v3423, %v3742
    %v3752 = vmul.f32 %v3744, 0.5
    %v3753 = vmul.f32 %v3745, 0.5
    %v3754 = vmul.f32 %v3746, 0.5
    %v3755 = vmul.f32 %v3747, 0.5
    %v3756 = vtanh.pop %v3752
    %v3757 = vtanh.pop %v3753
    %v3758 = vtanh.pop %v3754
    %v3759 = vtanh.pop %v3755
    %v3760 = vmul.f32 %v3756, 0.5
    %v3761 = vmul.f32 %v3757, 0.5
    %v3762 = vmul.f32 %v3758, 0.5
    %v3763 = vmul.f32 %v3759, 0.5
    %v3764 = vadd.f32 %v3760, 0.5
    %v3765 = vadd.f32 %v3761, 0.5
    %v3766 = vadd.f32 %v3762, 0.5
    %v3767 = vadd.f32 %v3763, 0.5
    %v3768 = vtanh.pop %v3748
    %v3769 = vtanh.pop %v3749
    %v3770 = vmul.f32 %v3750, 0.5
    %v3771 = vmul.f32 %v3751, 0.5
    %v3772 = vtanh.pop %v3770
    %v3773 = vtanh.pop %v3771
    %v3774 = vmul.f32 %v3772, 0.5
    %v3775 = vmul.f32 %v3773, 0.5
    %v3776 = vadd.f32 %v3774, 0.5
    %v3777 = vadd.f32 %v3775, 0.5
    %v3778 = vmul.f32 %v3766, %v3402
    %v3779 = vmul.f32 %v3767, %v3403
    %v3780 = vmul.f32 %v3764, %v3768
    %v3781 = vmul.f32 %v3765, %v3769
    %v3782 = vadd.f32 %v3778, %v3780
    %v3783 = vadd.f32 %v3779, %v3781
    %v3784 = vtanh.pop %v3782
    %v3785 = vtanh.pop %v3783
    %v3786 = vmul.f32 %v3776, %v3784
    %v3787 = vmul.f32 %v3777, %v3785
    %s3788 = smul.u32 7, 2
    %s3789 = smul.addr %s3788, 8
    %s3790 = scalar_lea.vmem [#allocation8], %s3789
    %3791 = vst [vmem:[%s3790] sm:$0xff] %v3786
    %3792 = vst [vmem:[%s3790 + $0x8] sm:$0xff] %v3787
    %3793 = vst [vmem:[#allocation3] sm:$0xff] %v3786
    %3794 = vst [vmem:[#allocation3 + $0x8] sm:$0xff] %v3787
    %3795 = vst [vmem:[#allocation4] sm:$0xff] %v3782
    %3796 = vst [vmem:[#allocation4 + $0x8] sm:$0xff] %v3783
    // Predicated region
    $region26: #{tpu_custom_call.1} parent=1 // pred_check
      _
    $region27: #{tpu_custom_call.1} parent=1 // pred_check_branch
      %3798 = sbr.rel (0) target = $region29
    $region28: #{tpu_custom_call.1} parent=1 // pred_region
      %3800 = vsyncadd [#allocation7], 0
      %s3801 = sshll.u32 [#allocation8], 4
      %s3802 = int_to_ptr.vmem [resolvable:$true] %s3801
      %s3803 = sshll.u32 %s4, 4
      %s3804 = int_to_ptr.hbm [resolvable:$true] %s3803
      %3809 = dma.vmem_to_hbm [thread:$0]  %s3802, 2048, %s3804, [#allocation7], 256, 256, 16
    $region29: #{tpu_custom_call.1} parent=1 // pred_fallthru
      _
    // Predicated region
    $region30: #{tpu_custom_call.1} parent=1 // pred_check
      _
    $region31: #{tpu_custom_call.1} parent=1 // pred_check_branch
      %3811 = sbr.rel (0) target = $region33
    $region32: #{tpu_custom_call.1} parent=1 // pred_region
      %3813 = dma.done [#allocation7], 2048
    $region33: #{tpu_custom_call.1} parent=1 // pred_fallthru
      _
    %3814 = vsyncpa [#allocation6], 1
    %3815 = vsyncpa [#allocation7], 1

</llo_original>
